<compile_context>
chip_gen: v7x
topology: tpu7x:2x2x1
jax: 0.10.0
libtpu: 0.0.40
codegen_flags: <defaults>
</compile_context>

<pallas_src>
import functools
import math

import jax
import jax.numpy as jnp
from jax.experimental import pallas as pl
from jax.experimental.pallas import tpu as pltpu

# ---------------- synthetic hyper-parameters (small but structurally faithful) ----------------
B, C, IMG, PATCH = 2, 3, 16, 8
NPATCH = (IMG // PATCH) ** 2
SEQ = NPATCH + 1            # +CLS token
SP = 8                      # sequence padded to a full sublane tile
CPP = C * PATCH * PATCH

VIT_D, VIT_H, VIT_LAYERS, VIT_MLP = 64, 4, 2, 128
VIT_DH = VIT_D // VIT_H

LLM_D, LLM_H, LLM_LAYERS, LLM_MLP, VOCAB = 128, 4, 2, 256, 256
LLM_DH = LLM_D // LLM_H

F32 = jnp.float32
BF16 = jnp.bfloat16

VMEM_LIMIT_BYTES = 48 * 1024 * 1024


# ---------------- BlockSpec helpers (grid = (batch, layer)) ----------------
def _stacked(a):
    # per-layer stacked parameter (L, d0, d1) -> kernel sees layer l's (d0, d1)
    return pl.BlockSpec((None,) + a.shape[1:], lambda b, l: (l, 0, 0))


def _whole(a):
    # fetched once, constant across the whole grid
    if a.ndim == 2:
        return pl.BlockSpec(a.shape, lambda b, l: (0, 0))
    return pl.BlockSpec(a.shape, lambda b, l: (0, 0, 0))


def _batched(a):
    # per-batch-element block (B, d0, d1) -> kernel sees (1, d0, d1) of batch b
    return pl.BlockSpec((1,) + a.shape[1:], lambda b, l: (b, 0, 0))


def _compiler_params():
    return pltpu.CompilerParams(
        dimension_semantics=("parallel", "arbitrary"),
        vmem_limit_bytes=VMEM_LIMIT_BYTES)


# ---------------- in-kernel helpers (pure jnp, f32 math) ----------------
def _ln(x, g, b, eps):
    mu = jnp.mean(x, axis=-1, keepdims=True)
    var = jnp.mean(jnp.square(x - mu), axis=-1, keepdims=True)
    return (x - mu) * jax.lax.rsqrt(var + eps) * g + b


def _rms(x, g, eps):
    ms = jnp.mean(x * x, axis=-1, keepdims=True)
    return x * jax.lax.rsqrt(ms + eps) * g


def _softmax_rows(s):
    s = s - jnp.max(s, axis=-1, keepdims=True)
    p = jnp.exp(s)
    return p * pl.reciprocal(jnp.sum(p, axis=-1, keepdims=True), approx=True)


# ---------------- Pallas kernel: whole ViT stack + projection ----------------
def _vit_stack_kernel(patches_ref, add_ref, patch_w_ref,
                      ln1_g_ref, ln1_b_ref, wqkv_ref, bqkv_ref, wo_ref, bo_ref,
                      ln2_g_ref, ln2_b_ref, w1_ref, bm1_ref, w2_ref, bm2_ref,
                      lnf_g_ref, lnf_b_ref, projw_ref, projb_ref,
                      out_ref, res_ref,
                      *, heads, scale, valid_len, eps):
    layer = pl.program_id(1)
    n_layers = pl.num_programs(1)

    # ---- prologue: Conv2d(stride=kernel=PATCH) patch embedding + CLS/pos, once per b ----
    @pl.when(layer == 0)
    def _():
        emb = jnp.dot(patches_ref[0].astype(BF16), patch_w_ref[...],
                      preferred_element_type=F32)              # (SP, D)
        res_ref[...] = emb[None] + add_ref[...]                # cls/pos/bias baked in

    x = res_ref[...]                                           # (1, S, D) f32
    _, S, D = x.shape
    DH = D // heads
    M = S

    # ---- attention block (pre-LN, fused QKV, key-padding mask in-kernel) ----
    h = _ln(x, ln1_g_ref[...], ln1_b_ref[...], eps)
    qkv = (jnp.dot(h.reshape(M, D).astype(BF16), wqkv_ref[...],
                   preferred_element_type=F32)
           + bqkv_ref[...]).reshape(1, S, 3 * D)

    ki = jax.lax.broadcasted_iota(jnp.int32, (1, 1, S), 2)
    kmask = jnp.where(ki < valid_len, 0.0, -1e30).astype(F32)

    ctx = []
    for hh in range(heads):  # short static loop; contractions are single K=DH matmuls
        q = qkv[..., hh * DH:(hh + 1) * DH]
        k = qkv[..., D + hh * DH:D + (hh + 1) * DH]
        v = qkv[..., 2 * D + hh * DH:2 * D + (hh + 1) * DH]
        s = jnp.einsum("bqd,bkd->bqk", q.astype(BF16), k.astype(BF16),
                       preferred_element_type=F32) * scale + kmask
        p = _softmax_rows(s)
        ctx.append(jnp.einsum("bqk,bkd->bqd", p.astype(BF16), v.astype(BF16),
                              preferred_element_type=F32))
    ctx = jnp.concatenate(ctx, axis=-1)                        # (1, S, D)
    attn = (jnp.dot(ctx.reshape(M, D).astype(BF16), wo_ref[...],
                    preferred_element_type=F32) + bo_ref[...])  # ONE output projection
    x = x + attn.reshape(1, S, D)

    # ---- MLP block ----
    h = _ln(x, ln2_g_ref[...], ln2_b_ref[...], eps)
    h = (jnp.dot(h.reshape(M, D).astype(BF16), w1_ref[...],
                 preferred_element_type=F32) + bm1_ref[...])
    # TODO(synk): HF ViT uses exact (erf) GELU; tanh approximation used here.
    h = jax.nn.gelu(h, approximate=True)
    h = (jnp.dot(h.astype(BF16), w2_ref[...],
                 preferred_element_type=F32) + bm2_ref[...])
    x = x + h.reshape(1, S, D)
    res_ref[...] = x

    # ---- epilogue: ViT final LayerNorm + projection + cast to llama dtype (bf16) ----
    @pl.when(layer == n_layers - 1)
    def _():
        hf = _ln(x, lnf_g_ref[...], lnf_b_ref[...], eps)
        o = (jnp.dot(hf.reshape(M, D).astype(BF16), projw_ref[...],
                     preferred_element_type=F32) + projb_ref[...])
        out_ref[...] = o.reshape(1, S, o.shape[-1]).astype(out_ref.dtype)


# ---------------- Pallas kernel: whole LLaMA stack + lm_head + loss ----------------
def _llama_stack_kernel(emb_ref, cos_ref, sin_ref, lab_ref,
                        an_ref, wqkv_ref, wo_ref, mn_ref, wgu_ref, wd_ref,
                        fn_ref, lmw_ref,
                        logits_ref, parts_ref, res_ref,
                        *, heads, scale, eps):
    layer = pl.program_id(1)
    n_layers = pl.num_programs(1)

    @pl.when(layer == 0)
    def _():
        res_ref[...] = emb_ref[...].astype(F32)

    x = res_ref[...]                                           # (1, S, D) f32
    _, S, D = x.shape
    DH = D // heads
    HD2 = DH // 2
    M = S

    # causal mask, generated in-kernel
    qi = jax.lax.broadcasted_iota(jnp.int32, (1, S, S), 1)
    kidx = jax.lax.broadcasted_iota(jnp.int32, (1, S, S), 2)
    mask = jnp.where(kidx <= qi, 0.0, -1e30).astype(F32)

    cos = cos_ref[...]                                         # (1, S, DH) full-width
    sin = sin_ref[...]

    # ---- attention block (RMSNorm + fused QKV + rotate-half RoPE + causal) ----
    h = _rms(x, an_ref[...], eps)
    qkv = jnp.dot(h.reshape(M, D).astype(BF16), wqkv_ref[...],
                  preferred_element_type=F32).reshape(1, S, 3 * D)

    ctx = []
    for hh in range(heads):  # short static loop; one K=DH score matmul per head
        q = qkv[..., hh * DH:(hh + 1) * DH]
        k = qkv[..., D + hh * DH:D + (hh + 1) * DH]
        v = qkv[..., 2 * D + hh * DH:2 * D + (hh + 1) * DH]
        q = q * cos + jnp.concatenate([-q[..., HD2:], q[..., :HD2]], axis=-1) * sin
        k = k * cos + jnp.concatenate([-k[..., HD2:], k[..., :HD2]], axis=-1) * sin
        s = jnp.einsum("bqd,bkd->bqk", q.astype(BF16), k.astype(BF16),
                       preferred_element_type=F32) * scale + mask
        p = _softmax_rows(s)
        ctx.append(jnp.einsum("bqk,bkd->bqd", p.astype(BF16), v.astype(BF16),
                              preferred_element_type=F32))
    ctx = jnp.concatenate(ctx, axis=-1)                        # (1, S, D)
    attn = jnp.dot(ctx.reshape(M, D).astype(BF16), wo_ref[...],
                   preferred_element_type=F32)                  # ONE output projection
    x = x + attn.reshape(1, S, D)

    # ---- SwiGLU MLP (fused gate|up matmul) ----
    h = _rms(x, mn_ref[...], eps)
    gu = jnp.dot(h.reshape(M, D).astype(BF16), wgu_ref[...],
                 preferred_element_type=F32)
    half = gu.shape[-1] // 2
    gate, up = gu[:, :half], gu[:, half:]
    act = gate * jax.nn.sigmoid(gate) * up
    down = jnp.dot(act.astype(BF16), wd_ref[...], preferred_element_type=F32)
    x = x + down.reshape(1, S, D)
    res_ref[...] = x

    # ---- epilogue: final RMSNorm + lm_head + shifted masked cross-entropy partials ----
    @pl.when(layer == n_layers - 1)
    def _():
        hf = _rms(x, fn_ref[...], eps)
        logits = jnp.dot(hf.reshape(M, D).astype(BF16), lmw_ref[...],
                         preferred_element_type=F32)            # (S, V)
        V = logits.shape[-1]
        mx = jnp.max(logits, axis=-1, keepdims=True)
        lse = jnp.log(jnp.sum(jnp.exp(logits - mx), axis=-1, keepdims=True)) + mx

        lab = lab_ref[0]                                        # (S, 1) int32, -100 ignored
        col = jax.lax.broadcasted_iota(jnp.int32, logits.shape, 1)
        tgt = jnp.sum(jnp.where(col == lab, logits, 0.0), axis=-1, keepdims=True)
        valid = (lab >= 0).astype(F32)
        total = jnp.sum((lse - tgt) * valid)
        count = jnp.sum(valid)

        lane = jax.lax.broadcasted_iota(jnp.int32, (1, 128), 1)
        parts_ref[...] = jnp.where(lane == 0, total,
                                   jnp.where(lane == 1, count, 0.0))[None]
        logits_ref[...] = logits.reshape(1, S, V).astype(logits_ref.dtype)


# ---------------- parameter init (deterministic, in-script, layer-stacked) ----------------
class KeyGen:
    def __init__(self, key):
        self.key = key

    def __call__(self):
        self.key, sub = jax.random.split(self.key)
        return sub


def init_params(key):
    kg = KeyGen(key)

    def wf(shape, scale=0.02):
        return scale * jax.random.normal(kg(), shape, F32)

    def wb(shape, scale=0.02):            # matmul weights stored bf16 (MXU operands)
        return wf(shape, scale).astype(BF16)

    zeros = lambda s: jnp.zeros(s, F32)
    ones = lambda s: jnp.ones(s, F32)

    Lv = VIT_LAYERS
    vit = dict(
        patch_w=wb((CPP, VIT_D)), patch_b=zeros((1, VIT_D)),
        cls=wf((1, 1, VIT_D)), pos=wf((1, SEQ, VIT_D)),
        ln1_g=ones((Lv, 1, VIT_D)), ln1_b=zeros((Lv, 1, VIT_D)),
        wqkv=wb((Lv, VIT_D, 3 * VIT_D)), bqkv=zeros((Lv, 1, 3 * VIT_D)),   # fused q|k|v
        wo=wb((Lv, VIT_D, VIT_D)), bo=zeros((Lv, 1, VIT_D)),
        ln2_g=ones((Lv, 1, VIT_D)), ln2_b=zeros((Lv, 1, VIT_D)),
        w1=wb((Lv, VIT_D, VIT_MLP)), b1=zeros((Lv, 1, VIT_MLP)),
        w2=wb((Lv, VIT_MLP, VIT_D)), b2=zeros((Lv, 1, VIT_D)),
        lnf_g=ones((1, VIT_D)), lnf_b=zeros((1, VIT_D)),
    )
    proj = dict(w=wb((VIT_D, LLM_D)), b=zeros((1, LLM_D)))
    Ll = LLM_LAYERS
    llm = dict(
        attn_norm=ones((Ll, 1, LLM_D)),
        wqkv=wb((Ll, LLM_D, 3 * LLM_D)),                                   # fused q|k|v
        wo=wb((Ll, LLM_D, LLM_D)),
        mlp_norm=ones((Ll, 1, LLM_D)),
        w_gateup=wb((Ll, LLM_D, 2 * LLM_MLP)),                             # fused gate|up
        w_down=wb((Ll, LLM_MLP, LLM_D)),
        final_norm=ones((1, LLM_D)),
        lm_head=wb((LLM_D, VOCAB)),
    )
    return dict(vit=vit, proj=proj, llm=llm)


# ---------------- ViT encoder + projection: ONE fused pallas_call ----------------
def vit_project_forward(images, pv, pp):
    Bb = images.shape[0]
    # Conv2d(kernel=stride=PATCH) patch embedding == patchify + matmul (one-off XLA prologue).
    x = images.reshape(Bb, C, IMG // PATCH, PATCH, IMG // PATCH, PATCH)
    x = x.transpose(0, 2, 4, 1, 3, 5).reshape(Bb, NPATCH, CPP)
    patches = jnp.zeros((Bb, SP, CPP), F32).at[:, 1:1 + NPATCH, :].set(x)

    # row 0: CLS + pos[0]; rows 1..NPATCH: pos + conv bias; pad rows: 0.
    add = jnp.zeros((1, SP, VIT_D), F32)
    add = add.at[:, 0, :].set(pv["cls"][0, 0] + pv["pos"][0, 0])
    add = add.at[:, 1:SEQ, :].set(pv["pos"][:, 1:SEQ, :] + pv["patch_b"])

    scale = 1.0 / math.sqrt(VIT_DH)
    return pl.pallas_call(
        functools.partial(_vit_stack_kernel, heads=VIT_H, scale=scale,
                          valid_len=SEQ, eps=1e-12),
        out_shape=jax.ShapeDtypeStruct((Bb, SP, LLM_D), BF16),
        grid=(Bb, VIT_LAYERS),
        in_specs=[_batched(patches), _whole(add), _whole(pv["patch_w"]),
                  _stacked(pv["ln1_g"]), _stacked(pv["ln1_b"]),
                  _stacked(pv["wqkv"]), _stacked(pv["bqkv"]),
                  _stacked(pv["wo"]), _stacked(pv["bo"]),
                  _stacked(pv["ln2_g"]), _stacked(pv["ln2_b"]),
                  _stacked(pv["w1"]), _stacked(pv["b1"]),
                  _stacked(pv["w2"]), _stacked(pv["b2"]),
                  _whole(pv["lnf_g"]), _whole(pv["lnf_b"]),
                  _whole(pp["w"]), _whole(pp["b"])],
        out_specs=pl.BlockSpec((1, SP, LLM_D), lambda b, l: (b, 0, 0)),
        scratch_shapes=[pltpu.VMEM((1, SP, VIT_D), F32)],
        compiler_params=_compiler_params(),
    )(patches, add, pv["patch_w"],
      pv["ln1_g"], pv["ln1_b"], pv["wqkv"], pv["bqkv"], pv["wo"], pv["bo"],
      pv["ln2_g"], pv["ln2_b"], pv["w1"], pv["b1"], pv["w2"], pv["b2"],
      pv["lnf_g"], pv["lnf_b"], pp["w"], pp["b"])


# ---------------- LLaMA-style causal decoder + head/loss: ONE fused pallas_call ----------------
def rope_tables_full(S, dh, base=10000.0):
    inv = 1.0 / (base ** (jnp.arange(0, dh, 2, dtype=F32) / dh))
    freqs = jnp.outer(jnp.arange(S, dtype=F32), inv)              # (S, dh//2)
    cos = jnp.concatenate([jnp.cos(freqs), jnp.cos(freqs)], axis=-1)[None]  # (1, S, dh)
    sin = jnp.concatenate([jnp.sin(freqs), jnp.sin(freqs)], axis=-1)[None]
    return cos, sin


def build_shift_labels(labels, Bb):
    # HF LlamaForCausalLM loss: position t is scored against labels[t+1]; -100 ignored.
    lab_pad = jnp.full((Bb, SP), -100, jnp.int32).at[:, :SEQ].set(labels)
    shift = jnp.concatenate([lab_pad[:, 1:], jnp.full((Bb, 1), -100, jnp.int32)], axis=1)
    return shift.reshape(Bb, SP, 1)


def llama_forward(inputs_embeds, labels, p):
    Bb = inputs_embeds.shape[0]
    cos, sin = rope_tables_full(SP, LLM_DH)
    shift = build_shift_labels(labels, Bb)
    scale = 1.0 / math.sqrt(LLM_DH)

    logits_pad, parts = pl.pallas_call(
        functools.partial(_llama_stack_kernel, heads=LLM_H, scale=scale, eps=1e-5),
        out_shape=(jax.ShapeDtypeStruct((Bb, SP, VOCAB), F32),
                   jax.ShapeDtypeStruct((Bb, 1, 128), F32)),
        grid=(Bb, LLM_LAYERS),
        in_specs=[_batched(inputs_embeds), _whole(cos), _whole(sin), _batched(shift),
                  _stacked(p["attn_norm"]), _stacked(p["wqkv"]), _stacked(p["wo"]),
                  _stacked(p["mlp_norm"]), _stacked(p["w_gateup"]), _stacked(p["w_down"]),
                  _whole(p["final_norm"]), _whole(p["lm_head"])],
        out_specs=(pl.BlockSpec((1, SP, VOCAB), lambda b, l: (b, 0, 0)),
                   pl.BlockSpec((1, 1, 128), lambda b, l: (b, 0, 0))),
        scratch_shapes=[pltpu.VMEM((1, SP, LLM_D), F32)],
        compiler_params=_compiler_params(),
    )(inputs_embeds, cos, sin, shift,
      p["attn_norm"], p["wqkv"], p["wo"], p["mlp_norm"], p["w_gateup"], p["w_down"],
      p["final_norm"], p["lm_head"])

    # batch axis is a "parallel" grid dim, so the scalar loss is reduced here (tiny XLA op).
    total = jnp.sum(parts[:, 0, 0])
    count = jnp.maximum(jnp.sum(parts[:, 0, 1]), 1.0)
    return total / count, logits_pad[:, :SEQ]


# ---------------- full module forward ----------------
def vision_to_llama_forward(params, images, labels):
    # frozen ViT + final LN + nn.Linear projection + .to(llama.dtype): one fused call.
    embeds = vit_project_forward(images, params["vit"], params["proj"])  # (B, SP, 128) bf16
    loss, logits = llama_forward(embeds, labels, params["llm"])
    return loss, logits


if __name__ == "__main__":
    key = jax.random.PRNGKey(0)
    pkey, ikey, lkey = jax.random.split(key, 3)
    params = init_params(pkey)
    images = jax.random.normal(ikey, (B, C, IMG, IMG), F32)        # NCHW pixel_values
    labels = jax.random.randint(lkey, (B, SEQ), 0, VOCAB, jnp.int32)
    labels = labels.at[0, 0].set(-100)                             # exercise ignore_index

    fwd = jax.jit(vision_to_llama_forward)
    loss, logits = fwd(params, images, labels)
    jax.block_until_ready((loss, logits))
    assert logits.shape == (B, SEQ, VOCAB) and loss.shape == ()
    print("KERNEL_OK")
</pallas_src>

<mosaic_0001>
module attributes {stable_mosaic.version = 11 : i64} {
  func.func @_vit_stack_kernel(%arg0: i32, %arg1: i32, %arg2: memref<1x8x192xf32, #tpu.memory_space<vmem>>, %arg3: memref<1x8x64xf32, #tpu.memory_space<vmem>>, %arg4: memref<192x64xbf16, #tpu.memory_space<vmem>>, %arg5: memref<1x1x64xf32, #tpu.memory_space<vmem>>, %arg6: memref<1x1x64xf32, #tpu.memory_space<vmem>>, %arg7: memref<1x64x192xbf16, #tpu.memory_space<vmem>>, %arg8: memref<1x1x192xf32, #tpu.memory_space<vmem>>, %arg9: memref<1x64x64xbf16, #tpu.memory_space<vmem>>, %arg10: memref<1x1x64xf32, #tpu.memory_space<vmem>>, %arg11: memref<1x1x64xf32, #tpu.memory_space<vmem>>, %arg12: memref<1x1x64xf32, #tpu.memory_space<vmem>>, %arg13: memref<1x64x128xbf16, #tpu.memory_space<vmem>>, %arg14: memref<1x1x128xf32, #tpu.memory_space<vmem>>, %arg15: memref<1x128x64xbf16, #tpu.memory_space<vmem>>, %arg16: memref<1x1x64xf32, #tpu.memory_space<vmem>>, %arg17: memref<1x64xf32, #tpu.memory_space<vmem>>, %arg18: memref<1x64xf32, #tpu.memory_space<vmem>>, %arg19: memref<64x128xbf16, #tpu.memory_space<vmem>>, %arg20: memref<1x128xf32, #tpu.memory_space<vmem>>, %arg21: memref<1x8x128xbf16, #tpu.memory_space<vmem>>, %arg22: memref<1x8x64xf32, #tpu.memory_space<vmem>>) attributes {dimension_semantics = [#tpu.dimension_semantics<parallel>, #tpu.dimension_semantics<arbitrary>], iteration_bounds = array<i64: 2, 2>, scalar_prefetch = 0 : i64, scratch_operands = 1 : i64, tpu.core_type = #tpu.core_type<tc>, window_params = [{transform_indices = @transform_0, window_bounds = array<i64: 1, 8, 192>}, {pipeline_mode = #tpu.pipeline_mode<synchronous>, transform_indices = @transform_1, window_bounds = array<i64: 1, 8, 64>}, {pipeline_mode = #tpu.pipeline_mode<synchronous>, transform_indices = @transform_2, window_bounds = array<i64: 192, 64>}, {transform_indices = @transform_3, window_bounds = array<i64: 1, 1, 64>}, {transform_indices = @transform_4, window_bounds = array<i64: 1, 1, 64>}, {transform_indices = @transform_5, window_bounds = array<i64: 1, 64, 192>}, {transform_indices = @transform_6, window_bounds = array<i64: 1, 1, 192>}, {transform_indices = @transform_7, window_bounds = array<i64: 1, 64, 64>}, {transform_indices = @transform_8, window_bounds = array<i64: 1, 1, 64>}, {transform_indices = @transform_9, window_bounds = array<i64: 1, 1, 64>}, {transform_indices = @transform_10, window_bounds = array<i64: 1, 1, 64>}, {transform_indices = @transform_11, window_bounds = array<i64: 1, 64, 128>}, {transform_indices = @transform_12, window_bounds = array<i64: 1, 1, 128>}, {transform_indices = @transform_13, window_bounds = array<i64: 1, 128, 64>}, {transform_indices = @transform_14, window_bounds = array<i64: 1, 1, 64>}, {pipeline_mode = #tpu.pipeline_mode<synchronous>, transform_indices = @transform_15, window_bounds = array<i64: 1, 64>}, {pipeline_mode = #tpu.pipeline_mode<synchronous>, transform_indices = @transform_16, window_bounds = array<i64: 1, 64>}, {pipeline_mode = #tpu.pipeline_mode<synchronous>, transform_indices = @transform_17, window_bounds = array<i64: 64, 128>}, {pipeline_mode = #tpu.pipeline_mode<synchronous>, transform_indices = @transform_18, window_bounds = array<i64: 1, 128>}, {transform_indices = @transform_19, window_bounds = array<i64: 1, 8, 128>}]} {
    %c0_i32 = arith.constant 0 : i32
    %0 = arith.cmpi eq, %arg1, %c0_i32 : i32
    %1 = arith.extui %0 : i1 to i32
    %c0_i32_0 = arith.constant 0 : i32
    %2 = arith.cmpi ne, %1, %c0_i32_0 : i32
    scf.if %2 {
      %c0_82 = arith.constant 0 : index
      %c0_83 = arith.constant 0 : index
      %c0_84 = arith.constant 0 : index
      %216 = vector.load %arg2[%c0_82, %c0_83, %c0_84] : memref<1x8x192xf32, #tpu.memory_space<vmem>>, vector<1x8x192xf32>
      %217 = vector.shape_cast %216 : vector<1x8x192xf32> to vector<8x192xf32>
      %218 = arith.truncf %217 : vector<8x192xf32> to vector<8x192xbf16>
      %c0_85 = arith.constant 0 : index
      %c0_86 = arith.constant 0 : index
      %219 = vector.load %arg4[%c0_85, %c0_86] : memref<192x64xbf16, #tpu.memory_space<vmem>>, vector<192x64xbf16>
      %cst_87 = arith.constant dense<0.000000e+00> : vector<8x64xf32>
      %220 = tpu.matmul %218, %219, %cst_87 {dimension_numbers = #tpu.dot_dimension_numbers<[1], [0], [0], [1], [0, 0, 1, 1], [], []>} : vector<8x192xbf16>, vector<192x64xbf16>, vector<8x64xf32> -> vector<8x64xf32>
      %221 = vector.shape_cast %220 : vector<8x64xf32> to vector<1x8x64xf32>
      %c0_88 = arith.constant 0 : index
      %c0_89 = arith.constant 0 : index
      %c0_90 = arith.constant 0 : index
      %222 = vector.load %arg3[%c0_88, %c0_89, %c0_90] : memref<1x8x64xf32, #tpu.memory_space<vmem>>, vector<1x8x64xf32>
      %223 = arith.addf %221, %222 : vector<1x8x64xf32>
      %c0_91 = arith.constant 0 : index
      %c0_92 = arith.constant 0 : index
      %c0_93 = arith.constant 0 : index
      %224 = vector.load %arg22[%c0_91, %c0_92, %c0_93] : memref<1x8x64xf32, #tpu.memory_space<vmem>>, vector<1x8x64xf32>
      tpu.vector_store %arg22[%c0_91, %c0_92, %c0_93], %223 {strides = array<i32>} : memref<1x8x64xf32, #tpu.memory_space<vmem>>, vector<1x8x64xf32>,
    } else {
    }
    %c0 = arith.constant 0 : index
    %c0_1 = arith.constant 0 : index
    %c0_2 = arith.constant 0 : index
    %3 = vector.load %arg22[%c0, %c0_1, %c0_2] : memref<1x8x64xf32, #tpu.memory_space<vmem>>, vector<1x8x64xf32>
    %c0_3 = arith.constant 0 : index
    %c0_4 = arith.constant 0 : index
    %c0_5 = arith.constant 0 : index
    %4 = vector.load %arg5[%c0_3, %c0_4, %c0_5] : memref<1x1x64xf32, #tpu.memory_space<vmem>>, vector<1x1x64xf32>
    %5 = vector.shape_cast %4 : vector<1x1x64xf32> to vector<1x64xf32>
    %c0_6 = arith.constant 0 : index
    %c0_7 = arith.constant 0 : index
    %c0_8 = arith.constant 0 : index
    %6 = vector.load %arg6[%c0_6, %c0_7, %c0_8] : memref<1x1x64xf32, #tpu.memory_space<vmem>>, vector<1x1x64xf32>
    %7 = vector.shape_cast %6 : vector<1x1x64xf32> to vector<1x64xf32>
    %cst = arith.constant dense<0.000000e+00> : vector<1x8xf32>
    %8 = vector.multi_reduction <add>, %3, %cst [2] : vector<1x8x64xf32> to vector<1x8xf32>
    %9 = vector.shape_cast %8 : vector<1x8xf32> to vector<1x8x1xf32>
    %cst_9 = arith.constant 6.400000e+01 : f32
    %10 = vector.broadcast %cst_9 : f32 to vector<1x8x1xf32>
    %11 = arith.divf %9, %10 : vector<1x8x1xf32>
    %12 = vector.broadcast %11 : vector<1x8x1xf32> to vector<1x8x64xf32>
    %13 = arith.subf %3, %12 : vector<1x8x64xf32>
    %14 = arith.mulf %13, %13 : vector<1x8x64xf32>
    %cst_10 = arith.constant dense<0.000000e+00> : vector<1x8xf32>
    %15 = vector.multi_reduction <add>, %14, %cst_10 [2] : vector<1x8x64xf32> to vector<1x8xf32>
    %16 = vector.shape_cast %15 : vector<1x8xf32> to vector<1x8x1xf32>
    %cst_11 = arith.constant 6.400000e+01 : f32
    %17 = vector.broadcast %cst_11 : f32 to vector<1x8x1xf32>
    %18 = arith.divf %16, %17 : vector<1x8x1xf32>
    %19 = vector.broadcast %11 : vector<1x8x1xf32> to vector<1x8x64xf32>
    %20 = arith.subf %3, %19 : vector<1x8x64xf32>
    %cst_12 = arith.constant 9.99999996E-13 : f32
    %21 = vector.broadcast %cst_12 : f32 to vector<1x8x1xf32>
    %22 = arith.addf %18, %21 : vector<1x8x1xf32>
    %23 = math.rsqrt %22 : vector<1x8x1xf32>
    %24 = vector.broadcast %23 : vector<1x8x1xf32> to vector<1x8x64xf32>
    %25 = arith.mulf %20, %24 : vector<1x8x64xf32>
    %26 = vector.shape_cast %5 : vector<1x64xf32> to vector<1x1x64xf32>
    %27 = vector.broadcast %26 : vector<1x1x64xf32> to vector<1x8x64xf32>
    %28 = arith.mulf %25, %27 : vector<1x8x64xf32>
    %29 = vector.shape_cast %7 : vector<1x64xf32> to vector<1x1x64xf32>
    %30 = vector.broadcast %29 : vector<1x1x64xf32> to vector<1x8x64xf32>
    %31 = arith.addf %28, %30 : vector<1x8x64xf32>
    %32 = vector.shape_cast %31 : vector<1x8x64xf32> to vector<8x64xf32>
    %33 = arith.truncf %32 : vector<8x64xf32> to vector<8x64xbf16>
    %c0_13 = arith.constant 0 : index
    %c0_14 = arith.constant 0 : index
    %c0_15 = arith.constant 0 : index
    %34 = vector.load %arg7[%c0_13, %c0_14, %c0_15] : memref<1x64x192xbf16, #tpu.memory_space<vmem>>, vector<1x64x192xbf16>
    %35 = vector.shape_cast %34 : vector<1x64x192xbf16> to vector<64x192xbf16>
    %cst_16 = arith.constant dense<0.000000e+00> : vector<8x192xf32>
    %36 = tpu.matmul %33, %35, %cst_16 {dimension_numbers = #tpu.dot_dimension_numbers<[1], [0], [0], [1], [0, 0, 1, 1], [], []>} : vector<8x64xbf16>, vector<64x192xbf16>, vector<8x192xf32> -> vector<8x192xf32>
    %c0_17 = arith.constant 0 : index
    %c0_18 = arith.constant 0 : index
    %c0_19 = arith.constant 0 : index
    %37 = vector.load %arg8[%c0_17, %c0_18, %c0_19] : memref<1x1x192xf32, #tpu.memory_space<vmem>>, vector<1x1x192xf32>
    %38 = vector.shape_cast %37 : vector<1x1x192xf32> to vector<1x192xf32>
    %39 = vector.broadcast %38 : vector<1x192xf32> to vector<8x192xf32>
    %40 = arith.addf %36, %39 : vector<8x192xf32>
    %41 = vector.shape_cast %40 : vector<8x192xf32> to vector<1x8x192xf32>
    %42 = tpu.iota {dimensions = array<i32: 2>} : vector<1x1x8xi32>
    %c5_i32 = arith.constant 5 : i32
    %43 = vector.broadcast %c5_i32 : i32 to vector<1x1x8xi32>
    %44 = arith.cmpi slt, %42, %43 : vector<1x1x8xi32>
    %cst_20 = arith.constant 0.000000e+00 : f32
    %cst_21 = arith.constant -1.000000e+30 : f32
    %45 = vector.broadcast %cst_20 : f32 to vector<1x1x8xf32>
    %46 = vector.broadcast %cst_21 : f32 to vector<1x1x8xf32>
    %47 = arith.select %44, %45, %46 : vector<1x1x8xi1>, vector<1x1x8xf32>
    %48 = vector.extract_strided_slice %41 {offsets = [0, 0, 0], sizes = [1, 8, 16], strides = [1, 1, 1]} : vector<1x8x192xf32> to vector<1x8x16xf32>
    %49 = vector.extract_strided_slice %41 {offsets = [0, 0, 64], sizes = [1, 8, 16], strides = [1, 1, 1]} : vector<1x8x192xf32> to vector<1x8x16xf32>
    %50 = vector.extract_strided_slice %41 {offsets = [0, 0, 128], sizes = [1, 8, 16], strides = [1, 1, 1]} : vector<1x8x192xf32> to vector<1x8x16xf32>
    %51 = arith.truncf %48 : vector<1x8x16xf32> to vector<1x8x16xbf16>
    %52 = arith.truncf %49 : vector<1x8x16xf32> to vector<1x8x16xbf16>
    "tpu.trace_start"() <{level = 10 : i32, message = "bqd,bkd->bqk"}> : () -> ()
    %cst_22 = arith.constant dense<0.000000e+00> : vector<1x8x8xf32>
    %53 = tpu.matmul %51, %52, %cst_22 {dimension_numbers = #tpu.dot_dimension_numbers<[2], [2], [1], [1], [0, 0, 0, 1, 1, 1], [0], [0]>} : vector<1x8x16xbf16>, vector<1x8x16xbf16>, vector<1x8x8xf32> -> vector<1x8x8xf32>
    "tpu.trace_stop"() : () -> ()
    %cst_23 = arith.constant 2.500000e-01 : f32
    %54 = vector.broadcast %cst_23 : f32 to vector<1x8x8xf32>
    %55 = arith.mulf %53, %54 : vector<1x8x8xf32>
    %56 = vector.broadcast %47 : vector<1x1x8xf32> to vector<1x8x8xf32>
    %57 = arith.addf %55, %56 : vector<1x8x8xf32>
    %cst_24 = arith.constant dense<0xFF800000> : vector<1x8xf32>
    %58 = vector.multi_reduction <maximumf>, %57, %cst_24 [2] : vector<1x8x8xf32> to vector<1x8xf32>
    %59 = vector.shape_cast %58 : vector<1x8xf32> to vector<1x8x1xf32>
    %60 = vector.broadcast %59 : vector<1x8x1xf32> to vector<1x8x8xf32>
    %61 = arith.subf %57, %60 : vector<1x8x8xf32>
    %62 = math.exp %61 : vector<1x8x8xf32>
    %cst_25 = arith.constant dense<0.000000e+00> : vector<1x8xf32>
    %63 = vector.multi_reduction <add>, %62, %cst_25 [2] : vector<1x8x8xf32> to vector<1x8xf32>
    %64 = vector.shape_cast %63 : vector<1x8xf32> to vector<1x8x1xf32>
    %65 = tpu.reciprocal %64 {approx = true} : vector<1x8x1xf32> -> vector<1x8x1xf32>
    %66 = vector.broadcast %65 : vector<1x8x1xf32> to vector<1x8x8xf32>
    %67 = arith.mulf %62, %66 : vector<1x8x8xf32>
    %68 = arith.truncf %67 : vector<1x8x8xf32> to vector<1x8x8xbf16>
    %69 = arith.truncf %50 : vector<1x8x16xf32> to vector<1x8x16xbf16>
    "tpu.trace_start"() <{level = 10 : i32, message = "bqk,bkd->bqd"}> : () -> ()
    %cst_26 = arith.constant dense<0.000000e+00> : vector<1x8x16xf32>
    %70 = tpu.matmul %68, %69, %cst_26 {dimension_numbers = #tpu.dot_dimension_numbers<[2], [1], [1], [2], [0, 0, 0, 1, 1, 2], [0], [0]>} : vector<1x8x8xbf16>, vector<1x8x16xbf16>, vector<1x8x16xf32> -> vector<1x8x16xf32>
    "tpu.trace_stop"() : () -> ()
    %71 = vector.extract_strided_slice %41 {offsets = [0, 0, 16], sizes = [1, 8, 16], strides = [1, 1, 1]} : vector<1x8x192xf32> to vector<1x8x16xf32>
    %72 = vector.extract_strided_slice %41 {offsets = [0, 0, 80], sizes = [1, 8, 16], strides = [1, 1, 1]} : vector<1x8x192xf32> to vector<1x8x16xf32>
    %73 = vector.extract_strided_slice %41 {offsets = [0, 0, 144], sizes = [1, 8, 16], strides = [1, 1, 1]} : vector<1x8x192xf32> to vector<1x8x16xf32>
    %74 = arith.truncf %71 : vector<1x8x16xf32> to vector<1x8x16xbf16>
    %75 = arith.truncf %72 : vector<1x8x16xf32> to vector<1x8x16xbf16>
    "tpu.trace_start"() <{level = 10 : i32, message = "bqd,bkd->bqk"}> : () -> ()
    %cst_27 = arith.constant dense<0.000000e+00> : vector<1x8x8xf32>
    %76 = tpu.matmul %74, %75, %cst_27 {dimension_numbers = #tpu.dot_dimension_numbers<[2], [2], [1], [1], [0, 0, 0, 1, 1, 1], [0], [0]>} : vector<1x8x16xbf16>, vector<1x8x16xbf16>, vector<1x8x8xf32> -> vector<1x8x8xf32>
    "tpu.trace_stop"() : () -> ()
    %cst_28 = arith.constant 2.500000e-01 : f32
    %77 = vector.broadcast %cst_28 : f32 to vector<1x8x8xf32>
    %78 = arith.mulf %76, %77 : vector<1x8x8xf32>
    %79 = vector.broadcast %47 : vector<1x1x8xf32> to vector<1x8x8xf32>
    %80 = arith.addf %78, %79 : vector<1x8x8xf32>
    %cst_29 = arith.constant dense<0xFF800000> : vector<1x8xf32>
    %81 = vector.multi_reduction <maximumf>, %80, %cst_29 [2] : vector<1x8x8xf32> to vector<1x8xf32>
    %82 = vector.shape_cast %81 : vector<1x8xf32> to vector<1x8x1xf32>
    %83 = vector.broadcast %82 : vector<1x8x1xf32> to vector<1x8x8xf32>
    %84 = arith.subf %80, %83 : vector<1x8x8xf32>
    %85 = math.exp %84 : vector<1x8x8xf32>
    %cst_30 = arith.constant dense<0.000000e+00> : vector<1x8xf32>
    %86 = vector.multi_reduction <add>, %85, %cst_30 [2] : vector<1x8x8xf32> to vector<1x8xf32>
    %87 = vector.shape_cast %86 : vector<1x8xf32> to vector<1x8x1xf32>
    %88 = tpu.reciprocal %87 {approx = true} : vector<1x8x1xf32> -> vector<1x8x1xf32>
    %89 = vector.broadcast %88 : vector<1x8x1xf32> to vector<1x8x8xf32>
    %90 = arith.mulf %85, %89 : vector<1x8x8xf32>
    %91 = arith.truncf %90 : vector<1x8x8xf32> to vector<1x8x8xbf16>
    %92 = arith.truncf %73 : vector<1x8x16xf32> to vector<1x8x16xbf16>
    "tpu.trace_start"() <{level = 10 : i32, message = "bqk,bkd->bqd"}> : () -> ()
    %cst_31 = arith.constant dense<0.000000e+00> : vector<1x8x16xf32>
    %93 = tpu.matmul %91, %92, %cst_31 {dimension_numbers = #tpu.dot_dimension_numbers<[2], [1], [1], [2], [0, 0, 0, 1, 1, 2], [0], [0]>} : vector<1x8x8xbf16>, vector<1x8x16xbf16>, vector<1x8x16xf32> -> vector<1x8x16xf32>
    "tpu.trace_stop"() : () -> ()
    %94 = vector.extract_strided_slice %41 {offsets = [0, 0, 32], sizes = [1, 8, 16], strides = [1, 1, 1]} : vector<1x8x192xf32> to vector<1x8x16xf32>
    %95 = vector.extract_strided_slice %41 {offsets = [0, 0, 96], sizes = [1, 8, 16], strides = [1, 1, 1]} : vector<1x8x192xf32> to vector<1x8x16xf32>
    %96 = vector.extract_strided_slice %41 {offsets = [0, 0, 160], sizes = [1, 8, 16], strides = [1, 1, 1]} : vector<1x8x192xf32> to vector<1x8x16xf32>
    %97 = arith.truncf %94 : vector<1x8x16xf32> to vector<1x8x16xbf16>
    %98 = arith.truncf %95 : vector<1x8x16xf32> to vector<1x8x16xbf16>
    "tpu.trace_start"() <{level = 10 : i32, message = "bqd,bkd->bqk"}> : () -> ()
    %cst_32 = arith.constant dense<0.000000e+00> : vector<1x8x8xf32>
    %99 = tpu.matmul %97, %98, %cst_32 {dimension_numbers = #tpu.dot_dimension_numbers<[2], [2], [1], [1], [0, 0, 0, 1, 1, 1], [0], [0]>} : vector<1x8x16xbf16>, vector<1x8x16xbf16>, vector<1x8x8xf32> -> vector<1x8x8xf32>
    "tpu.trace_stop"() : () -> ()
    %cst_33 = arith.constant 2.500000e-01 : f32
    %100 = vector.broadcast %cst_33 : f32 to vector<1x8x8xf32>
    %101 = arith.mulf %99, %100 : vector<1x8x8xf32>
    %102 = vector.broadcast %47 : vector<1x1x8xf32> to vector<1x8x8xf32>
    %103 = arith.addf %101, %102 : vector<1x8x8xf32>
    %cst_34 = arith.constant dense<0xFF800000> : vector<1x8xf32>
    %104 = vector.multi_reduction <maximumf>, %103, %cst_34 [2] : vector<1x8x8xf32> to vector<1x8xf32>
    %105 = vector.shape_cast %104 : vector<1x8xf32> to vector<1x8x1xf32>
    %106 = vector.broadcast %105 : vector<1x8x1xf32> to vector<1x8x8xf32>
    %107 = arith.subf %103, %106 : vector<1x8x8xf32>
    %108 = math.exp %107 : vector<1x8x8xf32>
    %cst_35 = arith.constant dense<0.000000e+00> : vector<1x8xf32>
    %109 = vector.multi_reduction <add>, %108, %cst_35 [2] : vector<1x8x8xf32> to vector<1x8xf32>
    %110 = vector.shape_cast %109 : vector<1x8xf32> to vector<1x8x1xf32>
    %111 = tpu.reciprocal %110 {approx = true} : vector<1x8x1xf32> -> vector<1x8x1xf32>
    %112 = vector.broadcast %111 : vector<1x8x1xf32> to vector<1x8x8xf32>
    %113 = arith.mulf %108, %112 : vector<1x8x8xf32>
    %114 = arith.truncf %113 : vector<1x8x8xf32> to vector<1x8x8xbf16>
    %115 = arith.truncf %96 : vector<1x8x16xf32> to vector<1x8x16xbf16>
    "tpu.trace_start"() <{level = 10 : i32, message = "bqk,bkd->bqd"}> : () -> ()
    %cst_36 = arith.constant dense<0.000000e+00> : vector<1x8x16xf32>
    %116 = tpu.matmul %114, %115, %cst_36 {dimension_numbers = #tpu.dot_dimension_numbers<[2], [1], [1], [2], [0, 0, 0, 1, 1, 2], [0], [0]>} : vector<1x8x8xbf16>, vector<1x8x16xbf16>, vector<1x8x16xf32> -> vector<1x8x16xf32>
    "tpu.trace_stop"() : () -> ()
    %117 = vector.extract_strided_slice %41 {offsets = [0, 0, 48], sizes = [1, 8, 16], strides = [1, 1, 1]} : vector<1x8x192xf32> to vector<1x8x16xf32>
    %118 = vector.extract_strided_slice %41 {offsets = [0, 0, 112], sizes = [1, 8, 16], strides = [1, 1, 1]} : vector<1x8x192xf32> to vector<1x8x16xf32>
    %119 = vector.extract_strided_slice %41 {offsets = [0, 0, 176], sizes = [1, 8, 16], strides = [1, 1, 1]} : vector<1x8x192xf32> to vector<1x8x16xf32>
    %120 = arith.truncf %117 : vector<1x8x16xf32> to vector<1x8x16xbf16>
    %121 = arith.truncf %118 : vector<1x8x16xf32> to vector<1x8x16xbf16>
    "tpu.trace_start"() <{level = 10 : i32, message = "bqd,bkd->bqk"}> : () -> ()
    %cst_37 = arith.constant dense<0.000000e+00> : vector<1x8x8xf32>
    %122 = tpu.matmul %120, %121, %cst_37 {dimension_numbers = #tpu.dot_dimension_numbers<[2], [2], [1], [1], [0, 0, 0, 1, 1, 1], [0], [0]>} : vector<1x8x16xbf16>, vector<1x8x16xbf16>, vector<1x8x8xf32> -> vector<1x8x8xf32>
    "tpu.trace_stop"() : () -> ()
    %cst_38 = arith.constant 2.500000e-01 : f32
    %123 = vector.broadcast %cst_38 : f32 to vector<1x8x8xf32>
    %124 = arith.mulf %122, %123 : vector<1x8x8xf32>
    %125 = vector.broadcast %47 : vector<1x1x8xf32> to vector<1x8x8xf32>
    %126 = arith.addf %124, %125 : vector<1x8x8xf32>
    %cst_39 = arith.constant dense<0xFF800000> : vector<1x8xf32>
    %127 = vector.multi_reduction <maximumf>, %126, %cst_39 [2] : vector<1x8x8xf32> to vector<1x8xf32>
    %128 = vector.shape_cast %127 : vector<1x8xf32> to vector<1x8x1xf32>
    %129 = vector.broadcast %128 : vector<1x8x1xf32> to vector<1x8x8xf32>
    %130 = arith.subf %126, %129 : vector<1x8x8xf32>
    %131 = math.exp %130 : vector<1x8x8xf32>
    %cst_40 = arith.constant dense<0.000000e+00> : vector<1x8xf32>
    %132 = vector.multi_reduction <add>, %131, %cst_40 [2] : vector<1x8x8xf32> to vector<1x8xf32>
    %133 = vector.shape_cast %132 : vector<1x8xf32> to vector<1x8x1xf32>
    %134 = tpu.reciprocal %133 {approx = true} : vector<1x8x1xf32> -> vector<1x8x1xf32>
    %135 = vector.broadcast %134 : vector<1x8x1xf32> to vector<1x8x8xf32>
    %136 = arith.mulf %131, %135 : vector<1x8x8xf32>
    %137 = arith.truncf %136 : vector<1x8x8xf32> to vector<1x8x8xbf16>
    %138 = arith.truncf %119 : vector<1x8x16xf32> to vector<1x8x16xbf16>
    "tpu.trace_start"() <{level = 10 : i32, message = "bqk,bkd->bqd"}> : () -> ()
    %cst_41 = arith.constant dense<0.000000e+00> : vector<1x8x16xf32>
    %139 = tpu.matmul %137, %138, %cst_41 {dimension_numbers = #tpu.dot_dimension_numbers<[2], [1], [1], [2], [0, 0, 0, 1, 1, 2], [0], [0]>} : vector<1x8x8xbf16>, vector<1x8x16xbf16>, vector<1x8x16xf32> -> vector<1x8x16xf32>
    "tpu.trace_stop"() : () -> ()
    %140 = tpu.concatenate %70, %93, %116, %139 in 2 : vector<1x8x16xf32>, vector<1x8x16xf32>, vector<1x8x16xf32>, vector<1x8x16xf32> -> vector<1x8x64xf32>
    %141 = vector.shape_cast %140 : vector<1x8x64xf32> to vector<8x64xf32>
    %142 = arith.truncf %141 : vector<8x64xf32> to vector<8x64xbf16>
    %c0_42 = arith.constant 0 : index
    %c0_43 = arith.constant 0 : index
    %c0_44 = arith.constant 0 : index
    %143 = vector.load %arg9[%c0_42, %c0_43, %c0_44] : memref<1x64x64xbf16, #tpu.memory_space<vmem>>, vector<1x64x64xbf16>
    %144 = vector.shape_cast %143 : vector<1x64x64xbf16> to vector<64x64xbf16>
    %cst_45 = arith.constant dense<0.000000e+00> : vector<8x64xf32>
    %145 = tpu.matmul %142, %144, %cst_45 {dimension_numbers = #tpu.dot_dimension_numbers<[1], [0], [0], [1], [0, 0, 1, 1], [], []>} : vector<8x64xbf16>, vector<64x64xbf16>, vector<8x64xf32> -> vector<8x64xf32>
    %c0_46 = arith.constant 0 : index
    %c0_47 = arith.constant 0 : index
    %c0_48 = arith.constant 0 : index
    %146 = vector.load %arg10[%c0_46, %c0_47, %c0_48] : memref<1x1x64xf32, #tpu.memory_space<vmem>>, vector<1x1x64xf32>
    %147 = vector.shape_cast %146 : vector<1x1x64xf32> to vector<1x64xf32>
    %148 = vector.broadcast %147 : vector<1x64xf32> to vector<8x64xf32>
    %149 = arith.addf %145, %148 : vector<8x64xf32>
    %150 = vector.shape_cast %149 : vector<8x64xf32> to vector<1x8x64xf32>
    %151 = arith.addf %3, %150 : vector<1x8x64xf32>
    %c0_49 = arith.constant 0 : index
    %c0_50 = arith.constant 0 : index
    %c0_51 = arith.constant 0 : index
    %152 = vector.load %arg11[%c0_49, %c0_50, %c0_51] : memref<1x1x64xf32, #tpu.memory_space<vmem>>, vector<1x1x64xf32>
    %153 = vector.shape_cast %152 : vector<1x1x64xf32> to vector<1x64xf32>
    %c0_52 = arith.constant 0 : index
    %c0_53 = arith.constant 0 : index
    %c0_54 = arith.constant 0 : index
    %154 = vector.load %arg12[%c0_52, %c0_53, %c0_54] : memref<1x1x64xf32, #tpu.memory_space<vmem>>, vector<1x1x64xf32>
    %155 = vector.shape_cast %154 : vector<1x1x64xf32> to vector<1x64xf32>
    %cst_55 = arith.constant dense<0.000000e+00> : vector<1x8xf32>
    %156 = vector.multi_reduction <add>, %151, %cst_55 [2] : vector<1x8x64xf32> to vector<1x8xf32>
    %157 = vector.shape_cast %156 : vector<1x8xf32> to vector<1x8x1xf32>
    %cst_56 = arith.constant 6.400000e+01 : f32
    %158 = vector.broadcast %cst_56 : f32 to vector<1x8x1xf32>
    %159 = arith.divf %157, %158 : vector<1x8x1xf32>
    %160 = vector.broadcast %159 : vector<1x8x1xf32> to vector<1x8x64xf32>
    %161 = arith.subf %151, %160 : vector<1x8x64xf32>
    %162 = arith.mulf %161, %161 : vector<1x8x64xf32>
    %cst_57 = arith.constant dense<0.000000e+00> : vector<1x8xf32>
    %163 = vector.multi_reduction <add>, %162, %cst_57 [2] : vector<1x8x64xf32> to vector<1x8xf32>
    %164 = vector.shape_cast %163 : vector<1x8xf32> to vector<1x8x1xf32>
    %cst_58 = arith.constant 6.400000e+01 : f32
    %165 = vector.broadcast %cst_58 : f32 to vector<1x8x1xf32>
    %166 = arith.divf %164, %165 : vector<1x8x1xf32>
    %167 = vector.broadcast %159 : vector<1x8x1xf32> to vector<1x8x64xf32>
    %168 = arith.subf %151, %167 : vector<1x8x64xf32>
    %cst_59 = arith.constant 9.99999996E-13 : f32
    %169 = vector.broadcast %cst_59 : f32 to vector<1x8x1xf32>
    %170 = arith.addf %166, %169 : vector<1x8x1xf32>
    %171 = math.rsqrt %170 : vector<1x8x1xf32>
    %172 = vector.broadcast %171 : vector<1x8x1xf32> to vector<1x8x64xf32>
    %173 = arith.mulf %168, %172 : vector<1x8x64xf32>
    %174 = vector.shape_cast %153 : vector<1x64xf32> to vector<1x1x64xf32>
    %175 = vector.broadcast %174 : vector<1x1x64xf32> to vector<1x8x64xf32>
    %176 = arith.mulf %173, %175 : vector<1x8x64xf32>
    %177 = vector.shape_cast %155 : vector<1x64xf32> to vector<1x1x64xf32>
    %178 = vector.broadcast %177 : vector<1x1x64xf32> to vector<1x8x64xf32>
    %179 = arith.addf %176, %178 : vector<1x8x64xf32>
    %180 = vector.shape_cast %179 : vector<1x8x64xf32> to vector<8x64xf32>
    %181 = arith.truncf %180 : vector<8x64xf32> to vector<8x64xbf16>
    %c0_60 = arith.constant 0 : index
    %c0_61 = arith.constant 0 : index
    %c0_62 = arith.constant 0 : index
    %182 = vector.load %arg13[%c0_60, %c0_61, %c0_62] : memref<1x64x128xbf16, #tpu.memory_space<vmem>>, vector<1x64x128xbf16>
    %183 = vector.shape_cast %182 : vector<1x64x128xbf16> to vector<64x128xbf16>
    %cst_63 = arith.constant dense<0.000000e+00> : vector<8x128xf32>
    %184 = tpu.matmul %181, %183, %cst_63 {dimension_numbers = #tpu.dot_dimension_numbers<[1], [0], [0], [1], [0, 0, 1, 1], [], []>} : vector<8x64xbf16>, vector<64x128xbf16>, vector<8x128xf32> -> vector<8x128xf32>
    %c0_64 = arith.constant 0 : index
    %c0_65 = arith.constant 0 : index
    %c0_66 = arith.constant 0 : index
    %185 = vector.load %arg14[%c0_64, %c0_65, %c0_66] : memref<1x1x128xf32, #tpu.memory_space<vmem>>, vector<1x1x128xf32>
    %186 = vector.shape_cast %185 : vector<1x1x128xf32> to vector<1x128xf32>
    %187 = vector.broadcast %186 : vector<1x128xf32> to vector<8x128xf32>
    %188 = arith.addf %184, %187 : vector<8x128xf32>
    %189 = arith.mulf %188, %188 : vector<8x128xf32>
    %190 = arith.mulf %188, %189 : vector<8x128xf32>
    %cst_67 = arith.constant 4.471500e-02 : f32
    %191 = vector.broadcast %cst_67 : f32 to vector<8x128xf32>
    %192 = arith.mulf %191, %190 : vector<8x128xf32>
    %193 = arith.addf %188, %192 : vector<8x128xf32>
    %cst_68 = arith.constant 0.797884583 : f32
    %194 = vector.broadcast %cst_68 : f32 to vector<8x128xf32>
    %195 = arith.mulf %194, %193 : vector<8x128xf32>
    %196 = math.tanh %195 : vector<8x128xf32>
    %cst_69 = arith.constant 1.000000e+00 : f32
    %197 = vector.broadcast %cst_69 : f32 to vector<8x128xf32>
    %198 = arith.addf %197, %196 : vector<8x128xf32>
    %cst_70 = arith.constant 5.000000e-01 : f32
    %199 = vector.broadcast %cst_70 : f32 to vector<8x128xf32>
    %200 = arith.mulf %199, %198 : vector<8x128xf32>
    %201 = arith.mulf %188, %200 : vector<8x128xf32>
    %202 = arith.truncf %201 : vector<8x128xf32> to vector<8x128xbf16>
    %c0_71 = arith.constant 0 : index
    %c0_72 = arith.constant 0 : index
    %c0_73 = arith.constant 0 : index
    %203 = vector.load %arg15[%c0_71, %c0_72, %c0_73] : memref<1x128x64xbf16, #tpu.memory_space<vmem>>, vector<1x128x64xbf16>
    %204 = vector.shape_cast %203 : vector<1x128x64xbf16> to vector<128x64xbf16>
    %cst_74 = arith.constant dense<0.000000e+00> : vector<8x64xf32>
    %205 = tpu.matmul %202, %204, %cst_74 {dimension_numbers = #tpu.dot_dimension_numbers<[1], [0], [0], [1], [0, 0, 1, 1], [], []>} : vector<8x128xbf16>, vector<128x64xbf16>, vector<8x64xf32> -> vector<8x64xf32>
    %c0_75 = arith.constant 0 : index
    %c0_76 = arith.constant 0 : index
    %c0_77 = arith.constant 0 : index
    %206 = vector.load %arg16[%c0_75, %c0_76, %c0_77] : memref<1x1x64xf32, #tpu.memory_space<vmem>>, vector<1x1x64xf32>
    %207 = vector.shape_cast %206 : vector<1x1x64xf32> to vector<1x64xf32>
    %208 = vector.broadcast %207 : vector<1x64xf32> to vector<8x64xf32>
    %209 = arith.addf %205, %208 : vector<8x64xf32>
    %210 = vector.shape_cast %209 : vector<8x64xf32> to vector<1x8x64xf32>
    %211 = arith.addf %151, %210 : vector<1x8x64xf32>
    %c0_78 = arith.constant 0 : index
    %c0_79 = arith.constant 0 : index
    %c0_80 = arith.constant 0 : index
    %212 = vector.load %arg22[%c0_78, %c0_79, %c0_80] : memref<1x8x64xf32, #tpu.memory_space<vmem>>, vector<1x8x64xf32>
    tpu.vector_store %arg22[%c0_78, %c0_79, %c0_80], %211 {strides = array<i32>} : memref<1x8x64xf32, #tpu.memory_space<vmem>>, vector<1x8x64xf32>,
    %c1_i32 = arith.constant 1 : i32
    %213 = arith.cmpi eq, %arg1, %c1_i32 : i32
    %214 = arith.extui %213 : i1 to i32
    %c0_i32_81 = arith.constant 0 : i32
    %215 = arith.cmpi ne, %214, %c0_i32_81 : i32
    scf.if %215 {
      %c0_82 = arith.constant 0 : index
      %c0_83 = arith.constant 0 : index
      %216 = vector.load %arg17[%c0_82, %c0_83] : memref<1x64xf32, #tpu.memory_space<vmem>>, vector<1x64xf32>
      %c0_84 = arith.constant 0 : index
      %c0_85 = arith.constant 0 : index
      %217 = vector.load %arg18[%c0_84, %c0_85] : memref<1x64xf32, #tpu.memory_space<vmem>>, vector<1x64xf32>
      %cst_86 = arith.constant dense<0.000000e+00> : vector<1x8xf32>
      %218 = vector.multi_reduction <add>, %211, %cst_86 [2] : vector<1x8x64xf32> to vector<1x8xf32>
      %219 = vector.shape_cast %218 : vector<1x8xf32> to vector<1x8x1xf32>
      %cst_87 = arith.constant 6.400000e+01 : f32
      %220 = vector.broadcast %cst_87 : f32 to vector<1x8x1xf32>
      %221 = arith.divf %219, %220 : vector<1x8x1xf32>
      %222 = vector.broadcast %221 : vector<1x8x1xf32> to vector<1x8x64xf32>
      %223 = arith.subf %211, %222 : vector<1x8x64xf32>
      %224 = arith.mulf %223, %223 : vector<1x8x64xf32>
      %cst_88 = arith.constant dense<0.000000e+00> : vector<1x8xf32>
      %225 = vector.multi_reduction <add>, %224, %cst_88 [2] : vector<1x8x64xf32> to vector<1x8xf32>
      %226 = vector.shape_cast %225 : vector<1x8xf32> to vector<1x8x1xf32>
      %cst_89 = arith.constant 6.400000e+01 : f32
      %227 = vector.broadcast %cst_89 : f32 to vector<1x8x1xf32>
      %228 = arith.divf %226, %227 : vector<1x8x1xf32>
      %229 = vector.broadcast %221 : vector<1x8x1xf32> to vector<1x8x64xf32>
      %230 = arith.subf %211, %229 : vector<1x8x64xf32>
      %cst_90 = arith.constant 9.99999996E-13 : f32
      %231 = vector.broadcast %cst_90 : f32 to vector<1x8x1xf32>
      %232 = arith.addf %228, %231 : vector<1x8x1xf32>
      %233 = math.rsqrt %232 : vector<1x8x1xf32>
      %234 = vector.broadcast %233 : vector<1x8x1xf32> to vector<1x8x64xf32>
      %235 = arith.mulf %230, %234 : vector<1x8x64xf32>
      %236 = vector.shape_cast %216 : vector<1x64xf32> to vector<1x1x64xf32>
      %237 = vector.broadcast %236 : vector<1x1x64xf32> to vector<1x8x64xf32>
      %238 = arith.mulf %235, %237 : vector<1x8x64xf32>
      %239 = vector.shape_cast %217 : vector<1x64xf32> to vector<1x1x64xf32>
      %240 = vector.broadcast %239 : vector<1x1x64xf32> to vector<1x8x64xf32>
      %241 = arith.addf %238, %240 : vector<1x8x64xf32>
      %242 = vector.shape_cast %241 : vector<1x8x64xf32> to vector<8x64xf32>
      %243 = arith.truncf %242 : vector<8x64xf32> to vector<8x64xbf16>
      %c0_91 = arith.constant 0 : index
      %c0_92 = arith.constant 0 : index
      %244 = vector.load %arg19[%c0_91, %c0_92] : memref<64x128xbf16, #tpu.memory_space<vmem>>, vector<64x128xbf16>
      %cst_93 = arith.constant dense<0.000000e+00> : vector<8x128xf32>
      %245 = tpu.matmul %243, %244, %cst_93 {dimension_numbers = #tpu.dot_dimension_numbers<[1], [0], [0], [1], [0, 0, 1, 1], [], []>} : vector<8x64xbf16>, vector<64x128xbf16>, vector<8x128xf32> -> vector<8x128xf32>
      %c0_94 = arith.constant 0 : index
      %c0_95 = arith.constant 0 : index
      %246 = vector.load %arg20[%c0_94, %c0_95] : memref<1x128xf32, #tpu.memory_space<vmem>>, vector<1x128xf32>
      %247 = vector.broadcast %246 : vector<1x128xf32> to vector<8x128xf32>
      %248 = arith.addf %245, %247 : vector<8x128xf32>
      %249 = vector.shape_cast %248 : vector<8x128xf32> to vector<1x8x128xf32>
      %250 = arith.truncf %249 : vector<1x8x128xf32> to vector<1x8x128xbf16>
      %c0_96 = arith.constant 0 : index
      %c0_97 = arith.constant 0 : index
      %c0_98 = arith.constant 0 : index
      %251 = vector.load %arg21[%c0_96, %c0_97, %c0_98] : memref<1x8x128xbf16, #tpu.memory_space<vmem>>, vector<1x8x128xbf16>
      tpu.vector_store %arg21[%c0_96, %c0_97, %c0_98], %250 {strides = array<i32>} : memref<1x8x128xbf16, #tpu.memory_space<vmem>>, vector<1x8x128xbf16>,
    } else {
    }
    return
  }
  func.func @transform_0(%arg0: i32, %arg1: i32) -> (i32, i32, i32) {
    %c0_i32 = arith.constant 0 : i32
    %c0_i32_0 = arith.constant 0 : i32
    %c0_i32_1 = arith.constant 0 : i32
    return %arg0, %c0_i32, %c0_i32_0 : i32, i32, i32
  }
  func.func @transform_1(%arg0: i32, %arg1: i32) -> (i32, i32, i32) {
    %c0_i32 = arith.constant 0 : i32
    %c0_i32_0 = arith.constant 0 : i32
    %c0_i32_1 = arith.constant 0 : i32
    %c0_i32_2 = arith.constant 0 : i32
    return %c0_i32, %c0_i32_0, %c0_i32_1 : i32, i32, i32
  }
  func.func @transform_2(%arg0: i32, %arg1: i32) -> (i32, i32) {
    %c0_i32 = arith.constant 0 : i32
    %c0_i32_0 = arith.constant 0 : i32
    %c0_i32_1 = arith.constant 0 : i32
    return %c0_i32, %c0_i32_0 : i32, i32
  }
  func.func @transform_3(%arg0: i32, %arg1: i32) -> (i32, i32, i32) {
    %c0_i32 = arith.constant 0 : i32
    %c0_i32_0 = arith.constant 0 : i32
    %c0_i32_1 = arith.constant 0 : i32
    return %arg1, %c0_i32, %c0_i32_0 : i32, i32, i32
  }
  func.func @transform_4(%arg0: i32, %arg1: i32) -> (i32, i32, i32) {
    %c0_i32 = arith.constant 0 : i32
    %c0_i32_0 = arith.constant 0 : i32
    %c0_i32_1 = arith.constant 0 : i32
    return %arg1, %c0_i32, %c0_i32_0 : i32, i32, i32
  }
  func.func @transform_5(%arg0: i32, %arg1: i32) -> (i32, i32, i32) {
    %c0_i32 = arith.constant 0 : i32
    %c0_i32_0 = arith.constant 0 : i32
    %c0_i32_1 = arith.constant 0 : i32
    return %arg1, %c0_i32, %c0_i32_0 : i32, i32, i32
  }
  func.func @transform_6(%arg0: i32, %arg1: i32) -> (i32, i32, i32) {
    %c0_i32 = arith.constant 0 : i32
    %c0_i32_0 = arith.constant 0 : i32
    %c0_i32_1 = arith.constant 0 : i32
    return %arg1, %c0_i32, %c0_i32_0 : i32, i32, i32
  }
  func.func @transform_7(%arg0: i32, %arg1: i32) -> (i32, i32, i32) {
    %c0_i32 = arith.constant 0 : i32
    %c0_i32_0 = arith.constant 0 : i32
    %c0_i32_1 = arith.constant 0 : i32
    return %arg1, %c0_i32, %c0_i32_0 : i32, i32, i32
  }
  func.func @transform_8(%arg0: i32, %arg1: i32) -> (i32, i32, i32) {
    %c0_i32 = arith.constant 0 : i32
    %c0_i32_0 = arith.constant 0 : i32
    %c0_i32_1 = arith.constant 0 : i32
    return %arg1, %c0_i32, %c0_i32_0 : i32, i32, i32
  }
  func.func @transform_9(%arg0: i32, %arg1: i32) -> (i32, i32, i32) {
    %c0_i32 = arith.constant 0 : i32
    %c0_i32_0 = arith.constant 0 : i32
    %c0_i32_1 = arith.constant 0 : i32
    return %arg1, %c0_i32, %c0_i32_0 : i32, i32, i32
  }
  func.func @transform_10(%arg0: i32, %arg1: i32) -> (i32, i32, i32) {
    %c0_i32 = arith.constant 0 : i32
    %c0_i32_0 = arith.constant 0 : i32
    %c0_i32_1 = arith.constant 0 : i32
    return %arg1, %c0_i32, %c0_i32_0 : i32, i32, i32
  }
  func.func @transform_11(%arg0: i32, %arg1: i32) -> (i32, i32, i32) {
    %c0_i32 = arith.constant 0 : i32
    %c0_i32_0 = arith.constant 0 : i32
    %c0_i32_1 = arith.constant 0 : i32
    return %arg1, %c0_i32, %c0_i32_0 : i32, i32, i32
  }
  func.func @transform_12(%arg0: i32, %arg1: i32) -> (i32, i32, i32) {
    %c0_i32 = arith.constant 0 : i32
    %c0_i32_0 = arith.constant 0 : i32
    %c0_i32_1 = arith.constant 0 : i32
    return %arg1, %c0_i32, %c0_i32_0 : i32, i32, i32
  }
  func.func @transform_13(%arg0: i32, %arg1: i32) -> (i32, i32, i32) {
    %c0_i32 = arith.constant 0 : i32
    %c0_i32_0 = arith.constant 0 : i32
    %c0_i32_1 = arith.constant 0 : i32
    return %arg1, %c0_i32, %c0_i32_0 : i32, i32, i32
  }
  func.func @transform_14(%arg0: i32, %arg1: i32) -> (i32, i32, i32) {
    %c0_i32 = arith.constant 0 : i32
    %c0_i32_0 = arith.constant 0 : i32
    %c0_i32_1 = arith.constant 0 : i32
    return %arg1, %c0_i32, %c0_i32_0 : i32, i32, i32
  }
  func.func @transform_15(%arg0: i32, %arg1: i32) -> (i32, i32) {
    %c0_i32 = arith.constant 0 : i32
    %c0_i32_0 = arith.constant 0 : i32
    %c0_i32_1 = arith.constant 0 : i32
    return %c0_i32, %c0_i32_0 : i32, i32
  }
  func.func @transform_16(%arg0: i32, %arg1: i32) -> (i32, i32) {
    %c0_i32 = arith.constant 0 : i32
    %c0_i32_0 = arith.constant 0 : i32
    %c0_i32_1 = arith.constant 0 : i32
    return %c0_i32, %c0_i32_0 : i32, i32
  }
  func.func @transform_17(%arg0: i32, %arg1: i32) -> (i32, i32) {
    %c0_i32 = arith.constant 0 : i32
    %c0_i32_0 = arith.constant 0 : i32
    %c0_i32_1 = arith.constant 0 : i32
    return %c0_i32, %c0_i32_0 : i32, i32
  }
  func.func @transform_18(%arg0: i32, %arg1: i32) -> (i32, i32) {
    %c0_i32 = arith.constant 0 : i32
    %c0_i32_0 = arith.constant 0 : i32
    %c0_i32_1 = arith.constant 0 : i32
    return %c0_i32, %c0_i32_0 : i32, i32
  }
  func.func @transform_19(%arg0: i32, %arg1: i32) -> (i32, i32, i32) {
    %c0_i32 = arith.constant 0 : i32
    %c0_i32_0 = arith.constant 0 : i32
    %c0_i32_1 = arith.constant 0 : i32
    return %arg0, %c0_i32, %c0_i32_0 : i32, i32, i32
  }
}

module attributes {stable_mosaic.version = 11 : i64} {
  func.func @_llama_stack_kernel(%arg0: i32, %arg1: i32, %arg2: memref<1x8x128xbf16, #tpu.memory_space<vmem>>, %arg3: memref<1x8x32xf32, #tpu.memory_space<vmem>>, %arg4: memref<1x8x32xf32, #tpu.memory_space<vmem>>, %arg5: memref<1x8x1xi32, #tpu.memory_space<vmem>>, %arg6: memref<1x1x128xf32, #tpu.memory_space<vmem>>, %arg7: memref<1x128x384xbf16, #tpu.memory_space<vmem>>, %arg8: memref<1x128x128xbf16, #tpu.memory_space<vmem>>, %arg9: memref<1x1x128xf32, #tpu.memory_space<vmem>>, %arg10: memref<1x128x512xbf16, #tpu.memory_space<vmem>>, %arg11: memref<1x256x128xbf16, #tpu.memory_space<vmem>>, %arg12: memref<1x128xf32, #tpu.memory_space<vmem>>, %arg13: memref<128x256xbf16, #tpu.memory_space<vmem>>, %arg14: memref<1x8x256xf32, #tpu.memory_space<vmem>>, %arg15: memref<1x1x128xf32, #tpu.memory_space<vmem>>, %arg16: memref<1x8x128xf32, #tpu.memory_space<vmem>>) attributes {dimension_semantics = [#tpu.dimension_semantics<parallel>, #tpu.dimension_semantics<arbitrary>], iteration_bounds = array<i64: 2, 2>, scalar_prefetch = 0 : i64, scratch_operands = 1 : i64, tpu.core_type = #tpu.core_type<tc>, window_params = [{transform_indices = @transform_0, window_bounds = array<i64: 1, 8, 128>}, {pipeline_mode = #tpu.pipeline_mode<synchronous>, transform_indices = @transform_1, window_bounds = array<i64: 1, 8, 32>}, {pipeline_mode = #tpu.pipeline_mode<synchronous>, transform_indices = @transform_2, window_bounds = array<i64: 1, 8, 32>}, {transform_indices = @transform_3, window_bounds = array<i64: 1, 8, 1>}, {transform_indices = @transform_4, window_bounds = array<i64: 1, 1, 128>}, {transform_indices = @transform_5, window_bounds = array<i64: 1, 128, 384>}, {transform_indices = @transform_6, window_bounds = array<i64: 1, 128, 128>}, {transform_indices = @transform_7, window_bounds = array<i64: 1, 1, 128>}, {transform_indices = @transform_8, window_bounds = array<i64: 1, 128, 512>}, {transform_indices = @transform_9, window_bounds = array<i64: 1, 256, 128>}, {pipeline_mode = #tpu.pipeline_mode<synchronous>, transform_indices = @transform_10, window_bounds = array<i64: 1, 128>}, {pipeline_mode = #tpu.pipeline_mode<synchronous>, transform_indices = @transform_11, window_bounds = array<i64: 128, 256>}, {transform_indices = @transform_12, window_bounds = array<i64: 1, 8, 256>}, {transform_indices = @transform_13, window_bounds = array<i64: 1, 1, 128>}]} {
    %c0_i32 = arith.constant 0 : i32
    %0 = arith.cmpi eq, %arg1, %c0_i32 : i32
    %1 = arith.extui %0 : i1 to i32
    %c0_i32_0 = arith.constant 0 : i32
    %2 = arith.cmpi ne, %1, %c0_i32_0 : i32
    scf.if %2 {
      %c0_71 = arith.constant 0 : index
      %c0_72 = arith.constant 0 : index
      %c0_73 = arith.constant 0 : index
      %232 = vector.load %arg2[%c0_71, %c0_72, %c0_73] : memref<1x8x128xbf16, #tpu.memory_space<vmem>>, vector<1x8x128xbf16>
      %233 = arith.extf %232 : vector<1x8x128xbf16> to vector<1x8x128xf32>
      %c0_74 = arith.constant 0 : index
      %c0_75 = arith.constant 0 : index
      %c0_76 = arith.constant 0 : index
      %234 = vector.load %arg16[%c0_74, %c0_75, %c0_76] : memref<1x8x128xf32, #tpu.memory_space<vmem>>, vector<1x8x128xf32>
      tpu.vector_store %arg16[%c0_74, %c0_75, %c0_76], %233 {strides = array<i32>} : memref<1x8x128xf32, #tpu.memory_space<vmem>>, vector<1x8x128xf32>,
    } else {
    }
    %c0 = arith.constant 0 : index
    %c0_1 = arith.constant 0 : index
    %c0_2 = arith.constant 0 : index
    %3 = vector.load %arg16[%c0, %c0_1, %c0_2] : memref<1x8x128xf32, #tpu.memory_space<vmem>>, vector<1x8x128xf32>
    %4 = tpu.iota {dimensions = array<i32: 1>} : vector<1x8x8xi32>
    %5 = tpu.iota {dimensions = array<i32: 2>} : vector<1x8x8xi32>
    %6 = arith.cmpi sle, %5, %4 : vector<1x8x8xi32>
    %cst = arith.constant 0.000000e+00 : f32
    %cst_3 = arith.constant -1.000000e+30 : f32
    %7 = vector.broadcast %cst : f32 to vector<1x8x8xf32>
    %8 = vector.broadcast %cst_3 : f32 to vector<1x8x8xf32>
    %9 = arith.select %6, %7, %8 : vector<1x8x8xi1>, vector<1x8x8xf32>
    %c0_4 = arith.constant 0 : index
    %c0_5 = arith.constant 0 : index
    %c0_6 = arith.constant 0 : index
    %10 = vector.load %arg3[%c0_4, %c0_5, %c0_6] : memref<1x8x32xf32, #tpu.memory_space<vmem>>, vector<1x8x32xf32>
    %c0_7 = arith.constant 0 : index
    %c0_8 = arith.constant 0 : index
    %c0_9 = arith.constant 0 : index
    %11 = vector.load %arg4[%c0_7, %c0_8, %c0_9] : memref<1x8x32xf32, #tpu.memory_space<vmem>>, vector<1x8x32xf32>
    %c0_10 = arith.constant 0 : index
    %c0_11 = arith.constant 0 : index
    %c0_12 = arith.constant 0 : index
    %12 = vector.load %arg6[%c0_10, %c0_11, %c0_12] : memref<1x1x128xf32, #tpu.memory_space<vmem>>, vector<1x1x128xf32>
    %13 = vector.shape_cast %12 : vector<1x1x128xf32> to vector<1x128xf32>
    %14 = arith.mulf %3, %3 : vector<1x8x128xf32>
    %cst_13 = arith.constant dense<0.000000e+00> : vector<1x8xf32>
    %15 = vector.multi_reduction <add>, %14, %cst_13 [2] : vector<1x8x128xf32> to vector<1x8xf32>
    %16 = vector.shape_cast %15 : vector<1x8xf32> to vector<1x8x1xf32>
    %cst_14 = arith.constant 1.280000e+02 : f32
    %17 = vector.broadcast %cst_14 : f32 to vector<1x8x1xf32>
    %18 = arith.divf %16, %17 : vector<1x8x1xf32>
    %cst_15 = arith.constant 9.99999974E-6 : f32
    %19 = vector.broadcast %cst_15 : f32 to vector<1x8x1xf32>
    %20 = arith.addf %18, %19 : vector<1x8x1xf32>
    %21 = math.rsqrt %20 : vector<1x8x1xf32>
    %22 = vector.broadcast %21 : vector<1x8x1xf32> to vector<1x8x128xf32>
    %23 = arith.mulf %3, %22 : vector<1x8x128xf32>
    %24 = vector.shape_cast %13 : vector<1x128xf32> to vector<1x1x128xf32>
    %25 = vector.broadcast %24 : vector<1x1x128xf32> to vector<1x8x128xf32>
    %26 = arith.mulf %23, %25 : vector<1x8x128xf32>
    %27 = vector.shape_cast %26 : vector<1x8x128xf32> to vector<8x128xf32>
    %28 = arith.truncf %27 : vector<8x128xf32> to vector<8x128xbf16>
    %c0_16 = arith.constant 0 : index
    %c0_17 = arith.constant 0 : index
    %c0_18 = arith.constant 0 : index
    %29 = vector.load %arg7[%c0_16, %c0_17, %c0_18] : memref<1x128x384xbf16, #tpu.memory_space<vmem>>, vector<1x128x384xbf16>
    %30 = vector.shape_cast %29 : vector<1x128x384xbf16> to vector<128x384xbf16>
    %cst_19 = arith.constant dense<0.000000e+00> : vector<8x384xf32>
    %31 = tpu.matmul %28, %30, %cst_19 {dimension_numbers = #tpu.dot_dimension_numbers<[1], [0], [0], [1], [0, 0, 1, 1], [], []>} : vector<8x128xbf16>, vector<128x384xbf16>, vector<8x384xf32> -> vector<8x384xf32>
    %32 = vector.shape_cast %31 : vector<8x384xf32> to vector<1x8x384xf32>
    %33 = vector.extract_strided_slice %32 {offsets = [0, 0, 0], sizes = [1, 8, 32], strides = [1, 1, 1]} : vector<1x8x384xf32> to vector<1x8x32xf32>
    %34 = vector.extract_strided_slice %32 {offsets = [0, 0, 128], sizes = [1, 8, 32], strides = [1, 1, 1]} : vector<1x8x384xf32> to vector<1x8x32xf32>
    %35 = vector.extract_strided_slice %32 {offsets = [0, 0, 256], sizes = [1, 8, 32], strides = [1, 1, 1]} : vector<1x8x384xf32> to vector<1x8x32xf32>
    %36 = arith.mulf %33, %10 : vector<1x8x32xf32>
    %37 = vector.extract_strided_slice %33 {offsets = [0, 0, 16], sizes = [1, 8, 16], strides = [1, 1, 1]} : vector<1x8x32xf32> to vector<1x8x16xf32>
    %cst_20 = arith.constant 0.000000e+00 : f32
    %38 = vector.broadcast %cst_20 : f32 to vector<1x8x16xf32>
    %39 = arith.subf %38, %37 : vector<1x8x16xf32>
    %40 = vector.extract_strided_slice %33 {offsets = [0, 0, 0], sizes = [1, 8, 16], strides = [1, 1, 1]} : vector<1x8x32xf32> to vector<1x8x16xf32>
    %41 = tpu.concatenate %39, %40 in 2 : vector<1x8x16xf32>, vector<1x8x16xf32> -> vector<1x8x32xf32>
    %42 = arith.mulf %41, %11 : vector<1x8x32xf32>
    %43 = arith.addf %36, %42 : vector<1x8x32xf32>
    %44 = arith.mulf %34, %10 : vector<1x8x32xf32>
    %45 = vector.extract_strided_slice %34 {offsets = [0, 0, 16], sizes = [1, 8, 16], strides = [1, 1, 1]} : vector<1x8x32xf32> to vector<1x8x16xf32>
    %cst_21 = arith.constant 0.000000e+00 : f32
    %46 = vector.broadcast %cst_21 : f32 to vector<1x8x16xf32>
    %47 = arith.subf %46, %45 : vector<1x8x16xf32>
    %48 = vector.extract_strided_slice %34 {offsets = [0, 0, 0], sizes = [1, 8, 16], strides = [1, 1, 1]} : vector<1x8x32xf32> to vector<1x8x16xf32>
    %49 = tpu.concatenate %47, %48 in 2 : vector<1x8x16xf32>, vector<1x8x16xf32> -> vector<1x8x32xf32>
    %50 = arith.mulf %49, %11 : vector<1x8x32xf32>
    %51 = arith.addf %44, %50 : vector<1x8x32xf32>
    %52 = arith.truncf %43 : vector<1x8x32xf32> to vector<1x8x32xbf16>
    %53 = arith.truncf %51 : vector<1x8x32xf32> to vector<1x8x32xbf16>
    "tpu.trace_start"() <{level = 10 : i32, message = "bqd,bkd->bqk"}> : () -> ()
    %cst_22 = arith.constant dense<0.000000e+00> : vector<1x8x8xf32>
    %54 = tpu.matmul %52, %53, %cst_22 {dimension_numbers = #tpu.dot_dimension_numbers<[2], [2], [1], [1], [0, 0, 0, 1, 1, 1], [0], [0]>} : vector<1x8x32xbf16>, vector<1x8x32xbf16>, vector<1x8x8xf32> -> vector<1x8x8xf32>
    "tpu.trace_stop"() : () -> ()
    %cst_23 = arith.constant 0.176776692 : f32
    %55 = vector.broadcast %cst_23 : f32 to vector<1x8x8xf32>
    %56 = arith.mulf %54, %55 : vector<1x8x8xf32>
    %57 = arith.addf %56, %9 : vector<1x8x8xf32>
    %cst_24 = arith.constant dense<0xFF800000> : vector<1x8xf32>
    %58 = vector.multi_reduction <maximumf>, %57, %cst_24 [2] : vector<1x8x8xf32> to vector<1x8xf32>
    %59 = vector.shape_cast %58 : vector<1x8xf32> to vector<1x8x1xf32>
    %60 = vector.broadcast %59 : vector<1x8x1xf32> to vector<1x8x8xf32>
    %61 = arith.subf %57, %60 : vector<1x8x8xf32>
    %62 = math.exp %61 : vector<1x8x8xf32>
    %cst_25 = arith.constant dense<0.000000e+00> : vector<1x8xf32>
    %63 = vector.multi_reduction <add>, %62, %cst_25 [2] : vector<1x8x8xf32> to vector<1x8xf32>
    %64 = vector.shape_cast %63 : vector<1x8xf32> to vector<1x8x1xf32>
    %65 = tpu.reciprocal %64 {approx = true} : vector<1x8x1xf32> -> vector<1x8x1xf32>
    %66 = vector.broadcast %65 : vector<1x8x1xf32> to vector<1x8x8xf32>
    %67 = arith.mulf %62, %66 : vector<1x8x8xf32>
    %68 = arith.truncf %67 : vector<1x8x8xf32> to vector<1x8x8xbf16>
    %69 = arith.truncf %35 : vector<1x8x32xf32> to vector<1x8x32xbf16>
    "tpu.trace_start"() <{level = 10 : i32, message = "bqk,bkd->bqd"}> : () -> ()
    %cst_26 = arith.constant dense<0.000000e+00> : vector<1x8x32xf32>
    %70 = tpu.matmul %68, %69, %cst_26 {dimension_numbers = #tpu.dot_dimension_numbers<[2], [1], [1], [2], [0, 0, 0, 1, 1, 2], [0], [0]>} : vector<1x8x8xbf16>, vector<1x8x32xbf16>, vector<1x8x32xf32> -> vector<1x8x32xf32>
    "tpu.trace_stop"() : () -> ()
    %71 = vector.extract_strided_slice %32 {offsets = [0, 0, 32], sizes = [1, 8, 32], strides = [1, 1, 1]} : vector<1x8x384xf32> to vector<1x8x32xf32>
    %72 = vector.extract_strided_slice %32 {offsets = [0, 0, 160], sizes = [1, 8, 32], strides = [1, 1, 1]} : vector<1x8x384xf32> to vector<1x8x32xf32>
    %73 = vector.extract_strided_slice %32 {offsets = [0, 0, 288], sizes = [1, 8, 32], strides = [1, 1, 1]} : vector<1x8x384xf32> to vector<1x8x32xf32>
    %74 = arith.mulf %71, %10 : vector<1x8x32xf32>
    %75 = vector.extract_strided_slice %71 {offsets = [0, 0, 16], sizes = [1, 8, 16], strides = [1, 1, 1]} : vector<1x8x32xf32> to vector<1x8x16xf32>
    %cst_27 = arith.constant 0.000000e+00 : f32
    %76 = vector.broadcast %cst_27 : f32 to vector<1x8x16xf32>
    %77 = arith.subf %76, %75 : vector<1x8x16xf32>
    %78 = vector.extract_strided_slice %71 {offsets = [0, 0, 0], sizes = [1, 8, 16], strides = [1, 1, 1]} : vector<1x8x32xf32> to vector<1x8x16xf32>
    %79 = tpu.concatenate %77, %78 in 2 : vector<1x8x16xf32>, vector<1x8x16xf32> -> vector<1x8x32xf32>
    %80 = arith.mulf %79, %11 : vector<1x8x32xf32>
    %81 = arith.addf %74, %80 : vector<1x8x32xf32>
    %82 = arith.mulf %72, %10 : vector<1x8x32xf32>
    %83 = vector.extract_strided_slice %72 {offsets = [0, 0, 16], sizes = [1, 8, 16], strides = [1, 1, 1]} : vector<1x8x32xf32> to vector<1x8x16xf32>
    %cst_28 = arith.constant 0.000000e+00 : f32
    %84 = vector.broadcast %cst_28 : f32 to vector<1x8x16xf32>
    %85 = arith.subf %84, %83 : vector<1x8x16xf32>
    %86 = vector.extract_strided_slice %72 {offsets = [0, 0, 0], sizes = [1, 8, 16], strides = [1, 1, 1]} : vector<1x8x32xf32> to vector<1x8x16xf32>
    %87 = tpu.concatenate %85, %86 in 2 : vector<1x8x16xf32>, vector<1x8x16xf32> -> vector<1x8x32xf32>
    %88 = arith.mulf %87, %11 : vector<1x8x32xf32>
    %89 = arith.addf %82, %88 : vector<1x8x32xf32>
    %90 = arith.truncf %81 : vector<1x8x32xf32> to vector<1x8x32xbf16>
    %91 = arith.truncf %89 : vector<1x8x32xf32> to vector<1x8x32xbf16>
    "tpu.trace_start"() <{level = 10 : i32, message = "bqd,bkd->bqk"}> : () -> ()
    %cst_29 = arith.constant dense<0.000000e+00> : vector<1x8x8xf32>
    %92 = tpu.matmul %90, %91, %cst_29 {dimension_numbers = #tpu.dot_dimension_numbers<[2], [2], [1], [1], [0, 0, 0, 1, 1, 1], [0], [0]>} : vector<1x8x32xbf16>, vector<1x8x32xbf16>, vector<1x8x8xf32> -> vector<1x8x8xf32>
    "tpu.trace_stop"() : () -> ()
    %cst_30 = arith.constant 0.176776692 : f32
    %93 = vector.broadcast %cst_30 : f32 to vector<1x8x8xf32>
    %94 = arith.mulf %92, %93 : vector<1x8x8xf32>
    %95 = arith.addf %94, %9 : vector<1x8x8xf32>
    %cst_31 = arith.constant dense<0xFF800000> : vector<1x8xf32>
    %96 = vector.multi_reduction <maximumf>, %95, %cst_31 [2] : vector<1x8x8xf32> to vector<1x8xf32>
    %97 = vector.shape_cast %96 : vector<1x8xf32> to vector<1x8x1xf32>
    %98 = vector.broadcast %97 : vector<1x8x1xf32> to vector<1x8x8xf32>
    %99 = arith.subf %95, %98 : vector<1x8x8xf32>
    %100 = math.exp %99 : vector<1x8x8xf32>
    %cst_32 = arith.constant dense<0.000000e+00> : vector<1x8xf32>
    %101 = vector.multi_reduction <add>, %100, %cst_32 [2] : vector<1x8x8xf32> to vector<1x8xf32>
    %102 = vector.shape_cast %101 : vector<1x8xf32> to vector<1x8x1xf32>
    %103 = tpu.reciprocal %102 {approx = true} : vector<1x8x1xf32> -> vector<1x8x1xf32>
    %104 = vector.broadcast %103 : vector<1x8x1xf32> to vector<1x8x8xf32>
    %105 = arith.mulf %100, %104 : vector<1x8x8xf32>
    %106 = arith.truncf %105 : vector<1x8x8xf32> to vector<1x8x8xbf16>
    %107 = arith.truncf %73 : vector<1x8x32xf32> to vector<1x8x32xbf16>
    "tpu.trace_start"() <{level = 10 : i32, message = "bqk,bkd->bqd"}> : () -> ()
    %cst_33 = arith.constant dense<0.000000e+00> : vector<1x8x32xf32>
    %108 = tpu.matmul %106, %107, %cst_33 {dimension_numbers = #tpu.dot_dimension_numbers<[2], [1], [1], [2], [0, 0, 0, 1, 1, 2], [0], [0]>} : vector<1x8x8xbf16>, vector<1x8x32xbf16>, vector<1x8x32xf32> -> vector<1x8x32xf32>
    "tpu.trace_stop"() : () -> ()
    %109 = vector.extract_strided_slice %32 {offsets = [0, 0, 64], sizes = [1, 8, 32], strides = [1, 1, 1]} : vector<1x8x384xf32> to vector<1x8x32xf32>
    %110 = vector.extract_strided_slice %32 {offsets = [0, 0, 192], sizes = [1, 8, 32], strides = [1, 1, 1]} : vector<1x8x384xf32> to vector<1x8x32xf32>
    %111 = vector.extract_strided_slice %32 {offsets = [0, 0, 320], sizes = [1, 8, 32], strides = [1, 1, 1]} : vector<1x8x384xf32> to vector<1x8x32xf32>
    %112 = arith.mulf %109, %10 : vector<1x8x32xf32>
    %113 = vector.extract_strided_slice %109 {offsets = [0, 0, 16], sizes = [1, 8, 16], strides = [1, 1, 1]} : vector<1x8x32xf32> to vector<1x8x16xf32>
    %cst_34 = arith.constant 0.000000e+00 : f32
    %114 = vector.broadcast %cst_34 : f32 to vector<1x8x16xf32>
    %115 = arith.subf %114, %113 : vector<1x8x16xf32>
    %116 = vector.extract_strided_slice %109 {offsets = [0, 0, 0], sizes = [1, 8, 16], strides = [1, 1, 1]} : vector<1x8x32xf32> to vector<1x8x16xf32>
    %117 = tpu.concatenate %115, %116 in 2 : vector<1x8x16xf32>, vector<1x8x16xf32> -> vector<1x8x32xf32>
    %118 = arith.mulf %117, %11 : vector<1x8x32xf32>
    %119 = arith.addf %112, %118 : vector<1x8x32xf32>
    %120 = arith.mulf %110, %10 : vector<1x8x32xf32>
    %121 = vector.extract_strided_slice %110 {offsets = [0, 0, 16], sizes = [1, 8, 16], strides = [1, 1, 1]} : vector<1x8x32xf32> to vector<1x8x16xf32>
    %cst_35 = arith.constant 0.000000e+00 : f32
    %122 = vector.broadcast %cst_35 : f32 to vector<1x8x16xf32>
    %123 = arith.subf %122, %121 : vector<1x8x16xf32>
    %124 = vector.extract_strided_slice %110 {offsets = [0, 0, 0], sizes = [1, 8, 16], strides = [1, 1, 1]} : vector<1x8x32xf32> to vector<1x8x16xf32>
    %125 = tpu.concatenate %123, %124 in 2 : vector<1x8x16xf32>, vector<1x8x16xf32> -> vector<1x8x32xf32>
    %126 = arith.mulf %125, %11 : vector<1x8x32xf32>
    %127 = arith.addf %120, %126 : vector<1x8x32xf32>
    %128 = arith.truncf %119 : vector<1x8x32xf32> to vector<1x8x32xbf16>
    %129 = arith.truncf %127 : vector<1x8x32xf32> to vector<1x8x32xbf16>
    "tpu.trace_start"() <{level = 10 : i32, message = "bqd,bkd->bqk"}> : () -> ()
    %cst_36 = arith.constant dense<0.000000e+00> : vector<1x8x8xf32>
    %130 = tpu.matmul %128, %129, %cst_36 {dimension_numbers = #tpu.dot_dimension_numbers<[2], [2], [1], [1], [0, 0, 0, 1, 1, 1], [0], [0]>} : vector<1x8x32xbf16>, vector<1x8x32xbf16>, vector<1x8x8xf32> -> vector<1x8x8xf32>
    "tpu.trace_stop"() : () -> ()
    %cst_37 = arith.constant 0.176776692 : f32
    %131 = vector.broadcast %cst_37 : f32 to vector<1x8x8xf32>
    %132 = arith.mulf %130, %131 : vector<1x8x8xf32>
    %133 = arith.addf %132, %9 : vector<1x8x8xf32>
    %cst_38 = arith.constant dense<0xFF800000> : vector<1x8xf32>
    %134 = vector.multi_reduction <maximumf>, %133, %cst_38 [2] : vector<1x8x8xf32> to vector<1x8xf32>
    %135 = vector.shape_cast %134 : vector<1x8xf32> to vector<1x8x1xf32>
    %136 = vector.broadcast %135 : vector<1x8x1xf32> to vector<1x8x8xf32>
    %137 = arith.subf %133, %136 : vector<1x8x8xf32>
    %138 = math.exp %137 : vector<1x8x8xf32>
    %cst_39 = arith.constant dense<0.000000e+00> : vector<1x8xf32>
    %139 = vector.multi_reduction <add>, %138, %cst_39 [2] : vector<1x8x8xf32> to vector<1x8xf32>
    %140 = vector.shape_cast %139 : vector<1x8xf32> to vector<1x8x1xf32>
    %141 = tpu.reciprocal %140 {approx = true} : vector<1x8x1xf32> -> vector<1x8x1xf32>
    %142 = vector.broadcast %141 : vector<1x8x1xf32> to vector<1x8x8xf32>
    %143 = arith.mulf %138, %142 : vector<1x8x8xf32>
    %144 = arith.truncf %143 : vector<1x8x8xf32> to vector<1x8x8xbf16>
    %145 = arith.truncf %111 : vector<1x8x32xf32> to vector<1x8x32xbf16>
    "tpu.trace_start"() <{level = 10 : i32, message = "bqk,bkd->bqd"}> : () -> ()
    %cst_40 = arith.constant dense<0.000000e+00> : vector<1x8x32xf32>
    %146 = tpu.matmul %144, %145, %cst_40 {dimension_numbers = #tpu.dot_dimension_numbers<[2], [1], [1], [2], [0, 0, 0, 1, 1, 2], [0], [0]>} : vector<1x8x8xbf16>, vector<1x8x32xbf16>, vector<1x8x32xf32> -> vector<1x8x32xf32>
    "tpu.trace_stop"() : () -> ()
    %147 = vector.extract_strided_slice %32 {offsets = [0, 0, 96], sizes = [1, 8, 32], strides = [1, 1, 1]} : vector<1x8x384xf32> to vector<1x8x32xf32>
    %148 = vector.extract_strided_slice %32 {offsets = [0, 0, 224], sizes = [1, 8, 32], strides = [1, 1, 1]} : vector<1x8x384xf32> to vector<1x8x32xf32>
    %149 = vector.extract_strided_slice %32 {offsets = [0, 0, 352], sizes = [1, 8, 32], strides = [1, 1, 1]} : vector<1x8x384xf32> to vector<1x8x32xf32>
    %150 = arith.mulf %147, %10 : vector<1x8x32xf32>
    %151 = vector.extract_strided_slice %147 {offsets = [0, 0, 16], sizes = [1, 8, 16], strides = [1, 1, 1]} : vector<1x8x32xf32> to vector<1x8x16xf32>
    %cst_41 = arith.constant 0.000000e+00 : f32
    %152 = vector.broadcast %cst_41 : f32 to vector<1x8x16xf32>
    %153 = arith.subf %152, %151 : vector<1x8x16xf32>
    %154 = vector.extract_strided_slice %147 {offsets = [0, 0, 0], sizes = [1, 8, 16], strides = [1, 1, 1]} : vector<1x8x32xf32> to vector<1x8x16xf32>
    %155 = tpu.concatenate %153, %154 in 2 : vector<1x8x16xf32>, vector<1x8x16xf32> -> vector<1x8x32xf32>
    %156 = arith.mulf %155, %11 : vector<1x8x32xf32>
    %157 = arith.addf %150, %156 : vector<1x8x32xf32>
    %158 = arith.mulf %148, %10 : vector<1x8x32xf32>
    %159 = vector.extract_strided_slice %148 {offsets = [0, 0, 16], sizes = [1, 8, 16], strides = [1, 1, 1]} : vector<1x8x32xf32> to vector<1x8x16xf32>
    %cst_42 = arith.constant 0.000000e+00 : f32
    %160 = vector.broadcast %cst_42 : f32 to vector<1x8x16xf32>
    %161 = arith.subf %160, %159 : vector<1x8x16xf32>
    %162 = vector.extract_strided_slice %148 {offsets = [0, 0, 0], sizes = [1, 8, 16], strides = [1, 1, 1]} : vector<1x8x32xf32> to vector<1x8x16xf32>
    %163 = tpu.concatenate %161, %162 in 2 : vector<1x8x16xf32>, vector<1x8x16xf32> -> vector<1x8x32xf32>
    %164 = arith.mulf %163, %11 : vector<1x8x32xf32>
    %165 = arith.addf %158, %164 : vector<1x8x32xf32>
    %166 = arith.truncf %157 : vector<1x8x32xf32> to vector<1x8x32xbf16>
    %167 = arith.truncf %165 : vector<1x8x32xf32> to vector<1x8x32xbf16>
    "tpu.trace_start"() <{level = 10 : i32, message = "bqd,bkd->bqk"}> : () -> ()
    %cst_43 = arith.constant dense<0.000000e+00> : vector<1x8x8xf32>
    %168 = tpu.matmul %166, %167, %cst_43 {dimension_numbers = #tpu.dot_dimension_numbers<[2], [2], [1], [1], [0, 0, 0, 1, 1, 1], [0], [0]>} : vector<1x8x32xbf16>, vector<1x8x32xbf16>, vector<1x8x8xf32> -> vector<1x8x8xf32>
    "tpu.trace_stop"() : () -> ()
    %cst_44 = arith.constant 0.176776692 : f32
    %169 = vector.broadcast %cst_44 : f32 to vector<1x8x8xf32>
    %170 = arith.mulf %168, %169 : vector<1x8x8xf32>
    %171 = arith.addf %170, %9 : vector<1x8x8xf32>
    %cst_45 = arith.constant dense<0xFF800000> : vector<1x8xf32>
    %172 = vector.multi_reduction <maximumf>, %171, %cst_45 [2] : vector<1x8x8xf32> to vector<1x8xf32>
    %173 = vector.shape_cast %172 : vector<1x8xf32> to vector<1x8x1xf32>
    %174 = vector.broadcast %173 : vector<1x8x1xf32> to vector<1x8x8xf32>
    %175 = arith.subf %171, %174 : vector<1x8x8xf32>
    %176 = math.exp %175 : vector<1x8x8xf32>
    %cst_46 = arith.constant dense<0.000000e+00> : vector<1x8xf32>
    %177 = vector.multi_reduction <add>, %176, %cst_46 [2] : vector<1x8x8xf32> to vector<1x8xf32>
    %178 = vector.shape_cast %177 : vector<1x8xf32> to vector<1x8x1xf32>
    %179 = tpu.reciprocal %178 {approx = true} : vector<1x8x1xf32> -> vector<1x8x1xf32>
    %180 = vector.broadcast %179 : vector<1x8x1xf32> to vector<1x8x8xf32>
    %181 = arith.mulf %176, %180 : vector<1x8x8xf32>
    %182 = arith.truncf %181 : vector<1x8x8xf32> to vector<1x8x8xbf16>
    %183 = arith.truncf %149 : vector<1x8x32xf32> to vector<1x8x32xbf16>
    "tpu.trace_start"() <{level = 10 : i32, message = "bqk,bkd->bqd"}> : () -> ()
    %cst_47 = arith.constant dense<0.000000e+00> : vector<1x8x32xf32>
    %184 = tpu.matmul %182, %183, %cst_47 {dimension_numbers = #tpu.dot_dimension_numbers<[2], [1], [1], [2], [0, 0, 0, 1, 1, 2], [0], [0]>} : vector<1x8x8xbf16>, vector<1x8x32xbf16>, vector<1x8x32xf32> -> vector<1x8x32xf32>
    "tpu.trace_stop"() : () -> ()
    %185 = tpu.concatenate %70, %108, %146, %184 in 2 : vector<1x8x32xf32>, vector<1x8x32xf32>, vector<1x8x32xf32>, vector<1x8x32xf32> -> vector<1x8x128xf32>
    %186 = vector.shape_cast %185 : vector<1x8x128xf32> to vector<8x128xf32>
    %187 = arith.truncf %186 : vector<8x128xf32> to vector<8x128xbf16>
    %c0_48 = arith.constant 0 : index
    %c0_49 = arith.constant 0 : index
    %c0_50 = arith.constant 0 : index
    %188 = vector.load %arg8[%c0_48, %c0_49, %c0_50] : memref<1x128x128xbf16, #tpu.memory_space<vmem>>, vector<1x128x128xbf16>
    %189 = vector.shape_cast %188 : vector<1x128x128xbf16> to vector<128x128xbf16>
    %cst_51 = arith.constant dense<0.000000e+00> : vector<8x128xf32>
    %190 = tpu.matmul %187, %189, %cst_51 {dimension_numbers = #tpu.dot_dimension_numbers<[1], [0], [0], [1], [0, 0, 1, 1], [], []>} : vector<8x128xbf16>, vector<128x128xbf16>, vector<8x128xf32> -> vector<8x128xf32>
    %191 = vector.shape_cast %190 : vector<8x128xf32> to vector<1x8x128xf32>
    %192 = arith.addf %3, %191 : vector<1x8x128xf32>
    %c0_52 = arith.constant 0 : index
    %c0_53 = arith.constant 0 : index
    %c0_54 = arith.constant 0 : index
    %193 = vector.load %arg9[%c0_52, %c0_53, %c0_54] : memref<1x1x128xf32, #tpu.memory_space<vmem>>, vector<1x1x128xf32>
    %194 = vector.shape_cast %193 : vector<1x1x128xf32> to vector<1x128xf32>
    %195 = arith.mulf %192, %192 : vector<1x8x128xf32>
    %cst_55 = arith.constant dense<0.000000e+00> : vector<1x8xf32>
    %196 = vector.multi_reduction <add>, %195, %cst_55 [2] : vector<1x8x128xf32> to vector<1x8xf32>
    %197 = vector.shape_cast %196 : vector<1x8xf32> to vector<1x8x1xf32>
    %cst_56 = arith.constant 1.280000e+02 : f32
    %198 = vector.broadcast %cst_56 : f32 to vector<1x8x1xf32>
    %199 = arith.divf %197, %198 : vector<1x8x1xf32>
    %cst_57 = arith.constant 9.99999974E-6 : f32
    %200 = vector.broadcast %cst_57 : f32 to vector<1x8x1xf32>
    %201 = arith.addf %199, %200 : vector<1x8x1xf32>
    %202 = math.rsqrt %201 : vector<1x8x1xf32>
    %203 = vector.broadcast %202 : vector<1x8x1xf32> to vector<1x8x128xf32>
    %204 = arith.mulf %192, %203 : vector<1x8x128xf32>
    %205 = vector.shape_cast %194 : vector<1x128xf32> to vector<1x1x128xf32>
    %206 = vector.broadcast %205 : vector<1x1x128xf32> to vector<1x8x128xf32>
    %207 = arith.mulf %204, %206 : vector<1x8x128xf32>
    %208 = vector.shape_cast %207 : vector<1x8x128xf32> to vector<8x128xf32>
    %209 = arith.truncf %208 : vector<8x128xf32> to vector<8x128xbf16>
    %c0_58 = arith.constant 0 : index
    %c0_59 = arith.constant 0 : index
    %c0_60 = arith.constant 0 : index
    %210 = vector.load %arg10[%c0_58, %c0_59, %c0_60] : memref<1x128x512xbf16, #tpu.memory_space<vmem>>, vector<1x128x512xbf16>
    %211 = vector.shape_cast %210 : vector<1x128x512xbf16> to vector<128x512xbf16>
    %cst_61 = arith.constant dense<0.000000e+00> : vector<8x512xf32>
    %212 = tpu.matmul %209, %211, %cst_61 {dimension_numbers = #tpu.dot_dimension_numbers<[1], [0], [0], [1], [0, 0, 1, 1], [], []>} : vector<8x128xbf16>, vector<128x512xbf16>, vector<8x512xf32> -> vector<8x512xf32>
    %213 = vector.extract_strided_slice %212 {offsets = [0, 0], sizes = [8, 256], strides = [1, 1]} : vector<8x512xf32> to vector<8x256xf32>
    %214 = vector.extract_strided_slice %212 {offsets = [0, 256], sizes = [8, 256], strides = [1, 1]} : vector<8x512xf32> to vector<8x256xf32>
    %215 = arith.negf %213 : vector<8x256xf32>
    %216 = math.exp %215 : vector<8x256xf32>
    %cst_62 = arith.constant 1.000000e+00 : f32
    %217 = vector.broadcast %cst_62 : f32 to vector<8x256xf32>
    %218 = arith.addf %217, %216 : vector<8x256xf32>
    %219 = arith.divf %217, %218 : vector<8x256xf32>
    %220 = arith.mulf %213, %219 : vector<8x256xf32>
    %221 = arith.mulf %220, %214 : vector<8x256xf32>
    %222 = arith.truncf %221 : vector<8x256xf32> to vector<8x256xbf16>
    %c0_63 = arith.constant 0 : index
    %c0_64 = arith.constant 0 : index
    %c0_65 = arith.constant 0 : index
    %223 = vector.load %arg11[%c0_63, %c0_64, %c0_65] : memref<1x256x128xbf16, #tpu.memory_space<vmem>>, vector<1x256x128xbf16>
    %224 = vector.shape_cast %223 : vector<1x256x128xbf16> to vector<256x128xbf16>
    %cst_66 = arith.constant dense<0.000000e+00> : vector<8x128xf32>
    %225 = tpu.matmul %222, %224, %cst_66 {dimension_numbers = #tpu.dot_dimension_numbers<[1], [0], [0], [1], [0, 0, 1, 1], [], []>} : vector<8x256xbf16>, vector<256x128xbf16>, vector<8x128xf32> -> vector<8x128xf32>
    %226 = vector.shape_cast %225 : vector<8x128xf32> to vector<1x8x128xf32>
    %227 = arith.addf %192, %226 : vector<1x8x128xf32>
    %c0_67 = arith.constant 0 : index
    %c0_68 = arith.constant 0 : index
    %c0_69 = arith.constant 0 : index
    %228 = vector.load %arg16[%c0_67, %c0_68, %c0_69] : memref<1x8x128xf32, #tpu.memory_space<vmem>>, vector<1x8x128xf32>
    tpu.vector_store %arg16[%c0_67, %c0_68, %c0_69], %227 {strides = array<i32>} : memref<1x8x128xf32, #tpu.memory_space<vmem>>, vector<1x8x128xf32>,
    %c1_i32 = arith.constant 1 : i32
    %229 = arith.cmpi eq, %arg1, %c1_i32 : i32
    %230 = arith.extui %229 : i1 to i32
    %c0_i32_70 = arith.constant 0 : i32
    %231 = arith.cmpi ne, %230, %c0_i32_70 : i32
    scf.if %231 {
      %c0_71 = arith.constant 0 : index
      %c0_72 = arith.constant 0 : index
      %232 = vector.load %arg12[%c0_71, %c0_72] : memref<1x128xf32, #tpu.memory_space<vmem>>, vector<1x128xf32>
      %233 = arith.mulf %227, %227 : vector<1x8x128xf32>
      %cst_73 = arith.constant dense<0.000000e+00> : vector<1x8xf32>
      %234 = vector.multi_reduction <add>, %233, %cst_73 [2] : vector<1x8x128xf32> to vector<1x8xf32>
      %235 = vector.shape_cast %234 : vector<1x8xf32> to vector<1x8x1xf32>
      %cst_74 = arith.constant 1.280000e+02 : f32
      %236 = vector.broadcast %cst_74 : f32 to vector<1x8x1xf32>
      %237 = arith.divf %235, %236 : vector<1x8x1xf32>
      %cst_75 = arith.constant 9.99999974E-6 : f32
      %238 = vector.broadcast %cst_75 : f32 to vector<1x8x1xf32>
      %239 = arith.addf %237, %238 : vector<1x8x1xf32>
      %240 = math.rsqrt %239 : vector<1x8x1xf32>
      %241 = vector.broadcast %240 : vector<1x8x1xf32> to vector<1x8x128xf32>
      %242 = arith.mulf %227, %241 : vector<1x8x128xf32>
      %243 = vector.shape_cast %232 : vector<1x128xf32> to vector<1x1x128xf32>
      %244 = vector.broadcast %243 : vector<1x1x128xf32> to vector<1x8x128xf32>
      %245 = arith.mulf %242, %244 : vector<1x8x128xf32>
      %246 = vector.shape_cast %245 : vector<1x8x128xf32> to vector<8x128xf32>
      %247 = arith.truncf %246 : vector<8x128xf32> to vector<8x128xbf16>
      %c0_76 = arith.constant 0 : index
      %c0_77 = arith.constant 0 : index
      %248 = vector.load %arg13[%c0_76, %c0_77] : memref<128x256xbf16, #tpu.memory_space<vmem>>, vector<128x256xbf16>
      %cst_78 = arith.constant dense<0.000000e+00> : vector<8x256xf32>
      %249 = tpu.matmul %247, %248, %cst_78 {dimension_numbers = #tpu.dot_dimension_numbers<[1], [0], [0], [1], [0, 0, 1, 1], [], []>} : vector<8x128xbf16>, vector<128x256xbf16>, vector<8x256xf32> -> vector<8x256xf32>
      %cst_79 = arith.constant dense<0xFF800000> : vector<8xf32>
      %250 = vector.multi_reduction <maximumf>, %249, %cst_79 [1] : vector<8x256xf32> to vector<8xf32>
      %251 = vector.shape_cast %250 : vector<8xf32> to vector<8x1xf32>
      %252 = vector.broadcast %251 : vector<8x1xf32> to vector<8x256xf32>
      %253 = arith.subf %249, %252 : vector<8x256xf32>
      %254 = math.exp %253 : vector<8x256xf32>
      %cst_80 = arith.constant dense<0.000000e+00> : vector<8xf32>
      %255 = vector.multi_reduction <add>, %254, %cst_80 [1] : vector<8x256xf32> to vector<8xf32>
      %256 = vector.shape_cast %255 : vector<8xf32> to vector<8x1xf32>
      %257 = math.log %256 : vector<8x1xf32>
      %258 = arith.addf %257, %251 : vector<8x1xf32>
      %c0_81 = arith.constant 0 : index
      %c0_82 = arith.constant 0 : index
      %c0_83 = arith.constant 0 : index
      %259 = vector.load %arg5[%c0_81, %c0_82, %c0_83] : memref<1x8x1xi32, #tpu.memory_space<vmem>>, vector<1x8x1xi32>
      %260 = vector.shape_cast %259 : vector<1x8x1xi32> to vector<8x1xi32>
      %261 = tpu.iota {dimensions = array<i32: 1>} : vector<8x256xi32>
      %262 = vector.broadcast %260 : vector<8x1xi32> to vector<8x256xi32>
      %263 = arith.cmpi eq, %261, %262 : vector<8x256xi32>
      %cst_84 = arith.constant 0.000000e+00 : f32
      %264 = vector.broadcast %cst_84 : f32 to vector<8x256xf32>
      %265 = arith.select %263, %249, %264 : vector<8x256xi1>, vector<8x256xf32>
      %cst_85 = arith.constant dense<0.000000e+00> : vector<8xf32>
      %266 = vector.multi_reduction <add>, %265, %cst_85 [1] : vector<8x256xf32> to vector<8xf32>
      %267 = vector.shape_cast %266 : vector<8xf32> to vector<8x1xf32>
      %c0_i32_86 = arith.constant 0 : i32
      %268 = vector.broadcast %c0_i32_86 : i32 to vector<8x1xi32>
      %269 = arith.cmpi sge, %260, %268 : vector<8x1xi32>
      %270 = arith.extui %269 : vector<8x1xi1> to vector<8x1xi32>
      %271 = arith.sitofp %270 : vector<8x1xi32> to vector<8x1xf32>
      %272 = arith.subf %258, %267 : vector<8x1xf32>
      %273 = arith.mulf %272, %271 : vector<8x1xf32>
      %274 = vector.shape_cast %273 : vector<8x1xf32> to vector<1x8x1xf32>
      %cst_87 = arith.constant dense<0.000000e+00> : vector<1xf32>
      %275 = vector.multi_reduction <add>, %274, %cst_87 [1, 2] : vector<1x8x1xf32> to vector<1xf32>
      %276 = vector.shape_cast %275 : vector<1xf32> to vector<1x1x1xf32>
      %277 = vector.extract %276[0, 0, 0] : f32 from vector<1x1x1xf32>
      %278 = vector.shape_cast %271 : vector<8x1xf32> to vector<1x8x1xf32>
      %cst_88 = arith.constant dense<0.000000e+00> : vector<1xf32>
      %279 = vector.multi_reduction <add>, %278, %cst_88 [1, 2] : vector<1x8x1xf32> to vector<1xf32>
      %280 = vector.shape_cast %279 : vector<1xf32> to vector<1x1x1xf32>
      %281 = vector.extract %280[0, 0, 0] : f32 from vector<1x1x1xf32>
      %282 = tpu.iota {dimensions = array<i32: 1>} : vector<1x128xi32>
      %c0_i32_89 = arith.constant 0 : i32
      %283 = vector.broadcast %c0_i32_89 : i32 to vector<1x128xi32>
      %284 = arith.cmpi eq, %282, %283 : vector<1x128xi32>
      %c1_i32_90 = arith.constant 1 : i32
      %285 = vector.broadcast %c1_i32_90 : i32 to vector<1x128xi32>
      %286 = arith.cmpi eq, %282, %285 : vector<1x128xi32>
      %cst_91 = arith.constant 0.000000e+00 : f32
      %287 = vector.broadcast %281 : f32 to vector<1x128xf32>
      %288 = vector.broadcast %cst_91 : f32 to vector<1x128xf32>
      %289 = arith.select %286, %287, %288 : vector<1x128xi1>, vector<1x128xf32>
      %290 = vector.broadcast %277 : f32 to vector<1x128xf32>
      %291 = arith.select %284, %290, %289 : vector<1x128xi1>, vector<1x128xf32>
      %292 = vector.shape_cast %291 : vector<1x128xf32> to vector<1x1x128xf32>
      %c0_92 = arith.constant 0 : index
      %c0_93 = arith.constant 0 : index
      %c0_94 = arith.constant 0 : index
      %293 = vector.load %arg15[%c0_92, %c0_93, %c0_94] : memref<1x1x128xf32, #tpu.memory_space<vmem>>, vector<1x1x128xf32>
      tpu.vector_store %arg15[%c0_92, %c0_93, %c0_94], %292 {strides = array<i32>} : memref<1x1x128xf32, #tpu.memory_space<vmem>>, vector<1x1x128xf32>,
      %294 = vector.shape_cast %249 : vector<8x256xf32> to vector<1x8x256xf32>
      %c0_95 = arith.constant 0 : index
      %c0_96 = arith.constant 0 : index
      %c0_97 = arith.constant 0 : index
      %295 = vector.load %arg14[%c0_95, %c0_96, %c0_97] : memref<1x8x256xf32, #tpu.memory_space<vmem>>, vector<1x8x256xf32>
      tpu.vector_store %arg14[%c0_95, %c0_96, %c0_97], %294 {strides = array<i32>} : memref<1x8x256xf32, #tpu.memory_space<vmem>>, vector<1x8x256xf32>,
    } else {
    }
    return
  }
  func.func @transform_0(%arg0: i32, %arg1: i32) -> (i32, i32, i32) {
    %c0_i32 = arith.constant 0 : i32
    %c0_i32_0 = arith.constant 0 : i32
    %c0_i32_1 = arith.constant 0 : i32
    return %arg0, %c0_i32, %c0_i32_0 : i32, i32, i32
  }
  func.func @transform_1(%arg0: i32, %arg1: i32) -> (i32, i32, i32) {
    %c0_i32 = arith.constant 0 : i32
    %c0_i32_0 = arith.constant 0 : i32
    %c0_i32_1 = arith.constant 0 : i32
    %c0_i32_2 = arith.constant 0 : i32
    return %c0_i32, %c0_i32_0, %c0_i32_1 : i32, i32, i32
  }
  func.func @transform_2(%arg0: i32, %arg1: i32) -> (i32, i32, i32) {
    %c0_i32 = arith.constant 0 : i32
    %c0_i32_0 = arith.constant 0 : i32
    %c0_i32_1 = arith.constant 0 : i32
    %c0_i32_2 = arith.constant 0 : i32
    return %c0_i32, %c0_i32_0, %c0_i32_1 : i32, i32, i32
  }
  func.func @transform_3(%arg0: i32, %arg1: i32) -> (i32, i32, i32) {
    %c0_i32 = arith.constant 0 : i32
    %c0_i32_0 = arith.constant 0 : i32
    %c0_i32_1 = arith.constant 0 : i32
    return %arg0, %c0_i32, %c0_i32_0 : i32, i32, i32
  }
  func.func @transform_4(%arg0: i32, %arg1: i32) -> (i32, i32, i32) {
    %c0_i32 = arith.constant 0 : i32
    %c0_i32_0 = arith.constant 0 : i32
    %c0_i32_1 = arith.constant 0 : i32
    return %arg1, %c0_i32, %c0_i32_0 : i32, i32, i32
  }
  func.func @transform_5(%arg0: i32, %arg1: i32) -> (i32, i32, i32) {
    %c0_i32 = arith.constant 0 : i32
    %c0_i32_0 = arith.constant 0 : i32
    %c0_i32_1 = arith.constant 0 : i32
    return %arg1, %c0_i32, %c0_i32_0 : i32, i32, i32
  }
  func.func @transform_6(%arg0: i32, %arg1: i32) -> (i32, i32, i32) {
    %c0_i32 = arith.constant 0 : i32
    %c0_i32_0 = arith.constant 0 : i32
    %c0_i32_1 = arith.constant 0 : i32
    return %arg1, %c0_i32, %c0_i32_0 : i32, i32, i32
  }
  func.func @transform_7(%arg0: i32, %arg1: i32) -> (i32, i32, i32) {
    %c0_i32 = arith.constant 0 : i32
    %c0_i32_0 = arith.constant 0 : i32
    %c0_i32_1 = arith.constant 0 : i32
    return %arg1, %c0_i32, %c0_i32_0 : i32, i32, i32
  }
  func.func @transform_8(%arg0: i32, %arg1: i32) -> (i32, i32, i32) {
    %c0_i32 = arith.constant 0 : i32
    %c0_i32_0 = arith.constant 0 : i32
    %c0_i32_1 = arith.constant 0 : i32
    return %arg1, %c0_i32, %c0_i32_0 : i32, i32, i32
  }
  func.func @transform_9(%arg0: i32, %arg1: i32) -> (i32, i32, i32) {
    %c0_i32 = arith.constant 0 : i32
    %c0_i32_0 = arith.constant 0 : i32
    %c0_i32_1 = arith.constant 0 : i32
    return %arg1, %c0_i32, %c0_i32_0 : i32, i32, i32
  }
  func.func @transform_10(%arg0: i32, %arg1: i32) -> (i32, i32) {
    %c0_i32 = arith.constant 0 : i32
    %c0_i32_0 = arith.constant 0 : i32
    %c0_i32_1 = arith.constant 0 : i32
    return %c0_i32, %c0_i32_0 : i32, i32
  }
  func.func @transform_11(%arg0: i32, %arg1: i32) -> (i32, i32) {
    %c0_i32 = arith.constant 0 : i32
    %c0_i32_0 = arith.constant 0 : i32
    %c0_i32_1 = arith.constant 0 : i32
    return %c0_i32, %c0_i32_0 : i32, i32
  }
  func.func @transform_12(%arg0: i32, %arg1: i32) -> (i32, i32, i32) {
    %c0_i32 = arith.constant 0 : i32
    %c0_i32_0 = arith.constant 0 : i32
    %c0_i32_1 = arith.constant 0 : i32
    return %arg0, %c0_i32, %c0_i32_0 : i32, i32, i32
  }
  func.func @transform_13(%arg0: i32, %arg1: i32) -> (i32, i32, i32) {
    %c0_i32 = arith.constant 0 : i32
    %c0_i32_0 = arith.constant 0 : i32
    %c0_i32_1 = arith.constant 0 : i32
    return %arg0, %c0_i32, %c0_i32_0 : i32, i32, i32
  }
}

</mosaic_0001>

<llo_original>
// kernel: vision_to_llama_forward.2
$region0: #{vision_to_llama_forward.2}
  #allocation0 [shape = 'u32[]', space=smem, size = 0x4, offset = 0x4, fixed_abs, tag = 'smem constant byte address 0x4 - core index']
  #allocation1 [shape = 'u32[144,128]{1,0:T(1,128)}', space=vmem, size = 0x12000, scoped, tag = 'internal scratch']
  #allocation2 [shape = 'f32[1,8,64]{2,1,0:T(8,128)}', space=vmem, size = 0x1000, scoped, tag = 'scratch operand']
  %s0 = inlined_call_operand.vmem [shape: f32[2,8,192], index: 0, kind: input, shape index: {}]
  %s1 = inlined_call_operand.vmem [shape: f32[1,8,64], index: 1, kind: input, shape index: {}]
  %s2 = inlined_call_operand.vmem [shape: bf16[192,64], index: 2, kind: input, shape index: {}]
  %s3 = inlined_call_operand.vmem [shape: f32[2,1,64], index: 3, kind: input, shape index: {}]
  %s4 = inlined_call_operand.vmem [shape: f32[2,1,64], index: 4, kind: input, shape index: {}]
  %s5 = inlined_call_operand.vmem [shape: bf16[2,64,192], index: 5, kind: input, shape index: {}]
  %s6 = inlined_call_operand.vmem [shape: f32[2,1,192], index: 6, kind: input, shape index: {}]
  %s7 = inlined_call_operand.vmem [shape: bf16[2,64,64], index: 7, kind: input, shape index: {}]
  %s8 = inlined_call_operand.vmem [shape: f32[2,1,64], index: 8, kind: input, shape index: {}]
  %s9 = inlined_call_operand.vmem [shape: f32[2,1,64], index: 9, kind: input, shape index: {}]
  %s10 = inlined_call_operand.vmem [shape: f32[2,1,64], index: 10, kind: input, shape index: {}]
  %s11 = inlined_call_operand.vmem [shape: bf16[2,64,128], index: 11, kind: input, shape index: {}]
  %s12 = inlined_call_operand.vmem [shape: f32[2,1,128], index: 12, kind: input, shape index: {}]
  %s13 = inlined_call_operand.vmem [shape: bf16[2,128,64], index: 13, kind: input, shape index: {}]
  %s14 = inlined_call_operand.vmem [shape: f32[2,1,64], index: 14, kind: input, shape index: {}]
  %s15 = inlined_call_operand.vmem [shape: f32[1,64], index: 15, kind: input, shape index: {}]
  %s16 = inlined_call_operand.vmem [shape: f32[1,64], index: 16, kind: input, shape index: {}]
  %s17 = inlined_call_operand.vmem [shape: bf16[64,128], index: 17, kind: input, shape index: {}]
  %s18 = inlined_call_operand.vmem [shape: f32[1,128], index: 18, kind: input, shape index: {}]
  %s19 = inlined_call_operand.vmem [shape: bf16[2,8,128], index: 19, kind: output, shape index: {}]
  %s20 = sld [smem:[#allocation0]]
  $region117: #{vision_to_llama_forward.2} parent=0
    _
  %s22 = ssub.s32 1, %s20
  %s23 = scalar_select 0, %s22, %s20
  loop: start=0, step=1, limit=6
  $region2: #{vision_to_llama_forward.2} parent=0 // loop_pre_header
    _
  $region3: #{vision_to_llama_forward.2} parent=0 // loop_header
    %s25 = sphi 0, %s29
    %p26 = scmp.ge.s32.totalorder %s25, 6
    %s32 = sphi 0, %s44
    %s33 = sphi 0, %s40
    %s34 = sphi 0, %s32
    %s35 = sphi 0, %s33
    %s36 = sphi 0, %s34
    %s37 = sphi 0, %s35
    %s47 = sphi 0, %s49
    %s50 = sphi 0, %s47
    %s51 = sphi 0, %s50
    %s67 = sphi 0, %s51
    %s71 = sphi 0, %s71
    %s73 = sphi 0, %s71
    %s74 = sphi 0, %s73
    %s88 = sphi 0, %s74
    %s92 = sphi 0, %s92
    %s94 = sphi 0, %s92
    %s95 = sphi 0, %s94
    %s109 = sphi 0, %s95
    %s115 = sphi 0, %s117
    %s118 = sphi 0, %s115
    %s119 = sphi 0, %s118
    %s135 = sphi 0, %s119
    %s141 = sphi 0, %s143
    %s144 = sphi 0, %s141
    %s145 = sphi 0, %s144
    %s161 = sphi 0, %s145
    %s167 = sphi 0, %s169
    %s170 = sphi 0, %s167
    %s171 = sphi 0, %s170
    %s187 = sphi 0, %s171
    %s193 = sphi 0, %s195
    %s196 = sphi 0, %s193
    %s197 = sphi 0, %s196
    %s213 = sphi 0, %s197
    %s219 = sphi 0, %s221
    %s222 = sphi 0, %s219
    %s223 = sphi 0, %s222
    %s239 = sphi 0, %s223
    %s245 = sphi 0, %s247
    %s248 = sphi 0, %s245
    %s249 = sphi 0, %s248
    %s265 = sphi 0, %s249
    %s271 = sphi 0, %s273
    %s274 = sphi 0, %s271
    %s275 = sphi 0, %s274
    %s291 = sphi 0, %s275
    %s297 = sphi 0, %s299
    %s300 = sphi 0, %s297
    %s301 = sphi 0, %s300
    %s317 = sphi 0, %s301
    %s323 = sphi 0, %s325
    %s326 = sphi 0, %s323
    %s327 = sphi 0, %s326
    %s343 = sphi 0, %s327
    %s349 = sphi 0, %s351
    %s352 = sphi 0, %s349
    %s353 = sphi 0, %s352
    %s369 = sphi 0, %s353
    %s375 = sphi 0, %s377
    %s378 = sphi 0, %s375
    %s379 = sphi 0, %s378
    %s395 = sphi 0, %s379
    %s401 = sphi 0, %s403
    %s404 = sphi 0, %s401
    %s405 = sphi 0, %s404
    %s421 = sphi 0, %s405
    %s425 = sphi 0, %s425
    %s427 = sphi 0, %s425
    %s428 = sphi 0, %s427
    %s442 = sphi 0, %s428
    %s446 = sphi 0, %s446
    %s448 = sphi 0, %s446
    %s449 = sphi 0, %s448
    %s463 = sphi 0, %s449
    %s467 = sphi 0, %s467
    %s469 = sphi 0, %s467
    %s470 = sphi 0, %s469
    %s484 = sphi 0, %s470
    %s488 = sphi 0, %s488
    %s490 = sphi 0, %s488
    %s491 = sphi 0, %s490
    %s505 = sphi 0, %s491
    %s511 = sphi 0, %s513
    %s514 = sphi 0, %s511
    %s515 = sphi 0, %s514
    %s531 = sphi 0, %s515
  $region4: #{vision_to_llama_forward.2} parent=0 // loop_header_branch
    %28 = sbr.rel (%p26) target = $region8
  $region5: #{vision_to_llama_forward.2} parent=0 // loop_body
    %s30 = ssub.s32 %s25, 1
    %s31 = ssub.s32 %s25, 2
    %s38 = sadd.s32 1, %s33
    %p39 = scmp.ge.s32.totalorder %s38, 2
    %s40 = scalar_select %p39, 0, %s38
    %s41 = sadd.s32 1, %s32
    %s42 = scalar_select %p39, %s41, %s32
    %p43 = scmp.ge.s32.totalorder %s42, 2
    %s44 = scalar_select %p43, 0, %s42
    %s45 = ssub.s32 %s32, %s44
    %p46 = scmp.eq.s32.totalorder %s45, 0
    %s48 = sadd.s32 %s47, 1
    %s49 = scalar_select %p46, %s47, %s48
    %p52 = pneg %p46
    %p53 = scmp.eq.s32.totalorder %s25, 3
    %p54 = por %p52, %p53
    %p55 = scmp.ne.s32.totalorder %s47, %s50
    %p56 = scmp.eq.s32.totalorder %s25, 0
    %p57 = por %p55, %p56
    %p58 = scmp.ne.s32.totalorder %s47, %s50
    %p59 = scmp.eq.s32.totalorder %s30, 3
    %p60 = por %p58, %p59
    %p61 = scmp.ne.s32.totalorder %s50, %s51
    %p62 = scmp.eq.s32.totalorder %s30, 0
    %p63 = por %p61, %p62
    %p64 = scmp.ne.s32.totalorder %s50, %s51
    %p65 = scmp.eq.s32.totalorder %s31, 3
    %p66 = por %p64, %p65
    %p68 = scmp.ne.s32.totalorder %s51, %s67
    %p69 = scmp.eq.s32.totalorder %s31, 0
    %p70 = por %p68, %p69
    %s72 = sadd.s32 %s71, 1
    %p75 = scmp.eq.s32.totalorder %s25, 3
    %p76 = scmp.ne.s32.totalorder %s71, %s73
    %p77 = scmp.eq.s32.totalorder %s25, 0
    %p78 = por %p76, %p77
    %p79 = scmp.ne.s32.totalorder %s71, %s73
    %p80 = scmp.eq.s32.totalorder %s30, 3
    %p81 = por %p79, %p80
    %p82 = scmp.ne.s32.totalorder %s73, %s74
    %p83 = scmp.eq.s32.totalorder %s30, 0
    %p84 = por %p82, %p83
    %p85 = scmp.ne.s32.totalorder %s73, %s74
    %p86 = scmp.eq.s32.totalorder %s31, 3
    %p87 = por %p85, %p86
    %p89 = scmp.ne.s32.totalorder %s74, %s88
    %p90 = scmp.eq.s32.totalorder %s31, 0
    %p91 = por %p89, %p90
    %s93 = sadd.s32 %s92, 1
    %p96 = scmp.eq.s32.totalorder %s25, 3
    %p97 = scmp.ne.s32.totalorder %s92, %s94
    %p98 = scmp.eq.s32.totalorder %s25, 0
    %p99 = por %p97, %p98
    %p100 = scmp.ne.s32.totalorder %s92, %s94
    %p101 = scmp.eq.s32.totalorder %s30, 3
    %p102 = por %p100, %p101
    %p103 = scmp.ne.s32.totalorder %s94, %s95
    %p104 = scmp.eq.s32.totalorder %s30, 0
    %p105 = por %p103, %p104
    %p106 = scmp.ne.s32.totalorder %s94, %s95
    %p107 = scmp.eq.s32.totalorder %s31, 3
    %p108 = por %p106, %p107
    %p110 = scmp.ne.s32.totalorder %s95, %s109
    %p111 = scmp.eq.s32.totalorder %s31, 0
    %p112 = por %p110, %p111
    %s113 = ssub.s32 %s33, %s40
    %p114 = scmp.eq.s32.totalorder %s113, 0
    %s116 = sadd.s32 %s115, 1
    %s117 = scalar_select %p114, %s115, %s116
    %p120 = pneg %p114
    %p121 = scmp.eq.s32.totalorder %s25, 3
    %p122 = por %p120, %p121
    %p123 = scmp.ne.s32.totalorder %s115, %s118
    %p124 = scmp.eq.s32.totalorder %s25, 0
    %p125 = por %p123, %p124
    %p126 = scmp.ne.s32.totalorder %s115, %s118
    %p127 = scmp.eq.s32.totalorder %s30, 3
    %p128 = por %p126, %p127
    %p129 = scmp.ne.s32.totalorder %s118, %s119
    %p130 = scmp.eq.s32.totalorder %s30, 0
    %p131 = por %p129, %p130
    %p132 = scmp.ne.s32.totalorder %s118, %s119
    %p133 = scmp.eq.s32.totalorder %s31, 3
    %p134 = por %p132, %p133
    %p136 = scmp.ne.s32.totalorder %s119, %s135
    %p137 = scmp.eq.s32.totalorder %s31, 0
    %p138 = por %p136, %p137
    %s139 = ssub.s32 %s33, %s40
    %p140 = scmp.eq.s32.totalorder %s139, 0
    %s142 = sadd.s32 %s141, 1
    %s143 = scalar_select %p140, %s141, %s142
    %p146 = pneg %p140
    %p147 = scmp.eq.s32.totalorder %s25, 3
    %p148 = por %p146, %p147
    %p149 = scmp.ne.s32.totalorder %s141, %s144
    %p150 = scmp.eq.s32.totalorder %s25, 0
    %p151 = por %p149, %p150
    %p152 = scmp.ne.s32.totalorder %s141, %s144
    %p153 = scmp.eq.s32.totalorder %s30, 3
    %p154 = por %p152, %p153
    %p155 = scmp.ne.s32.totalorder %s144, %s145
    %p156 = scmp.eq.s32.totalorder %s30, 0
    %p157 = por %p155, %p156
    %p158 = scmp.ne.s32.totalorder %s144, %s145
    %p159 = scmp.eq.s32.totalorder %s31, 3
    %p160 = por %p158, %p159
    %p162 = scmp.ne.s32.totalorder %s145, %s161
    %p163 = scmp.eq.s32.totalorder %s31, 0
    %p164 = por %p162, %p163
    %s165 = ssub.s32 %s33, %s40
    %p166 = scmp.eq.s32.totalorder %s165, 0
    %s168 = sadd.s32 %s167, 1
    %s169 = scalar_select %p166, %s167, %s168
    %p172 = pneg %p166
    %p173 = scmp.eq.s32.totalorder %s25, 3
    %p174 = por %p172, %p173
    %p175 = scmp.ne.s32.totalorder %s167, %s170
    %p176 = scmp.eq.s32.totalorder %s25, 0
    %p177 = por %p175, %p176
    %p178 = scmp.ne.s32.totalorder %s167, %s170
    %p179 = scmp.eq.s32.totalorder %s30, 3
    %p180 = por %p178, %p179
    %p181 = scmp.ne.s32.totalorder %s170, %s171
    %p182 = scmp.eq.s32.totalorder %s30, 0
    %p183 = por %p181, %p182
    %p184 = scmp.ne.s32.totalorder %s170, %s171
    %p185 = scmp.eq.s32.totalorder %s31, 3
    %p186 = por %p184, %p185
    %p188 = scmp.ne.s32.totalorder %s171, %s187
    %p189 = scmp.eq.s32.totalorder %s31, 0
    %p190 = por %p188, %p189
    %s191 = ssub.s32 %s33, %s40
    %p192 = scmp.eq.s32.totalorder %s191, 0
    %s194 = sadd.s32 %s193, 1
    %s195 = scalar_select %p192, %s193, %s194
    %p198 = pneg %p192
    %p199 = scmp.eq.s32.totalorder %s25, 3
    %p200 = por %p198, %p199
    %p201 = scmp.ne.s32.totalorder %s193, %s196
    %p202 = scmp.eq.s32.totalorder %s25, 0
    %p203 = por %p201, %p202
    %p204 = scmp.ne.s32.totalorder %s193, %s196
    %p205 = scmp.eq.s32.totalorder %s30, 3
    %p206 = por %p204, %p205
    %p207 = scmp.ne.s32.totalorder %s196, %s197
    %p208 = scmp.eq.s32.totalorder %s30, 0
    %p209 = por %p207, %p208
    %p210 = scmp.ne.s32.totalorder %s196, %s197
    %p211 = scmp.eq.s32.totalorder %s31, 3
    %p212 = por %p210, %p211
    %p214 = scmp.ne.s32.totalorder %s197, %s213
    %p215 = scmp.eq.s32.totalorder %s31, 0
    %p216 = por %p214, %p215
    %s217 = ssub.s32 %s33, %s40
    %p218 = scmp.eq.s32.totalorder %s217, 0
    %s220 = sadd.s32 %s219, 1
    %s221 = scalar_select %p218, %s219, %s220
    %p224 = pneg %p218
    %p225 = scmp.eq.s32.totalorder %s25, 3
    %p226 = por %p224, %p225
    %p227 = scmp.ne.s32.totalorder %s219, %s222
    %p228 = scmp.eq.s32.totalorder %s25, 0
    %p229 = por %p227, %p228
    %p230 = scmp.ne.s32.totalorder %s219, %s222
    %p231 = scmp.eq.s32.totalorder %s30, 3
    %p232 = por %p230, %p231
    %p233 = scmp.ne.s32.totalorder %s222, %s223
    %p234 = scmp.eq.s32.totalorder %s30, 0
    %p235 = por %p233, %p234
    %p236 = scmp.ne.s32.totalorder %s222, %s223
    %p237 = scmp.eq.s32.totalorder %s31, 3
    %p238 = por %p236, %p237
    %p240 = scmp.ne.s32.totalorder %s223, %s239
    %p241 = scmp.eq.s32.totalorder %s31, 0
    %p242 = por %p240, %p241
    %s243 = ssub.s32 %s33, %s40
    %p244 = scmp.eq.s32.totalorder %s243, 0
    %s246 = sadd.s32 %s245, 1
    %s247 = scalar_select %p244, %s245, %s246
    %p250 = pneg %p244
    %p251 = scmp.eq.s32.totalorder %s25, 3
    %p252 = por %p250, %p251
    %p253 = scmp.ne.s32.totalorder %s245, %s248
    %p254 = scmp.eq.s32.totalorder %s25, 0
    %p255 = por %p253, %p254
    %p256 = scmp.ne.s32.totalorder %s245, %s248
    %p257 = scmp.eq.s32.totalorder %s30, 3
    %p258 = por %p256, %p257
    %p259 = scmp.ne.s32.totalorder %s248, %s249
    %p260 = scmp.eq.s32.totalorder %s30, 0
    %p261 = por %p259, %p260
    %p262 = scmp.ne.s32.totalorder %s248, %s249
    %p263 = scmp.eq.s32.totalorder %s31, 3
    %p264 = por %p262, %p263
    %p266 = scmp.ne.s32.totalorder %s249, %s265
    %p267 = scmp.eq.s32.totalorder %s31, 0
    %p268 = por %p266, %p267
    %s269 = ssub.s32 %s33, %s40
    %p270 = scmp.eq.s32.totalorder %s269, 0
    %s272 = sadd.s32 %s271, 1
    %s273 = scalar_select %p270, %s271, %s272
    %p276 = pneg %p270
    %p277 = scmp.eq.s32.totalorder %s25, 3
    %p278 = por %p276, %p277
    %p279 = scmp.ne.s32.totalorder %s271, %s274
    %p280 = scmp.eq.s32.totalorder %s25, 0
    %p281 = por %p279, %p280
    %p282 = scmp.ne.s32.totalorder %s271, %s274
    %p283 = scmp.eq.s32.totalorder %s30, 3
    %p284 = por %p282, %p283
    %p285 = scmp.ne.s32.totalorder %s274, %s275
    %p286 = scmp.eq.s32.totalorder %s30, 0
    %p287 = por %p285, %p286
    %p288 = scmp.ne.s32.totalorder %s274, %s275
    %p289 = scmp.eq.s32.totalorder %s31, 3
    %p290 = por %p288, %p289
    %p292 = scmp.ne.s32.totalorder %s275, %s291
    %p293 = scmp.eq.s32.totalorder %s31, 0
    %p294 = por %p292, %p293
    %s295 = ssub.s32 %s33, %s40
    %p296 = scmp.eq.s32.totalorder %s295, 0
    %s298 = sadd.s32 %s297, 1
    %s299 = scalar_select %p296, %s297, %s298
    %p302 = pneg %p296
    %p303 = scmp.eq.s32.totalorder %s25, 3
    %p304 = por %p302, %p303
    %p305 = scmp.ne.s32.totalorder %s297, %s300
    %p306 = scmp.eq.s32.totalorder %s25, 0
    %p307 = por %p305, %p306
    %p308 = scmp.ne.s32.totalorder %s297, %s300
    %p309 = scmp.eq.s32.totalorder %s30, 3
    %p310 = por %p308, %p309
    %p311 = scmp.ne.s32.totalorder %s300, %s301
    %p312 = scmp.eq.s32.totalorder %s30, 0
    %p313 = por %p311, %p312
    %p314 = scmp.ne.s32.totalorder %s300, %s301
    %p315 = scmp.eq.s32.totalorder %s31, 3
    %p316 = por %p314, %p315
    %p318 = scmp.ne.s32.totalorder %s301, %s317
    %p319 = scmp.eq.s32.totalorder %s31, 0
    %p320 = por %p318, %p319
    %s321 = ssub.s32 %s33, %s40
    %p322 = scmp.eq.s32.totalorder %s321, 0
    %s324 = sadd.s32 %s323, 1
    %s325 = scalar_select %p322, %s323, %s324
    %p328 = pneg %p322
    %p329 = scmp.eq.s32.totalorder %s25, 3
    %p330 = por %p328, %p329
    %p331 = scmp.ne.s32.totalorder %s323, %s326
    %p332 = scmp.eq.s32.totalorder %s25, 0
    %p333 = por %p331, %p332
    %p334 = scmp.ne.s32.totalorder %s323, %s326
    %p335 = scmp.eq.s32.totalorder %s30, 3
    %p336 = por %p334, %p335
    %p337 = scmp.ne.s32.totalorder %s326, %s327
    %p338 = scmp.eq.s32.totalorder %s30, 0
    %p339 = por %p337, %p338
    %p340 = scmp.ne.s32.totalorder %s326, %s327
    %p341 = scmp.eq.s32.totalorder %s31, 3
    %p342 = por %p340, %p341
    %p344 = scmp.ne.s32.totalorder %s327, %s343
    %p345 = scmp.eq.s32.totalorder %s31, 0
    %p346 = por %p344, %p345
    %s347 = ssub.s32 %s33, %s40
    %p348 = scmp.eq.s32.totalorder %s347, 0
    %s350 = sadd.s32 %s349, 1
    %s351 = scalar_select %p348, %s349, %s350
    %p354 = pneg %p348
    %p355 = scmp.eq.s32.totalorder %s25, 3
    %p356 = por %p354, %p355
    %p357 = scmp.ne.s32.totalorder %s349, %s352
    %p358 = scmp.eq.s32.totalorder %s25, 0
    %p359 = por %p357, %p358
    %p360 = scmp.ne.s32.totalorder %s349, %s352
    %p361 = scmp.eq.s32.totalorder %s30, 3
    %p362 = por %p360, %p361
    %p363 = scmp.ne.s32.totalorder %s352, %s353
    %p364 = scmp.eq.s32.totalorder %s30, 0
    %p365 = por %p363, %p364
    %p366 = scmp.ne.s32.totalorder %s352, %s353
    %p367 = scmp.eq.s32.totalorder %s31, 3
    %p368 = por %p366, %p367
    %p370 = scmp.ne.s32.totalorder %s353, %s369
    %p371 = scmp.eq.s32.totalorder %s31, 0
    %p372 = por %p370, %p371
    %s373 = ssub.s32 %s33, %s40
    %p374 = scmp.eq.s32.totalorder %s373, 0
    %s376 = sadd.s32 %s375, 1
    %s377 = scalar_select %p374, %s375, %s376
    %p380 = pneg %p374
    %p381 = scmp.eq.s32.totalorder %s25, 3
    %p382 = por %p380, %p381
    %p383 = scmp.ne.s32.totalorder %s375, %s378
    %p384 = scmp.eq.s32.totalorder %s25, 0
    %p385 = por %p383, %p384
    %p386 = scmp.ne.s32.totalorder %s375, %s378
    %p387 = scmp.eq.s32.totalorder %s30, 3
    %p388 = por %p386, %p387
    %p389 = scmp.ne.s32.totalorder %s378, %s379
    %p390 = scmp.eq.s32.totalorder %s30, 0
    %p391 = por %p389, %p390
    %p392 = scmp.ne.s32.totalorder %s378, %s379
    %p393 = scmp.eq.s32.totalorder %s31, 3
    %p394 = por %p392, %p393
    %p396 = scmp.ne.s32.totalorder %s379, %s395
    %p397 = scmp.eq.s32.totalorder %s31, 0
    %p398 = por %p396, %p397
    %s399 = ssub.s32 %s33, %s40
    %p400 = scmp.eq.s32.totalorder %s399, 0
    %s402 = sadd.s32 %s401, 1
    %s403 = scalar_select %p400, %s401, %s402
    %p406 = pneg %p400
    %p407 = scmp.eq.s32.totalorder %s25, 3
    %p408 = por %p406, %p407
    %p409 = scmp.ne.s32.totalorder %s401, %s404
    %p410 = scmp.eq.s32.totalorder %s25, 0
    %p411 = por %p409, %p410
    %p412 = scmp.ne.s32.totalorder %s401, %s404
    %p413 = scmp.eq.s32.totalorder %s30, 3
    %p414 = por %p412, %p413
    %p415 = scmp.ne.s32.totalorder %s404, %s405
    %p416 = scmp.eq.s32.totalorder %s30, 0
    %p417 = por %p415, %p416
    %p418 = scmp.ne.s32.totalorder %s404, %s405
    %p419 = scmp.eq.s32.totalorder %s31, 3
    %p420 = por %p418, %p419
    %p422 = scmp.ne.s32.totalorder %s405, %s421
    %p423 = scmp.eq.s32.totalorder %s31, 0
    %p424 = por %p422, %p423
    %s426 = sadd.s32 %s425, 1
    %p429 = scmp.eq.s32.totalorder %s25, 3
    %p430 = scmp.ne.s32.totalorder %s425, %s427
    %p431 = scmp.eq.s32.totalorder %s25, 0
    %p432 = por %p430, %p431
    %p433 = scmp.ne.s32.totalorder %s425, %s427
    %p434 = scmp.eq.s32.totalorder %s30, 3
    %p435 = por %p433, %p434
    %p436 = scmp.ne.s32.totalorder %s427, %s428
    %p437 = scmp.eq.s32.totalorder %s30, 0
    %p438 = por %p436, %p437
    %p439 = scmp.ne.s32.totalorder %s427, %s428
    %p440 = scmp.eq.s32.totalorder %s31, 3
    %p441 = por %p439, %p440
    %p443 = scmp.ne.s32.totalorder %s428, %s442
    %p444 = scmp.eq.s32.totalorder %s31, 0
    %p445 = por %p443, %p444
    %s447 = sadd.s32 %s446, 1
    %p450 = scmp.eq.s32.totalorder %s25, 3
    %p451 = scmp.ne.s32.totalorder %s446, %s448
    %p452 = scmp.eq.s32.totalorder %s25, 0
    %p453 = por %p451, %p452
    %p454 = scmp.ne.s32.totalorder %s446, %s448
    %p455 = scmp.eq.s32.totalorder %s30, 3
    %p456 = por %p454, %p455
    %p457 = scmp.ne.s32.totalorder %s448, %s449
    %p458 = scmp.eq.s32.totalorder %s30, 0
    %p459 = por %p457, %p458
    %p460 = scmp.ne.s32.totalorder %s448, %s449
    %p461 = scmp.eq.s32.totalorder %s31, 3
    %p462 = por %p460, %p461
    %p464 = scmp.ne.s32.totalorder %s449, %s463
    %p465 = scmp.eq.s32.totalorder %s31, 0
    %p466 = por %p464, %p465
    %s468 = sadd.s32 %s467, 1
    %p471 = scmp.eq.s32.totalorder %s25, 3
    %p472 = scmp.ne.s32.totalorder %s467, %s469
    %p473 = scmp.eq.s32.totalorder %s25, 0
    %p474 = por %p472, %p473
    %p475 = scmp.ne.s32.totalorder %s467, %s469
    %p476 = scmp.eq.s32.totalorder %s30, 3
    %p477 = por %p475, %p476
    %p478 = scmp.ne.s32.totalorder %s469, %s470
    %p479 = scmp.eq.s32.totalorder %s30, 0
    %p480 = por %p478, %p479
    %p481 = scmp.ne.s32.totalorder %s469, %s470
    %p482 = scmp.eq.s32.totalorder %s31, 3
    %p483 = por %p481, %p482
    %p485 = scmp.ne.s32.totalorder %s470, %s484
    %p486 = scmp.eq.s32.totalorder %s31, 0
    %p487 = por %p485, %p486
    %s489 = sadd.s32 %s488, 1
    %p492 = scmp.eq.s32.totalorder %s25, 3
    %p493 = scmp.ne.s32.totalorder %s488, %s490
    %p494 = scmp.eq.s32.totalorder %s25, 0
    %p495 = por %p493, %p494
    %p496 = scmp.ne.s32.totalorder %s488, %s490
    %p497 = scmp.eq.s32.totalorder %s30, 3
    %p498 = por %p496, %p497
    %p499 = scmp.ne.s32.totalorder %s490, %s491
    %p500 = scmp.eq.s32.totalorder %s30, 0
    %p501 = por %p499, %p500
    %p502 = scmp.ne.s32.totalorder %s490, %s491
    %p503 = scmp.eq.s32.totalorder %s31, 3
    %p504 = por %p502, %p503
    %p506 = scmp.ne.s32.totalorder %s491, %s505
    %p507 = scmp.eq.s32.totalorder %s31, 0
    %p508 = por %p506, %p507
    %s509 = ssub.s32 %s32, %s44
    %p510 = scmp.eq.s32.totalorder %s509, 0
    %s512 = sadd.s32 %s511, 1
    %s513 = scalar_select %p510, %s511, %s512
    %p516 = pneg %p510
    %p517 = scmp.eq.s32.totalorder %s25, 3
    %p518 = por %p516, %p517
    %p519 = scmp.ne.s32.totalorder %s511, %s514
    %p520 = scmp.eq.s32.totalorder %s25, 0
    %p521 = por %p519, %p520
    %p522 = scmp.ne.s32.totalorder %s511, %s514
    %p523 = scmp.eq.s32.totalorder %s30, 3
    %p524 = por %p522, %p523
    %p525 = scmp.ne.s32.totalorder %s514, %s515
    %p526 = scmp.eq.s32.totalorder %s30, 0
    %p527 = por %p525, %p526
    %p528 = scmp.ne.s32.totalorder %s514, %s515
    %p529 = scmp.eq.s32.totalorder %s31, 3
    %p530 = por %p528, %p529
    %p532 = scmp.ne.s32.totalorder %s515, %s531
    %p533 = scmp.eq.s32.totalorder %s31, 0
    %p534 = por %p532, %p533
    %p535 = scmp.le.s32.totalorder 1, %s25
    %p536 = scmp.lt.s32.totalorder %s25, 5
    %p537 = pnand %p535, %p536
    %p538 = pneg %p537
    // Predicated region
    $region9: #{vision_to_llama_forward.2} parent=5 // pred_check
      _
    $region10: #{vision_to_llama_forward.2} parent=5 // pred_check_branch
      %540 = sbr.rel (%p537) target = $region12
    $region11: #{vision_to_llama_forward.2} parent=5 // pred_region
      %s541 = ssub.s32 %s25, 1
      // Predicated region
      $region13: #{vision_to_llama_forward.2} parent=11 // pred_check
        %p542 = pneg %p84
      $region14: #{vision_to_llama_forward.2} parent=11 // pred_check_branch
        %544 = sbr.rel (%p542) target = $region16
      $region15: #{vision_to_llama_forward.2} parent=11 // pred_region
        _
      $region16: #{vision_to_llama_forward.2} parent=11 // pred_fallthru
        _
      // Predicated region
      $region17: #{vision_to_llama_forward.2} parent=11 // pred_check
        %p545 = pneg %p105
      $region18: #{vision_to_llama_forward.2} parent=11 // pred_check_branch
        %547 = sbr.rel (%p545) target = $region20
      $region19: #{vision_to_llama_forward.2} parent=11 // pred_region
        _
      $region20: #{vision_to_llama_forward.2} parent=11 // pred_fallthru
        _
      // Predicated region
      $region21: #{vision_to_llama_forward.2} parent=11 // pred_check
        %p548 = pneg %p438
      $region22: #{vision_to_llama_forward.2} parent=11 // pred_check_branch
        %550 = sbr.rel (%p548) target = $region24
      $region23: #{vision_to_llama_forward.2} parent=11 // pred_region
        _
      $region24: #{vision_to_llama_forward.2} parent=11 // pred_fallthru
        _
      // Predicated region
      $region25: #{vision_to_llama_forward.2} parent=11 // pred_check
        %p551 = pneg %p459
      $region26: #{vision_to_llama_forward.2} parent=11 // pred_check_branch
        %553 = sbr.rel (%p551) target = $region28
      $region27: #{vision_to_llama_forward.2} parent=11 // pred_region
        _
      $region28: #{vision_to_llama_forward.2} parent=11 // pred_fallthru
        _
      // Predicated region
      $region29: #{vision_to_llama_forward.2} parent=11 // pred_check
        %p554 = pneg %p480
      $region30: #{vision_to_llama_forward.2} parent=11 // pred_check_branch
        %556 = sbr.rel (%p554) target = $region32
      $region31: #{vision_to_llama_forward.2} parent=11 // pred_region
        _
      $region32: #{vision_to_llama_forward.2} parent=11 // pred_fallthru
        _
      // Predicated region
      $region33: #{vision_to_llama_forward.2} parent=11 // pred_check
        %p557 = pneg %p501
      $region34: #{vision_to_llama_forward.2} parent=11 // pred_check_branch
        %559 = sbr.rel (%p557) target = $region36
      $region35: #{vision_to_llama_forward.2} parent=11 // pred_region
        _
      $region36: #{vision_to_llama_forward.2} parent=11 // pred_fallthru
        _
    $region12: #{vision_to_llama_forward.2} parent=5 // pred_fallthru
      _
    %p560 = scmp.lt.s32.totalorder %s25, 4
    // Predicated region
    $region37: #{vision_to_llama_forward.2} parent=5 // pred_check
      %p561 = pneg %p560
    $region38: #{vision_to_llama_forward.2} parent=5 // pred_check_branch
      %563 = sbr.rel (%p561) target = $region40
    $region39: #{vision_to_llama_forward.2} parent=5 // pred_region
      // Predicated region
      $region41: #{vision_to_llama_forward.2} parent=39 // pred_check
        %p564 = pneg %p57
      $region42: #{vision_to_llama_forward.2} parent=39 // pred_check_branch
        %566 = sbr.rel (%p564) target = $region44
      $region43: #{vision_to_llama_forward.2} parent=39 // pred_region
        %p567 = scmp.lt.s32.totalorder %s32, 1
        %s568 = scalar_select %p567, %s32, 1
        %s569 = smul.addr %s568, 2
        %s570 = smul.addr %s569, 8
        %s571 = scalar_lea.vmem %s0, %s570
      $region44: #{vision_to_llama_forward.2} parent=39 // pred_fallthru
        _
      // Predicated region
      $region45: #{vision_to_llama_forward.2} parent=39 // pred_check
        %p572 = pneg %p125
      $region46: #{vision_to_llama_forward.2} parent=39 // pred_check_branch
        %574 = sbr.rel (%p572) target = $region48
      $region47: #{vision_to_llama_forward.2} parent=39 // pred_region
        %p575 = scmp.lt.s32.totalorder %s33, 1
        %s576 = scalar_select %p575, %s33, 1
        %s577 = scalar_lea.vmem %s3, %s576
      $region48: #{vision_to_llama_forward.2} parent=39 // pred_fallthru
        _
      // Predicated region
      $region49: #{vision_to_llama_forward.2} parent=39 // pred_check
        %p578 = pneg %p151
      $region50: #{vision_to_llama_forward.2} parent=39 // pred_check_branch
        %580 = sbr.rel (%p578) target = $region52
      $region51: #{vision_to_llama_forward.2} parent=39 // pred_region
        %p581 = scmp.lt.s32.totalorder %s33, 1
        %s582 = scalar_select %p581, %s33, 1
        %s583 = scalar_lea.vmem %s4, %s582
      $region52: #{vision_to_llama_forward.2} parent=39 // pred_fallthru
        _
      // Predicated region
      $region53: #{vision_to_llama_forward.2} parent=39 // pred_check
        %p584 = pneg %p177
      $region54: #{vision_to_llama_forward.2} parent=39 // pred_check_branch
        %586 = sbr.rel (%p584) target = $region56
      $region55: #{vision_to_llama_forward.2} parent=39 // pred_region
        %p587 = scmp.lt.s32.totalorder %s33, 1
        %s588 = scalar_select %p587, %s33, 1
        %s589 = smul.addr %s588, 16
        %s590 = smul.addr %s589, 4
        %s591 = scalar_lea.vmem %s5, %s590
      $region56: #{vision_to_llama_forward.2} parent=39 // pred_fallthru
        _
      // Predicated region
      $region57: #{vision_to_llama_forward.2} parent=39 // pred_check
        %p592 = pneg %p203
      $region58: #{vision_to_llama_forward.2} parent=39 // pred_check_branch
        %594 = sbr.rel (%p592) target = $region60
      $region59: #{vision_to_llama_forward.2} parent=39 // pred_region
        %p595 = scmp.lt.s32.totalorder %s33, 1
        %s596 = scalar_select %p595, %s33, 1
        %s597 = smul.addr %s596, 2
        %s598 = scalar_lea.vmem %s6, %s597
      $region60: #{vision_to_llama_forward.2} parent=39 // pred_fallthru
        _
      // Predicated region
      $region61: #{vision_to_llama_forward.2} parent=39 // pred_check
        %p599 = pneg %p229
      $region62: #{vision_to_llama_forward.2} parent=39 // pred_check_branch
        %601 = sbr.rel (%p599) target = $region64
      $region63: #{vision_to_llama_forward.2} parent=39 // pred_region
        %p602 = scmp.lt.s32.totalorder %s33, 1
        %s603 = scalar_select %p602, %s33, 1
        %s604 = smul.addr %s603, 8
        %s605 = smul.addr %s604, 4
        %s606 = scalar_lea.vmem %s7, %s605
      $region64: #{vision_to_llama_forward.2} parent=39 // pred_fallthru
        _
      // Predicated region
      $region65: #{vision_to_llama_forward.2} parent=39 // pred_check
        %p607 = pneg %p255
      $region66: #{vision_to_llama_forward.2} parent=39 // pred_check_branch
        %609 = sbr.rel (%p607) target = $region68
      $region67: #{vision_to_llama_forward.2} parent=39 // pred_region
        %p610 = scmp.lt.s32.totalorder %s33, 1
        %s611 = scalar_select %p610, %s33, 1
        %s612 = scalar_lea.vmem %s8, %s611
      $region68: #{vision_to_llama_forward.2} parent=39 // pred_fallthru
        _
      // Predicated region
      $region69: #{vision_to_llama_forward.2} parent=39 // pred_check
        %p613 = pneg %p281
      $region70: #{vision_to_llama_forward.2} parent=39 // pred_check_branch
        %615 = sbr.rel (%p613) target = $region72
      $region71: #{vision_to_llama_forward.2} parent=39 // pred_region
        %p616 = scmp.lt.s32.totalorder %s33, 1
        %s617 = scalar_select %p616, %s33, 1
        %s618 = scalar_lea.vmem %s9, %s617
      $region72: #{vision_to_llama_forward.2} parent=39 // pred_fallthru
        _
      // Predicated region
      $region73: #{vision_to_llama_forward.2} parent=39 // pred_check
        %p619 = pneg %p307
      $region74: #{vision_to_llama_forward.2} parent=39 // pred_check_branch
        %621 = sbr.rel (%p619) target = $region76
      $region75: #{vision_to_llama_forward.2} parent=39 // pred_region
        %p622 = scmp.lt.s32.totalorder %s33, 1
        %s623 = scalar_select %p622, %s33, 1
        %s624 = scalar_lea.vmem %s10, %s623
      $region76: #{vision_to_llama_forward.2} parent=39 // pred_fallthru
        _
      // Predicated region
      $region77: #{vision_to_llama_forward.2} parent=39 // pred_check
        %p625 = pneg %p333
      $region78: #{vision_to_llama_forward.2} parent=39 // pred_check_branch
        %627 = sbr.rel (%p625) target = $region80
      $region79: #{vision_to_llama_forward.2} parent=39 // pred_region
        %p628 = scmp.lt.s32.totalorder %s33, 1
        %s629 = scalar_select %p628, %s33, 1
        %s630 = smul.addr %s629, 8
        %s631 = smul.addr %s630, 4
        %s632 = scalar_lea.vmem %s11, %s631
      $region80: #{vision_to_llama_forward.2} parent=39 // pred_fallthru
        _
      // Predicated region
      $region81: #{vision_to_llama_forward.2} parent=39 // pred_check
        %p633 = pneg %p359
      $region82: #{vision_to_llama_forward.2} parent=39 // pred_check_branch
        %635 = sbr.rel (%p633) target = $region84
      $region83: #{vision_to_llama_forward.2} parent=39 // pred_region
        %p636 = scmp.lt.s32.totalorder %s33, 1
        %s637 = scalar_select %p636, %s33, 1
        %s638 = scalar_lea.vmem %s12, %s637
      $region84: #{vision_to_llama_forward.2} parent=39 // pred_fallthru
        _
      // Predicated region
      $region85: #{vision_to_llama_forward.2} parent=39 // pred_check
        %p639 = pneg %p385
      $region86: #{vision_to_llama_forward.2} parent=39 // pred_check_branch
        %641 = sbr.rel (%p639) target = $region88
      $region87: #{vision_to_llama_forward.2} parent=39 // pred_region
        %p642 = scmp.lt.s32.totalorder %s33, 1
        %s643 = scalar_select %p642, %s33, 1
        %s644 = smul.addr %s643, 16
        %s645 = smul.addr %s644, 4
        %s646 = scalar_lea.vmem %s13, %s645
      $region88: #{vision_to_llama_forward.2} parent=39 // pred_fallthru
        _
      // Predicated region
      $region89: #{vision_to_llama_forward.2} parent=39 // pred_check
        %p647 = pneg %p411
      $region90: #{vision_to_llama_forward.2} parent=39 // pred_check_branch
        %649 = sbr.rel (%p647) target = $region92
      $region91: #{vision_to_llama_forward.2} parent=39 // pred_region
        %p650 = scmp.lt.s32.totalorder %s33, 1
        %s651 = scalar_select %p650, %s33, 1
        %s652 = scalar_lea.vmem %s14, %s651
      $region92: #{vision_to_llama_forward.2} parent=39 // pred_fallthru
        _
    $region40: #{vision_to_llama_forward.2} parent=5 // pred_fallthru
      _
    %p653 = scmp.le.s32.totalorder 1, %s25
    %p654 = scmp.lt.s32.totalorder %s25, 5
    %p655 = pnand %p653, %p654
    %p656 = pneg %p655
    // Predicated region
    $region93: #{vision_to_llama_forward.2} parent=5 // pred_check
      _
    $region94: #{vision_to_llama_forward.2} parent=5 // pred_check_branch
      %658 = sbr.rel (%p655) target = $region96
    $region95: #{vision_to_llama_forward.2} parent=5 // pred_region
      %s659 = ssub.s32 %s25, 1
      %p660 = scmp.lt.s32.totalorder %s34, 1
      %s661 = scalar_select %p660, %s34, 1
      %s662 = smul.addr %s661, 2
      %s663 = smul.addr %s662, 8
      %s664 = scalar_lea.vmem %s0, %s663
      %p665 = pneg %p63
      %p666 = pneg %p60
      %p667 = pneg %p84
      %p668 = pneg %p81
      %p669 = pneg %p105
      %p670 = pneg %p102
      %p671 = scmp.lt.s32.totalorder %s35, 1
      %s672 = scalar_select %p671, %s35, 1
      %s673 = scalar_lea.vmem %s3, %s672
      %p674 = pneg %p131
      %p675 = pneg %p128
      %p676 = scmp.lt.s32.totalorder %s35, 1
      %s677 = scalar_select %p676, %s35, 1
      %s678 = scalar_lea.vmem %s4, %s677
      %p679 = pneg %p157
      %p680 = pneg %p154
      %p681 = scmp.lt.s32.totalorder %s35, 1
      %s682 = scalar_select %p681, %s35, 1
      %s683 = smul.addr %s682, 16
      %s684 = smul.addr %s683, 4
      %s685 = scalar_lea.vmem %s5, %s684
      %p686 = pneg %p183
      %p687 = pneg %p180
      %p688 = scmp.lt.s32.totalorder %s35, 1
      %s689 = scalar_select %p688, %s35, 1
      %s690 = smul.addr %s689, 2
      %s691 = scalar_lea.vmem %s6, %s690
      %p692 = pneg %p209
      %p693 = pneg %p206
      %p694 = scmp.lt.s32.totalorder %s35, 1
      %s695 = scalar_select %p694, %s35, 1
      %s696 = smul.addr %s695, 8
      %s697 = smul.addr %s696, 4
      %s698 = scalar_lea.vmem %s7, %s697
      %p699 = pneg %p235
      %p700 = pneg %p232
      %p701 = scmp.lt.s32.totalorder %s35, 1
      %s702 = scalar_select %p701, %s35, 1
      %s703 = scalar_lea.vmem %s8, %s702
      %p704 = pneg %p261
      %p705 = pneg %p258
      %p706 = scmp.lt.s32.totalorder %s35, 1
      %s707 = scalar_select %p706, %s35, 1
      %s708 = scalar_lea.vmem %s9, %s707
      %p709 = pneg %p287
      %p710 = pneg %p284
      %p711 = scmp.lt.s32.totalorder %s35, 1
      %s712 = scalar_select %p711, %s35, 1
      %s713 = scalar_lea.vmem %s10, %s712
      %p714 = pneg %p313
      %p715 = pneg %p310
      %p716 = scmp.lt.s32.totalorder %s35, 1
      %s717 = scalar_select %p716, %s35, 1
      %s718 = smul.addr %s717, 8
      %s719 = smul.addr %s718, 4
      %s720 = scalar_lea.vmem %s11, %s719
      %p721 = pneg %p339
      %p722 = pneg %p336
      %p723 = scmp.lt.s32.totalorder %s35, 1
      %s724 = scalar_select %p723, %s35, 1
      %s725 = scalar_lea.vmem %s12, %s724
      %p726 = pneg %p365
      %p727 = pneg %p362
      %p728 = scmp.lt.s32.totalorder %s35, 1
      %s729 = scalar_select %p728, %s35, 1
      %s730 = smul.addr %s729, 16
      %s731 = smul.addr %s730, 4
      %s732 = scalar_lea.vmem %s13, %s731
      %p733 = pneg %p391
      %p734 = pneg %p388
      %p735 = scmp.lt.s32.totalorder %s35, 1
      %s736 = scalar_select %p735, %s35, 1
      %s737 = scalar_lea.vmem %s14, %s736
      %p738 = pneg %p417
      %p739 = pneg %p414
      %p740 = pneg %p438
      %p741 = pneg %p435
      %p742 = pneg %p459
      %p743 = pneg %p456
      %p744 = pneg %p480
      %p745 = pneg %p477
      %p746 = pneg %p501
      %p747 = pneg %p498
      %p748 = pneg %p527
      %p749 = pneg %p524
      %p750 = scmp.lt.s32.totalorder %s34, 1
      %s751 = scalar_select %p750, %s34, 1
      %s752 = smul.addr %s751, 4
      %s753 = scalar_lea.vmem %s19, %s752
      %p754 = scmp.lt.s32.totalorder %s34, 1
      %s755 = scalar_select %p754, %s34, 1
      %s756 = smul.addr %s755, 2
      %s757 = smul.addr %s756, 8
      %s758 = scalar_lea.vmem %s0, %s757
      %p759 = scmp.lt.s32.totalorder %s35, 1
      %s760 = scalar_select %p759, %s35, 1
      %s761 = scalar_lea.vmem %s3, %s760
      %p762 = scmp.lt.s32.totalorder %s35, 1
      %s763 = scalar_select %p762, %s35, 1
      %s764 = scalar_lea.vmem %s4, %s763
      %p765 = scmp.lt.s32.totalorder %s35, 1
      %s766 = scalar_select %p765, %s35, 1
      %s767 = smul.addr %s766, 16
      %s768 = smul.addr %s767, 4
      %s769 = scalar_lea.vmem %s5, %s768
      %p770 = scmp.lt.s32.totalorder %s35, 1
      %s771 = scalar_select %p770, %s35, 1
      %s772 = smul.addr %s771, 2
      %s773 = scalar_lea.vmem %s6, %s772
      %p774 = scmp.lt.s32.totalorder %s35, 1
      %s775 = scalar_select %p774, %s35, 1
      %s776 = smul.addr %s775, 8
      %s777 = smul.addr %s776, 4
      %s778 = scalar_lea.vmem %s7, %s777
      %p779 = scmp.lt.s32.totalorder %s35, 1
      %s780 = scalar_select %p779, %s35, 1
      %s781 = scalar_lea.vmem %s8, %s780
      %p782 = scmp.lt.s32.totalorder %s35, 1
      %s783 = scalar_select %p782, %s35, 1
      %s784 = scalar_lea.vmem %s9, %s783
      %p785 = scmp.lt.s32.totalorder %s35, 1
      %s786 = scalar_select %p785, %s35, 1
      %s787 = scalar_lea.vmem %s10, %s786
      %p788 = scmp.lt.s32.totalorder %s35, 1
      %s789 = scalar_select %p788, %s35, 1
      %s790 = smul.addr %s789, 8
      %s791 = smul.addr %s790, 4
      %s792 = scalar_lea.vmem %s11, %s791
      %p793 = scmp.lt.s32.totalorder %s35, 1
      %s794 = scalar_select %p793, %s35, 1
      %s795 = scalar_lea.vmem %s12, %s794
      %p796 = scmp.lt.s32.totalorder %s35, 1
      %s797 = scalar_select %p796, %s35, 1
      %s798 = smul.addr %s797, 16
      %s799 = smul.addr %s798, 4
      %s800 = scalar_lea.vmem %s13, %s799
      %p801 = scmp.lt.s32.totalorder %s35, 1
      %s802 = scalar_select %p801, %s35, 1
      %s803 = scalar_lea.vmem %s14, %s802
      %p804 = scmp.lt.s32.totalorder %s34, 1
      %s805 = scalar_select %p804, %s34, 1
      %s806 = smul.addr %s805, 4
      %s807 = scalar_lea.vmem %s19, %s806
      %p809 = scmp.eq.s32.totalorder %s35, 0
      // Predicated region
      $region97: #{vision_to_llama_forward.2} parent=95 // pred_check
        %p810 = pneg %p809
      $region98: #{vision_to_llama_forward.2} parent=95 // pred_check_branch
        %812 = sbr.rel (%p810) target = $region100
      $region99: #{vision_to_llama_forward.2} parent=95 // pred_region
        %v813 = vld [vmem:[%s758] sm:$0xff]
        %v814 = vld [vmem:[%s758 + $0x8] sm:$0xff]
        %v815 = vpack.c.bf16 %v813, %v813
        %v816 = vpack.c.bf16 %v814, %v814
        %v817 = vld [vmem:[%s2] sm:$0xf]
        %v818 = vld [vmem:[%s2 + $0x4] sm:$0xf]
        %v819 = vld [vmem:[%s2 + $0x8] sm:$0xf]
        %v820 = vld [vmem:[%s2 + $0xc] sm:$0xf]
        %v821 = vld [vmem:[%s2 + $0x10] sm:$0xf]
        %v822 = vld [vmem:[%s2 + $0x14] sm:$0xf]
        %v823 = vld [vmem:[%s2 + $0x18] sm:$0xf]
        %v824 = vld [vmem:[%s2 + $0x1c] sm:$0xf]
        %v825 = vld [vmem:[%s2 + $0x20] sm:$0xf]
        %v826 = vld [vmem:[%s2 + $0x24] sm:$0xf]
        %v827 = vld [vmem:[%s2 + $0x28] sm:$0xf]
        %v828 = vld [vmem:[%s2 + $0x2c] sm:$0xf]
        %v829 = vld [vmem:[%s2 + $0x30] sm:$0xf]
        %v830 = vld [vmem:[%s2 + $0x34] sm:$0xf]
        %v831 = vld [vmem:[%s2 + $0x38] sm:$0xf]
        %v832 = vld [vmem:[%s2 + $0x3c] sm:$0xf]
        %v833 = vld [vmem:[%s2 + $0x40] sm:$0xf]
        %v834 = vld [vmem:[%s2 + $0x44] sm:$0xf]
        %v835 = vld [vmem:[%s2 + $0x48] sm:$0xf]
        %v836 = vld [vmem:[%s2 + $0x4c] sm:$0xf]
        %v837 = vld [vmem:[%s2 + $0x50] sm:$0xf]
        %v838 = vld [vmem:[%s2 + $0x54] sm:$0xf]
        %v839 = vld [vmem:[%s2 + $0x58] sm:$0xf]
        %v840 = vld [vmem:[%s2 + $0x5c] sm:$0xf]
        %v865 = vunpack.c.l.b16 %v817
        %v866 = vunpack.c.l.b16 %v818
        %v867 = vunpack.c.l.b16 %v819
        %v868 = vunpack.c.l.b16 %v820
        %v869 = vunpack.c.l.b16 %v821
        %v870 = vunpack.c.l.b16 %v822
        %v871 = vunpack.c.l.b16 %v823
        %v872 = vunpack.c.l.b16 %v824
        %v873 = vunpack.c.l.b16 %v825
        %v874 = vunpack.c.l.b16 %v826
        %v875 = vunpack.c.l.b16 %v827
        %v876 = vunpack.c.l.b16 %v828
        %v877 = vunpack.c.l.b16 %v829
        %v878 = vunpack.c.l.b16 %v830
        %v879 = vunpack.c.l.b16 %v831
        %v880 = vunpack.c.l.b16 %v832
        %v881 = vunpack.c.l.b16 %v833
        %v882 = vunpack.c.l.b16 %v834
        %v883 = vunpack.c.l.b16 %v835
        %v884 = vunpack.c.l.b16 %v836
        %v885 = vunpack.c.l.b16 %v837
        %v886 = vunpack.c.l.b16 %v838
        %v887 = vunpack.c.l.b16 %v839
        %v888 = vunpack.c.l.b16 %v840
        %v889 = vpack.c.b16 %v866, %v865
        %v890 = vpack.c.b16 %v868, %v867
        %v891 = vpack.c.b16 %v870, %v869
        %v892 = vpack.c.b16 %v872, %v871
        %v893 = vpack.c.b16 %v874, %v873
        %v894 = vpack.c.b16 %v876, %v875
        %v895 = vpack.c.b16 %v878, %v877
        %v896 = vpack.c.b16 %v880, %v879
        %v897 = vpack.c.b16 %v882, %v881
        %v898 = vpack.c.b16 %v884, %v883
        %v899 = vpack.c.b16 %v886, %v885
        %v900 = vpack.c.b16 %v888, %v887
        %vm913 = vcmask 523264
        %v915 = vsel %vm913, %v816, 0
        %917 = vmatprep.subr.bf16.mxu0 0
        %918 = vmatpush1.bf16.msra.mxu0 %v889
        %919 = vmatprep.subr.bf16.mxu0 0
        %920 = vmatpush1.bf16.msra.mxu0 %v890
        %921 = vmatprep.subr.bf16.mxu0 0
        %922 = vmatpush1.bf16.msra.mxu0 %v891
        %923 = vmatprep.subr.bf16.mxu0 0
        %924 = vmatpush1.bf16.msra.mxu0 %v892
        %925 = vmatprep.subr.bf16.mxu0 0
        %926 = vmatpush1.bf16.msra.mxu0 %v893
        %927 = vmatprep.subr.bf16.mxu0 0
        %928 = vmatpush1.bf16.msra.mxu0 %v894
        %929 = vmatprep.subr.bf16.mxu0 0
        %930 = vmatpush1.bf16.msra.mxu0 %v895
        %931 = vmatprep.subr.bf16.mxu0 0
        %932 = vmatpush1.bf16.msra.mxu0 %v896
        %933 = vmatprep.subr.bf16.mxu0 0
        %934 = vmatpush1.bf16.msra.mxu0 %v897
        %935 = vmatprep.subr.bf16.mxu0 0
        %936 = vmatpush1.bf16.msra.mxu0 %v898
        %937 = vmatprep.subr.bf16.mxu0 0
        %938 = vmatpush1.bf16.msra.mxu0 %v899
        %939 = vmatprep.subr.bf16.mxu0 0
        %940 = vmatpush1.bf16.msra.mxu0 %v900
        %941 = vmatprep.subr.bf16.mxu0 0
        %942 = vmatpush1.bf16.msra.mxu0 0
        %943 = vmatprep.subr.bf16.mxu0 0
        %944 = vmatpush1.bf16.msra.mxu0 0
        %945 = vmatprep.subr.bf16.mxu0 0
        %946 = vmatpush1.bf16.msra.mxu0 0
        %947 = vmatprep.subr.bf16.mxu0 0
        %948 = vmatpush1.bf16.msra.mxu0 0
        %949 = vmatprep.mubr.bf16.mxu0 %v915
        %950 = vmatmul.mubr.bf16.gmra.mrb[0].mxu0 %v815
        %v951 = vpop.f32.mrb[0].mxu0
        %v952 = vadd.f32 0.0, %v951
        %v953 = vpop.f32.mrb[0].mxu0
        %v954 = vpop.f32.mrb[0].mxu0
        %v955 = vpop.f32.mrb[0].mxu0
        %956 = vdwg.mxu0
        %v957 = vld [vmem:[%s1] sm:$0xff]
        %v958 = vadd.f32 %v952, %v957
        %959 = vst.msk [vmem:[#allocation2] sm:$0xff] %vm913, %v958
      $region100: #{vision_to_llama_forward.2} parent=95 // pred_fallthru
        _
      %v960 = vld [vmem:[#allocation2] sm:$0xff]
      %v961 = vld [vmem:[%s761] sm:$0x1]
      %v962 = vld [vmem:[%s764] sm:$0x1]
      %vm963 = vcmask 523264
      %v964 = vsel %vm963, %v960, 0.0
      %965 = vadd.xlane.f32.xlu0 %v964
      %v966 = vpop.xlane.xlu0 %965
      %v967 = vrcp.pop 64.0
      %v968 = vmul.f32 %v966, %v967
      %v969 = vsub.f32 %v960, %v968
      %v970 = vmul.f32 %v969, %v969
      %v971 = vsel %vm963, %v970, 0.0
      %972 = vadd.xlane.f32.xlu0 %v971
      %v973 = vpop.xlane.xlu0 %972
      %v974 = vmul.f32 %v973, %v967
      %v975 = vadd.f32 %v974, 1e-12
      %v976 = vrsqrt.pop %v975
      %v977 = vmul.f32 %v969, %v976
      %v979 = vlaneseq
      %v980 = vshrl.u32 %v979, 7
      %v981 = vsub.s32 0, %v980
      %v982 = vrot.slane %v961, %v981
      %v984 = vmul.f32 %v977, %v982
      %v986 = vlaneseq
      %v987 = vshrl.u32 %v986, 7
      %v988 = vsub.s32 0, %v987
      %v989 = vrot.slane %v962, %v988
      %v991 = vadd.f32 %v984, %v989
      %v992 = vpack.c.bf16 %v991, %v991
      %v993 = vld [vmem:[%s769] sm:$0xff]
      %v994 = vld [vmem:[%s769 + $0x8] sm:$0xff]
      %v995 = vld [vmem:[%s769 + $0x10] sm:$0xff]
      %v996 = vld [vmem:[%s769 + $0x18] sm:$0xff]
      %v997 = vld [vmem:[%s769 + $0x20] sm:$0xff]
      %v998 = vld [vmem:[%s769 + $0x28] sm:$0xff]
      %v999 = vld [vmem:[%s769 + $0x30] sm:$0xff]
      %v1000 = vld [vmem:[%s769 + $0x38] sm:$0xff]
      %v1001 = vld [vmem:[%s773] sm:$0x3]
      %v1003 = vlaneseq
      %v1004 = vshrl.u32 %v1003, 7
      %v1005 = vsub.s32 0, %v1004
      %v1006 = vrot.slane %v1001, %v1005
      %v1007 = vlaneseq
      %v1008 = vshrl.u32 %v1007, 7
      %v1009 = vsub.s32 1, %v1008
      %v1010 = vrot.slane %v1001, %v1009
      %v1021 = vunpack.c.l.b16 %v993
      %v1022 = vunpack.c.h.b16 %v993
      %v1023 = vunpack.c.l.b16 %v994
      %v1024 = vunpack.c.h.b16 %v994
      %v1025 = vunpack.c.l.b16 %v995
      %v1026 = vunpack.c.h.b16 %v995
      %v1027 = vunpack.c.l.b16 %v996
      %v1028 = vunpack.c.h.b16 %v996
      %v1029 = vunpack.c.l.b16 %v997
      %v1030 = vunpack.c.h.b16 %v997
      %v1031 = vunpack.c.l.b16 %v998
      %v1032 = vunpack.c.h.b16 %v998
      %v1033 = vunpack.c.l.b16 %v999
      %v1034 = vunpack.c.h.b16 %v999
      %v1035 = vunpack.c.l.b16 %v1000
      %v1036 = vunpack.c.h.b16 %v1000
      %v1037 = vpack.c.b16 %v1023, %v1021
      %v1038 = vpack.c.b16 %v1024, %v1022
      %v1039 = vpack.c.b16 %v1027, %v1025
      %v1040 = vpack.c.b16 %v1028, %v1026
      %v1041 = vpack.c.b16 %v1031, %v1029
      %v1042 = vpack.c.b16 %v1032, %v1030
      %v1043 = vpack.c.b16 %v1035, %v1033
      %v1044 = vpack.c.b16 %v1036, %v1034
      %v1054 = vsel %vm963, %v992, 0
      %1056 = vmatprep.subr.bf16.mxu0 %v1038
      %1057 = vmatpush1.bf16.msra.mxu0 %v1037
      %1058 = vmatprep.subr.bf16.mxu0 %v1040
      %1059 = vmatpush1.bf16.msra.mxu0 %v1039
      %1060 = vmatprep.subr.bf16.mxu0 %v1042
      %1061 = vmatpush1.bf16.msra.mxu0 %v1041
      %1062 = vmatprep.subr.bf16.mxu0 %v1044
      %1063 = vmatpush1.bf16.msra.mxu0 %v1043
      %1064 = vmatprep.subr.bf16.mxu0 0
      %1065 = vmatpush1.bf16.msra.mxu0 0
      %1066 = vmatprep.subr.bf16.mxu0 0
      %1067 = vmatpush1.bf16.msra.mxu0 0
      %1068 = vmatprep.subr.bf16.mxu0 0
      %1069 = vmatpush1.bf16.msra.mxu0 0
      %1070 = vmatprep.subr.bf16.mxu0 0
      %1071 = vmatpush1.bf16.msra.mxu0 0
      %1072 = vmatprep.subr.bf16.mxu0 0
      %1073 = vmatpush1.bf16.msra.mxu0 0
      %1074 = vmatprep.subr.bf16.mxu0 0
      %1075 = vmatpush1.bf16.msra.mxu0 0
      %1076 = vmatprep.subr.bf16.mxu0 0
      %1077 = vmatpush1.bf16.msra.mxu0 0
      %1078 = vmatprep.subr.bf16.mxu0 0
      %1079 = vmatpush1.bf16.msra.mxu0 0
      %1080 = vmatprep.subr.bf16.mxu0 0
      %1081 = vmatpush1.bf16.msra.mxu0 0
      %1082 = vmatprep.subr.bf16.mxu0 0
      %1083 = vmatpush1.bf16.msra.mxu0 0
      %1084 = vmatprep.subr.bf16.mxu0 0
      %1085 = vmatpush1.bf16.msra.mxu0 0
      %1086 = vmatprep.subr.bf16.mxu0 0
      %1087 = vmatpush1.bf16.msra.mxu0 0
      %1088 = vmatprep.mubr.bf16.mxu0 0
      %1089 = vmatmul.mubr.bf16.gmra.mrb[0].mxu0 %v1054
      %v1090 = vpop.f32.mrb[0].mxu0
      %v1091 = vadd.f32 %v1006, %v1090
      %v1092 = vpop.f32.mrb[0].mxu0
      %v1093 = vadd.f32 %v1010, %v1092
      %v1094 = vpop.f32.mrb[0].mxu0
      %v1095 = vpop.f32.mrb[0].mxu0
      %1096 = vdwg.mxu0
      %v1097 = vlaneseq
      %v1098 = vand.u32 %v1097, 127
      %vm1099 = vcmp.lt.s32.totalorder %v1098, 5
      %v1100 = vsel %vm1099, 0.0, -1e+30
      %v1101 = vpack.c.bf16 %v1091, %v1091
      %1103 = vrot.lane.b32.xlu0 %v1101, 64
      %v1104 = vpop.permute.xlu0 %1103
      %vm1105 = vcmask 130048
      %v1107 = vsel %vm1105, %v1101, 0
      %v1110 = vsel %vm1105, %v1104, 0
      %1112 = vmatprep.subr.bf16.mxu0 0
      %1113 = vmatpush1.bf16.xpose.msra.mxu0 %v1110
      %1114 = vmatprep.subr.bf16.mxu0 0
      %1115 = vmatpush1.bf16.xpose.msra.mxu0 0
      %1116 = vmatprep.subr.bf16.mxu0 0
      %1117 = vmatpush1.bf16.xpose.msra.mxu0 0
      %1118 = vmatprep.subr.bf16.mxu0 0
      %1119 = vmatpush1.bf16.xpose.msra.mxu0 0
      %1120 = vmatprep.subr.bf16.mxu0 0
      %1121 = vmatpush1.bf16.xpose.msra.mxu0 0
      %1122 = vmatprep.subr.bf16.mxu0 0
      %1123 = vmatpush1.bf16.xpose.msra.mxu0 0
      %1124 = vmatprep.subr.bf16.mxu0 0
      %1125 = vmatpush1.bf16.xpose.msra.mxu0 0
      %1126 = vmatprep.subr.bf16.mxu0 0
      %1127 = vmatpush1.bf16.xpose.msra.mxu0 0
      %1128 = vmatprep.subr.bf16.mxu0 0
      %1129 = vmatpush1.bf16.xpose.msra.mxu0 0
      %1130 = vmatprep.subr.bf16.mxu0 0
      %1131 = vmatpush1.bf16.xpose.msra.mxu0 0
      %1132 = vmatprep.subr.bf16.mxu0 0
      %1133 = vmatpush1.bf16.xpose.msra.mxu0 0
      %1134 = vmatprep.subr.bf16.mxu0 0
      %1135 = vmatpush1.bf16.xpose.msra.mxu0 0
      %1136 = vmatprep.subr.bf16.mxu0 0
      %1137 = vmatpush1.bf16.xpose.msra.mxu0 0
      %1138 = vmatprep.subr.bf16.mxu0 0
      %1139 = vmatpush1.bf16.xpose.msra.mxu0 0
      %1140 = vmatprep.subr.bf16.mxu0 0
      %1141 = vmatpush1.bf16.xpose.msra.mxu0 0
      %1142 = vmatprep.subr.bf16.mxu0 0
      %1143 = vmatpush1.bf16.xpose.msra.mxu0 0
      %1144 = vmatprep.mubr.bf16.mxu0 0
      %1145 = vmatmul.mubr.bf16.gmra.mrb[0].mxu0 %v1107
      %v1146 = vpop.f32.mrb[0].mxu0
      %v1147 = vadd.f32 0.0, %v1146
      %v1148 = vpop.f32.mrb[0].mxu0
      %v1149 = vpop.f32.mrb[0].mxu0
      %v1150 = vpop.f32.mrb[0].mxu0
      %1151 = vdwg.mxu0
      %v1152 = vmul.f32 %v1147, 0.25
      %v1153 = vadd.f32 %v1152, %v1100
      %vm1154 = vcmask 64512
      %v1155 = vsel %vm1154, %v1153, -inf
      %1156 = vmax.xlane.f32.xlu0 %v1155
      %v1157 = vpop.xlane.xlu0 %1156
      %v1158 = vsub.f32 %v1153, %v1157
      %v1159 = vmul.f32 %v1158, 1.442695
      %v1160 = vpow.pop %v1159
      %v1161 = vsel %vm1154, %v1160, 0.0
      %1162 = vadd.xlane.f32.xlu0 %v1161
      %v1163 = vpop.xlane.xlu0 %1162
      %v1164 = vrcp.pop %v1163
      %v1165 = vmul.f32 %v1160, %v1164
      %v1166 = vpack.c.bf16 %v1165, %v1165
      %v1167 = vpack.c.bf16 %v1093, %v1093
      %v1169 = vsel %vm1154, %v1166, 0
      %vm1171 = vcmask 1043456
      %v1173 = vsel %vm1171, %v1167, 0
      %1175 = vmatprep.subr.bf16.mxu0 0
      %1176 = vmatpush1.bf16.msra.mxu0 %v1173
      %1177 = vmatprep.subr.bf16.mxu0 0
      %1178 = vmatpush1.bf16.msra.mxu0 0
      %1179 = vmatprep.subr.bf16.mxu0 0
      %1180 = vmatpush1.bf16.msra.mxu0 0
      %1181 = vmatprep.subr.bf16.mxu0 0
      %1182 = vmatpush1.bf16.msra.mxu0 0
      %1183 = vmatprep.subr.bf16.mxu0 0
      %1184 = vmatpush1.bf16.msra.mxu0 0
      %1185 = vmatprep.subr.bf16.mxu0 0
      %1186 = vmatpush1.bf16.msra.mxu0 0
      %1187 = vmatprep.subr.bf16.mxu0 0
      %1188 = vmatpush1.bf16.msra.mxu0 0
      %1189 = vmatprep.subr.bf16.mxu0 0
      %1190 = vmatpush1.bf16.msra.mxu0 0
      %1191 = vmatprep.subr.bf16.mxu0 0
      %1192 = vmatpush1.bf16.msra.mxu0 0
      %1193 = vmatprep.subr.bf16.mxu0 0
      %1194 = vmatpush1.bf16.msra.mxu0 0
      %1195 = vmatprep.subr.bf16.mxu0 0
      %1196 = vmatpush1.bf16.msra.mxu0 0
      %1197 = vmatprep.subr.bf16.mxu0 0
      %1198 = vmatpush1.bf16.msra.mxu0 0
      %1199 = vmatprep.subr.bf16.mxu0 0
      %1200 = vmatpush1.bf16.msra.mxu0 0
      %1201 = vmatprep.subr.bf16.mxu0 0
      %1202 = vmatpush1.bf16.msra.mxu0 0
      %1203 = vmatprep.subr.bf16.mxu0 0
      %1204 = vmatpush1.bf16.msra.mxu0 0
      %1205 = vmatprep.subr.bf16.mxu0 0
      %1206 = vmatpush1.bf16.msra.mxu0 0
      %1207 = vmatprep.mubr.bf16.mxu0 0
      %1208 = vmatmul.mubr.bf16.gmra.mrb[0].mxu0 %v1169
      %v1209 = vpop.f32.mrb[0].mxu0
      %v1210 = vadd.f32 0.0, %v1209
      %v1211 = vpop.f32.mrb[0].mxu0
      %v1212 = vpop.f32.mrb[0].mxu0
      %v1213 = vpop.f32.mrb[0].mxu0
      %1214 = vdwg.mxu0
      %1215 = vrot.lane.b32.xlu0 %v1101, 112
      %v1216 = vpop.permute.xlu0 %1215
      %1217 = vrot.lane.b32.xlu0 %v1101, 48
      %v1218 = vpop.permute.xlu0 %1217
      %v1220 = vsel %vm1105, %v1216, 0
      %v1223 = vsel %vm1105, %v1218, 0
      %1225 = vmatprep.subr.bf16.mxu0 0
      %1226 = vmatpush1.bf16.xpose.msra.mxu0 %v1223
      %1227 = vmatprep.subr.bf16.mxu0 0
      %1228 = vmatpush1.bf16.xpose.msra.mxu0 0
      %1229 = vmatprep.subr.bf16.mxu0 0
      %1230 = vmatpush1.bf16.xpose.msra.mxu0 0
      %1231 = vmatprep.subr.bf16.mxu0 0
      %1232 = vmatpush1.bf16.xpose.msra.mxu0 0
      %1233 = vmatprep.subr.bf16.mxu0 0
      %1234 = vmatpush1.bf16.xpose.msra.mxu0 0
      %1235 = vmatprep.subr.bf16.mxu0 0
      %1236 = vmatpush1.bf16.xpose.msra.mxu0 0
      %1237 = vmatprep.subr.bf16.mxu0 0
      %1238 = vmatpush1.bf16.xpose.msra.mxu0 0
      %1239 = vmatprep.subr.bf16.mxu0 0
      %1240 = vmatpush1.bf16.xpose.msra.mxu0 0
      %1241 = vmatprep.subr.bf16.mxu0 0
      %1242 = vmatpush1.bf16.xpose.msra.mxu0 0
      %1243 = vmatprep.subr.bf16.mxu0 0
      %1244 = vmatpush1.bf16.xpose.msra.mxu0 0
      %1245 = vmatprep.subr.bf16.mxu0 0
      %1246 = vmatpush1.bf16.xpose.msra.mxu0 0
      %1247 = vmatprep.subr.bf16.mxu0 0
      %1248 = vmatpush1.bf16.xpose.msra.mxu0 0
      %1249 = vmatprep.subr.bf16.mxu0 0
      %1250 = vmatpush1.bf16.xpose.msra.mxu0 0
      %1251 = vmatprep.subr.bf16.mxu0 0
      %1252 = vmatpush1.bf16.xpose.msra.mxu0 0
      %1253 = vmatprep.subr.bf16.mxu0 0
      %1254 = vmatpush1.bf16.xpose.msra.mxu0 0
      %1255 = vmatprep.subr.bf16.mxu0 0
      %1256 = vmatpush1.bf16.xpose.msra.mxu0 0
      %1257 = vmatprep.mubr.bf16.mxu0 0
      %1258 = vmatmul.mubr.bf16.gmra.mrb[0].mxu0 %v1220
      %v1259 = vpop.f32.mrb[0].mxu0
      %v1260 = vadd.f32 0.0, %v1259
      %v1261 = vpop.f32.mrb[0].mxu0
      %v1262 = vpop.f32.mrb[0].mxu0
      %v1263 = vpop.f32.mrb[0].mxu0
      %1264 = vdwg.mxu0
      %v1265 = vmul.f32 %v1260, 0.25
      %v1266 = vadd.f32 %v1265, %v1100
      %v1267 = vsel %vm1154, %v1266, -inf
      %1268 = vmax.xlane.f32.xlu0 %v1267
      %v1269 = vpop.xlane.xlu0 %1268
      %v1270 = vsub.f32 %v1266, %v1269
      %v1271 = vmul.f32 %v1270, 1.442695
      %v1272 = vpow.pop %v1271
      %v1273 = vsel %vm1154, %v1272, 0.0
      %1274 = vadd.xlane.f32.xlu0 %v1273
      %v1275 = vpop.xlane.xlu0 %1274
      %v1276 = vrcp.pop %v1275
      %v1277 = vmul.f32 %v1272, %v1276
      %v1278 = vpack.c.bf16 %v1277, %v1277
      %1280 = vrot.lane.b32.xlu0 %v1167, 112
      %v1281 = vpop.permute.xlu0 %1280
      %v1283 = vsel %vm1154, %v1278, 0
      %v1286 = vsel %vm1171, %v1281, 0
      %1288 = vmatprep.subr.bf16.mxu0 0
      %1289 = vmatpush1.bf16.msra.mxu0 %v1286
      %1290 = vmatprep.subr.bf16.mxu0 0
      %1291 = vmatpush1.bf16.msra.mxu0 0
      %1292 = vmatprep.subr.bf16.mxu0 0
      %1293 = vmatpush1.bf16.msra.mxu0 0
      %1294 = vmatprep.subr.bf16.mxu0 0
      %1295 = vmatpush1.bf16.msra.mxu0 0
      %1296 = vmatprep.subr.bf16.mxu0 0
      %1297 = vmatpush1.bf16.msra.mxu0 0
      %1298 = vmatprep.subr.bf16.mxu0 0
      %1299 = vmatpush1.bf16.msra.mxu0 0
      %1300 = vmatprep.subr.bf16.mxu0 0
      %1301 = vmatpush1.bf16.msra.mxu0 0
      %1302 = vmatprep.subr.bf16.mxu0 0
      %1303 = vmatpush1.bf16.msra.mxu0 0
      %1304 = vmatprep.subr.bf16.mxu0 0
      %1305 = vmatpush1.bf16.msra.mxu0 0
      %1306 = vmatprep.subr.bf16.mxu0 0
      %1307 = vmatpush1.bf16.msra.mxu0 0
      %1308 = vmatprep.subr.bf16.mxu0 0
      %1309 = vmatpush1.bf16.msra.mxu0 0
      %1310 = vmatprep.subr.bf16.mxu0 0
      %1311 = vmatpush1.bf16.msra.mxu0 0
      %1312 = vmatprep.subr.bf16.mxu0 0
      %1313 = vmatpush1.bf16.msra.mxu0 0
      %1314 = vmatprep.subr.bf16.mxu0 0
      %1315 = vmatpush1.bf16.msra.mxu0 0
      %1316 = vmatprep.subr.bf16.mxu0 0
      %1317 = vmatpush1.bf16.msra.mxu0 0
      %1318 = vmatprep.subr.bf16.mxu0 0
      %1319 = vmatpush1.bf16.msra.mxu0 0
      %1320 = vmatprep.mubr.bf16.mxu0 0
      %1321 = vmatmul.mubr.bf16.gmra.mrb[0].mxu0 %v1283
      %v1322 = vpop.f32.mrb[0].mxu0
      %v1323 = vadd.f32 0.0, %v1322
      %v1324 = vpop.f32.mrb[0].mxu0
      %v1325 = vpop.f32.mrb[0].mxu0
      %v1326 = vpop.f32.mrb[0].mxu0
      %1327 = vdwg.mxu0
      %1328 = vrot.lane.b32.xlu0 %v1101, 96
      %v1329 = vpop.permute.xlu0 %1328
      %1330 = vrot.lane.b32.xlu0 %v1101, 32
      %v1331 = vpop.permute.xlu0 %1330
      %v1333 = vsel %vm1105, %v1329, 0
      %v1336 = vsel %vm1105, %v1331, 0
      %1338 = vmatprep.subr.bf16.mxu0 0
      %1339 = vmatpush1.bf16.xpose.msra.mxu0 %v1336
      %1340 = vmatprep.subr.bf16.mxu0 0
      %1341 = vmatpush1.bf16.xpose.msra.mxu0 0
      %1342 = vmatprep.subr.bf16.mxu0 0
      %1343 = vmatpush1.bf16.xpose.msra.mxu0 0
      %1344 = vmatprep.subr.bf16.mxu0 0
      %1345 = vmatpush1.bf16.xpose.msra.mxu0 0
      %1346 = vmatprep.subr.bf16.mxu0 0
      %1347 = vmatpush1.bf16.xpose.msra.mxu0 0
      %1348 = vmatprep.subr.bf16.mxu0 0
      %1349 = vmatpush1.bf16.xpose.msra.mxu0 0
      %1350 = vmatprep.subr.bf16.mxu0 0
      %1351 = vmatpush1.bf16.xpose.msra.mxu0 0
      %1352 = vmatprep.subr.bf16.mxu0 0
      %1353 = vmatpush1.bf16.xpose.msra.mxu0 0
      %1354 = vmatprep.subr.bf16.mxu0 0
      %1355 = vmatpush1.bf16.xpose.msra.mxu0 0
      %1356 = vmatprep.subr.bf16.mxu0 0
      %1357 = vmatpush1.bf16.xpose.msra.mxu0 0
      %1358 = vmatprep.subr.bf16.mxu0 0
      %1359 = vmatpush1.bf16.xpose.msra.mxu0 0
      %1360 = vmatprep.subr.bf16.mxu0 0
      %1361 = vmatpush1.bf16.xpose.msra.mxu0 0
      %1362 = vmatprep.subr.bf16.mxu0 0
      %1363 = vmatpush1.bf16.xpose.msra.mxu0 0
      %1364 = vmatprep.subr.bf16.mxu0 0
      %1365 = vmatpush1.bf16.xpose.msra.mxu0 0
      %1366 = vmatprep.subr.bf16.mxu0 0
      %1367 = vmatpush1.bf16.xpose.msra.mxu0 0
      %1368 = vmatprep.subr.bf16.mxu0 0
      %1369 = vmatpush1.bf16.xpose.msra.mxu0 0
      %1370 = vmatprep.mubr.bf16.mxu0 0
      %1371 = vmatmul.mubr.bf16.gmra.mrb[0].mxu0 %v1333
      %v1372 = vpop.f32.mrb[0].mxu0
      %v1373 = vadd.f32 0.0, %v1372
      %v1374 = vpop.f32.mrb[0].mxu0
      %v1375 = vpop.f32.mrb[0].mxu0
      %v1376 = vpop.f32.mrb[0].mxu0
      %1377 = vdwg.mxu0
      %v1378 = vmul.f32 %v1373, 0.25
      %v1379 = vadd.f32 %v1378, %v1100
      %v1380 = vsel %vm1154, %v1379, -inf
      %1381 = vmax.xlane.f32.xlu0 %v1380
      %v1382 = vpop.xlane.xlu0 %1381
      %v1383 = vsub.f32 %v1379, %v1382
      %v1384 = vmul.f32 %v1383, 1.442695
      %v1385 = vpow.pop %v1384
      %v1386 = vsel %vm1154, %v1385, 0.0
      %1387 = vadd.xlane.f32.xlu0 %v1386
      %v1388 = vpop.xlane.xlu0 %1387
      %v1389 = vrcp.pop %v1388
      %v1390 = vmul.f32 %v1385, %v1389
      %v1391 = vpack.c.bf16 %v1390, %v1390
      %1392 = vrot.lane.b32.xlu0 %v1167, 96
      %v1393 = vpop.permute.xlu0 %1392
      %v1395 = vsel %vm1154, %v1391, 0
      %v1398 = vsel %vm1171, %v1393, 0
      %1400 = vmatprep.subr.bf16.mxu0 0
      %1401 = vmatpush1.bf16.msra.mxu0 %v1398
      %1402 = vmatprep.subr.bf16.mxu0 0
      %1403 = vmatpush1.bf16.msra.mxu0 0
      %1404 = vmatprep.subr.bf16.mxu0 0
      %1405 = vmatpush1.bf16.msra.mxu0 0
      %1406 = vmatprep.subr.bf16.mxu0 0
      %1407 = vmatpush1.bf16.msra.mxu0 0
      %1408 = vmatprep.subr.bf16.mxu0 0
      %1409 = vmatpush1.bf16.msra.mxu0 0
      %1410 = vmatprep.subr.bf16.mxu0 0
      %1411 = vmatpush1.bf16.msra.mxu0 0
      %1412 = vmatprep.subr.bf16.mxu0 0
      %1413 = vmatpush1.bf16.msra.mxu0 0
      %1414 = vmatprep.subr.bf16.mxu0 0
      %1415 = vmatpush1.bf16.msra.mxu0 0
      %1416 = vmatprep.subr.bf16.mxu0 0
      %1417 = vmatpush1.bf16.msra.mxu0 0
      %1418 = vmatprep.subr.bf16.mxu0 0
      %1419 = vmatpush1.bf16.msra.mxu0 0
      %1420 = vmatprep.subr.bf16.mxu0 0
      %1421 = vmatpush1.bf16.msra.mxu0 0
      %1422 = vmatprep.subr.bf16.mxu0 0
      %1423 = vmatpush1.bf16.msra.mxu0 0
      %1424 = vmatprep.subr.bf16.mxu0 0
      %1425 = vmatpush1.bf16.msra.mxu0 0
      %1426 = vmatprep.subr.bf16.mxu0 0
      %1427 = vmatpush1.bf16.msra.mxu0 0
      %1428 = vmatprep.subr.bf16.mxu0 0
      %1429 = vmatpush1.bf16.msra.mxu0 0
      %1430 = vmatprep.subr.bf16.mxu0 0
      %1431 = vmatpush1.bf16.msra.mxu0 0
      %1432 = vmatprep.mubr.bf16.mxu0 0
      %1433 = vmatmul.mubr.bf16.gmra.mrb[0].mxu0 %v1395
      %v1434 = vpop.f32.mrb[0].mxu0
      %v1435 = vadd.f32 0.0, %v1434
      %v1436 = vpop.f32.mrb[0].mxu0
      %v1437 = vpop.f32.mrb[0].mxu0
      %v1438 = vpop.f32.mrb[0].mxu0
      %1439 = vdwg.mxu0
      %1440 = vrot.lane.b32.xlu0 %v1101, 80
      %v1441 = vpop.permute.xlu0 %1440
      %1442 = vrot.lane.b32.xlu0 %v1101, 16
      %v1443 = vpop.permute.xlu0 %1442
      %v1445 = vsel %vm1105, %v1441, 0
      %v1448 = vsel %vm1105, %v1443, 0
      %1450 = vmatprep.subr.bf16.mxu0 0
      %1451 = vmatpush1.bf16.xpose.msra.mxu0 %v1448
      %1452 = vmatprep.subr.bf16.mxu0 0
      %1453 = vmatpush1.bf16.xpose.msra.mxu0 0
      %1454 = vmatprep.subr.bf16.mxu0 0
      %1455 = vmatpush1.bf16.xpose.msra.mxu0 0
      %1456 = vmatprep.subr.bf16.mxu0 0
      %1457 = vmatpush1.bf16.xpose.msra.mxu0 0
      %1458 = vmatprep.subr.bf16.mxu0 0
      %1459 = vmatpush1.bf16.xpose.msra.mxu0 0
      %1460 = vmatprep.subr.bf16.mxu0 0
      %1461 = vmatpush1.bf16.xpose.msra.mxu0 0
      %1462 = vmatprep.subr.bf16.mxu0 0
      %1463 = vmatpush1.bf16.xpose.msra.mxu0 0
      %1464 = vmatprep.subr.bf16.mxu0 0
      %1465 = vmatpush1.bf16.xpose.msra.mxu0 0
      %1466 = vmatprep.subr.bf16.mxu0 0
      %1467 = vmatpush1.bf16.xpose.msra.mxu0 0
      %1468 = vmatprep.subr.bf16.mxu0 0
      %1469 = vmatpush1.bf16.xpose.msra.mxu0 0
      %1470 = vmatprep.subr.bf16.mxu0 0
      %1471 = vmatpush1.bf16.xpose.msra.mxu0 0
      %1472 = vmatprep.subr.bf16.mxu0 0
      %1473 = vmatpush1.bf16.xpose.msra.mxu0 0
      %1474 = vmatprep.subr.bf16.mxu0 0
      %1475 = vmatpush1.bf16.xpose.msra.mxu0 0
      %1476 = vmatprep.subr.bf16.mxu0 0
      %1477 = vmatpush1.bf16.xpose.msra.mxu0 0
      %1478 = vmatprep.subr.bf16.mxu0 0
      %1479 = vmatpush1.bf16.xpose.msra.mxu0 0
      %1480 = vmatprep.subr.bf16.mxu0 0
      %1481 = vmatpush1.bf16.xpose.msra.mxu0 0
      %1482 = vmatprep.mubr.bf16.mxu0 0
      %1483 = vmatmul.mubr.bf16.gmra.mrb[0].mxu0 %v1445
      %v1484 = vpop.f32.mrb[0].mxu0
      %v1485 = vadd.f32 0.0, %v1484
      %v1486 = vpop.f32.mrb[0].mxu0
      %v1487 = vpop.f32.mrb[0].mxu0
      %v1488 = vpop.f32.mrb[0].mxu0
      %1489 = vdwg.mxu0
      %v1490 = vmul.f32 %v1485, 0.25
      %v1491 = vadd.f32 %v1490, %v1100
      %v1492 = vsel %vm1154, %v1491, -inf
      %1493 = vmax.xlane.f32.xlu0 %v1492
      %v1494 = vpop.xlane.xlu0 %1493
      %v1495 = vsub.f32 %v1491, %v1494
      %v1496 = vmul.f32 %v1495, 1.442695
      %v1497 = vpow.pop %v1496
      %v1498 = vsel %vm1154, %v1497, 0.0
      %1499 = vadd.xlane.f32.xlu0 %v1498
      %v1500 = vpop.xlane.xlu0 %1499
      %v1501 = vrcp.pop %v1500
      %v1502 = vmul.f32 %v1497, %v1501
      %v1503 = vpack.c.bf16 %v1502, %v1502
      %1504 = vrot.lane.b32.xlu0 %v1167, 80
      %v1505 = vpop.permute.xlu0 %1504
      %v1507 = vsel %vm1154, %v1503, 0
      %v1510 = vsel %vm1171, %v1505, 0
      %1512 = vmatprep.subr.bf16.mxu0 0
      %1513 = vmatpush1.bf16.msra.mxu0 %v1510
      %1514 = vmatprep.subr.bf16.mxu0 0
      %1515 = vmatpush1.bf16.msra.mxu0 0
      %1516 = vmatprep.subr.bf16.mxu0 0
      %1517 = vmatpush1.bf16.msra.mxu0 0
      %1518 = vmatprep.subr.bf16.mxu0 0
      %1519 = vmatpush1.bf16.msra.mxu0 0
      %1520 = vmatprep.subr.bf16.mxu0 0
      %1521 = vmatpush1.bf16.msra.mxu0 0
      %1522 = vmatprep.subr.bf16.mxu0 0
      %1523 = vmatpush1.bf16.msra.mxu0 0
      %1524 = vmatprep.subr.bf16.mxu0 0
      %1525 = vmatpush1.bf16.msra.mxu0 0
      %1526 = vmatprep.subr.bf16.mxu0 0
      %1527 = vmatpush1.bf16.msra.mxu0 0
      %1528 = vmatprep.subr.bf16.mxu0 0
      %1529 = vmatpush1.bf16.msra.mxu0 0
      %1530 = vmatprep.subr.bf16.mxu0 0
      %1531 = vmatpush1.bf16.msra.mxu0 0
      %1532 = vmatprep.subr.bf16.mxu0 0
      %1533 = vmatpush1.bf16.msra.mxu0 0
      %1534 = vmatprep.subr.bf16.mxu0 0
      %1535 = vmatpush1.bf16.msra.mxu0 0
      %1536 = vmatprep.subr.bf16.mxu0 0
      %1537 = vmatpush1.bf16.msra.mxu0 0
      %1538 = vmatprep.subr.bf16.mxu0 0
      %1539 = vmatpush1.bf16.msra.mxu0 0
      %1540 = vmatprep.subr.bf16.mxu0 0
      %1541 = vmatpush1.bf16.msra.mxu0 0
      %1542 = vmatprep.subr.bf16.mxu0 0
      %1543 = vmatpush1.bf16.msra.mxu0 0
      %1544 = vmatprep.mubr.bf16.mxu0 0
      %1545 = vmatmul.mubr.bf16.gmra.mrb[0].mxu0 %v1507
      %v1546 = vpop.f32.mrb[0].mxu0
      %v1547 = vadd.f32 0.0, %v1546
      %v1548 = vpop.f32.mrb[0].mxu0
      %v1549 = vpop.f32.mrb[0].mxu0
      %v1550 = vpop.f32.mrb[0].mxu0
      %1551 = vdwg.mxu0
      %1553 = vrot.lane.b32.xlu0 %v1323, 16
      %v1554 = vpop.permute.xlu0 %1553
      %1557 = vrot.lane.b32.xlu0 %v1435, 32
      %v1558 = vpop.permute.xlu0 %1557
      %1561 = vrot.lane.b32.xlu0 %v1547, 48
      %v1562 = vpop.permute.xlu0 %1561
      %v1564 = vsel %vm1105, %v1210, %v1554
      %vm1565 = vcmask 261120
      %v1566 = vsel %vm1565, %v1564, %v1558
      %vm1567 = vcmask 392192
      %v1568 = vsel %vm1567, %v1566, %v1562
      %v1569 = vpack.c.bf16 %v1568, %v1568
      %v1570 = vld [vmem:[%s778] sm:$0xf]
      %v1571 = vld [vmem:[%s778 + $0x4] sm:$0xf]
      %v1572 = vld [vmem:[%s778 + $0x8] sm:$0xf]
      %v1573 = vld [vmem:[%s778 + $0xc] sm:$0xf]
      %v1574 = vld [vmem:[%s778 + $0x10] sm:$0xf]
      %v1575 = vld [vmem:[%s778 + $0x14] sm:$0xf]
      %v1576 = vld [vmem:[%s778 + $0x18] sm:$0xf]
      %v1577 = vld [vmem:[%s778 + $0x1c] sm:$0xf]
      %v1578 = vld [vmem:[%s781] sm:$0x1]
      %v1580 = vlaneseq
      %v1581 = vshrl.u32 %v1580, 7
      %v1582 = vsub.s32 0, %v1581
      %v1583 = vrot.slane %v1578, %v1582
      %v1593 = vunpack.c.l.b16 %v1570
      %v1594 = vunpack.c.l.b16 %v1571
      %v1595 = vunpack.c.l.b16 %v1572
      %v1596 = vunpack.c.l.b16 %v1573
      %v1597 = vunpack.c.l.b16 %v1574
      %v1598 = vunpack.c.l.b16 %v1575
      %v1599 = vunpack.c.l.b16 %v1576
      %v1600 = vunpack.c.l.b16 %v1577
      %v1601 = vpack.c.b16 %v1594, %v1593
      %v1602 = vpack.c.b16 %v1596, %v1595
      %v1603 = vpack.c.b16 %v1598, %v1597
      %v1604 = vpack.c.b16 %v1600, %v1599
      %v1610 = vsel %vm963, %v1569, 0
      %1612 = vmatprep.subr.bf16.mxu0 0
      %1613 = vmatpush1.bf16.msra.mxu0 %v1601
      %1614 = vmatprep.subr.bf16.mxu0 0
      %1615 = vmatpush1.bf16.msra.mxu0 %v1602
      %1616 = vmatprep.subr.bf16.mxu0 0
      %1617 = vmatpush1.bf16.msra.mxu0 %v1603
      %1618 = vmatprep.subr.bf16.mxu0 0
      %1619 = vmatpush1.bf16.msra.mxu0 %v1604
      %1620 = vmatprep.subr.bf16.mxu0 0
      %1621 = vmatpush1.bf16.msra.mxu0 0
      %1622 = vmatprep.subr.bf16.mxu0 0
      %1623 = vmatpush1.bf16.msra.mxu0 0
      %1624 = vmatprep.subr.bf16.mxu0 0
      %1625 = vmatpush1.bf16.msra.mxu0 0
      %1626 = vmatprep.subr.bf16.mxu0 0
      %1627 = vmatpush1.bf16.msra.mxu0 0
      %1628 = vmatprep.subr.bf16.mxu0 0
      %1629 = vmatpush1.bf16.msra.mxu0 0
      %1630 = vmatprep.subr.bf16.mxu0 0
      %1631 = vmatpush1.bf16.msra.mxu0 0
      %1632 = vmatprep.subr.bf16.mxu0 0
      %1633 = vmatpush1.bf16.msra.mxu0 0
      %1634 = vmatprep.subr.bf16.mxu0 0
      %1635 = vmatpush1.bf16.msra.mxu0 0
      %1636 = vmatprep.subr.bf16.mxu0 0
      %1637 = vmatpush1.bf16.msra.mxu0 0
      %1638 = vmatprep.subr.bf16.mxu0 0
      %1639 = vmatpush1.bf16.msra.mxu0 0
      %1640 = vmatprep.subr.bf16.mxu0 0
      %1641 = vmatpush1.bf16.msra.mxu0 0
      %1642 = vmatprep.subr.bf16.mxu0 0
      %1643 = vmatpush1.bf16.msra.mxu0 0
      %1644 = vmatprep.mubr.bf16.mxu0 0
      %1645 = vmatmul.mubr.bf16.gmra.mrb[0].mxu0 %v1610
      %v1646 = vpop.f32.mrb[0].mxu0
      %v1647 = vadd.f32 %v1583, %v1646
      %v1648 = vpop.f32.mrb[0].mxu0
      %v1649 = vpop.f32.mrb[0].mxu0
      %v1650 = vpop.f32.mrb[0].mxu0
      %1651 = vdwg.mxu0
      %v1652 = vadd.f32 %v960, %v1647
      %v1653 = vld [vmem:[%s784] sm:$0x1]
      %v1654 = vld [vmem:[%s787] sm:$0x1]
      %v1655 = vsel %vm963, %v1652, 0.0
      %1656 = vadd.xlane.f32.xlu0 %v1655
      %v1657 = vpop.xlane.xlu0 %1656
      %v1658 = vmul.f32 %v1657, %v967
      %v1659 = vsub.f32 %v1652, %v1658
      %v1660 = vmul.f32 %v1659, %v1659
      %v1661 = vsel %vm963, %v1660, 0.0
      %1662 = vadd.xlane.f32.xlu0 %v1661
      %v1663 = vpop.xlane.xlu0 %1662
      %v1664 = vmul.f32 %v1663, %v967
      %v1665 = vadd.f32 %v1664, 1e-12
      %v1666 = vrsqrt.pop %v1665
      %v1667 = vmul.f32 %v1659, %v1666
      %v1669 = vlaneseq
      %v1670 = vshrl.u32 %v1669, 7
      %v1671 = vsub.s32 0, %v1670
      %v1672 = vrot.slane %v1653, %v1671
      %v1674 = vmul.f32 %v1667, %v1672
      %v1676 = vlaneseq
      %v1677 = vshrl.u32 %v1676, 7
      %v1678 = vsub.s32 0, %v1677
      %v1679 = vrot.slane %v1654, %v1678
      %v1681 = vadd.f32 %v1674, %v1679
      %v1682 = vpack.c.bf16 %v1681, %v1681
      %v1683 = vld [vmem:[%s792] sm:$0xf]
      %v1684 = vld [vmem:[%s792 + $0x4] sm:$0xf]
      %v1685 = vld [vmem:[%s792 + $0x8] sm:$0xf]
      %v1686 = vld [vmem:[%s792 + $0xc] sm:$0xf]
      %v1687 = vld [vmem:[%s792 + $0x10] sm:$0xf]
      %v1688 = vld [vmem:[%s792 + $0x14] sm:$0xf]
      %v1689 = vld [vmem:[%s792 + $0x18] sm:$0xf]
      %v1690 = vld [vmem:[%s792 + $0x1c] sm:$0xf]
      %v1691 = vld [vmem:[%s795] sm:$0x1]
      %v1693 = vlaneseq
      %v1694 = vshrl.u32 %v1693, 7
      %v1695 = vsub.s32 0, %v1694
      %v1696 = vrot.slane %v1691, %v1695
      %v1706 = vunpack.c.l.b16 %v1683
      %v1707 = vunpack.c.l.b16 %v1684
      %v1708 = vunpack.c.l.b16 %v1685
      %v1709 = vunpack.c.l.b16 %v1686
      %v1710 = vunpack.c.l.b16 %v1687
      %v1711 = vunpack.c.l.b16 %v1688
      %v1712 = vunpack.c.l.b16 %v1689
      %v1713 = vunpack.c.l.b16 %v1690
      %v1714 = vpack.c.b16 %v1707, %v1706
      %v1715 = vpack.c.b16 %v1709, %v1708
      %v1716 = vpack.c.b16 %v1711, %v1710
      %v1717 = vpack.c.b16 %v1713, %v1712
      %v1723 = vsel %vm963, %v1682, 0
      %1725 = vmatprep.subr.bf16.mxu0 0
      %1726 = vmatpush1.bf16.msra.mxu0 %v1714
      %1727 = vmatprep.subr.bf16.mxu0 0
      %1728 = vmatpush1.bf16.msra.mxu0 %v1715
      %1729 = vmatprep.subr.bf16.mxu0 0
      %1730 = vmatpush1.bf16.msra.mxu0 %v1716
      %1731 = vmatprep.subr.bf16.mxu0 0
      %1732 = vmatpush1.bf16.msra.mxu0 %v1717
      %1733 = vmatprep.subr.bf16.mxu0 0
      %1734 = vmatpush1.bf16.msra.mxu0 0
      %1735 = vmatprep.subr.bf16.mxu0 0
      %1736 = vmatpush1.bf16.msra.mxu0 0
      %1737 = vmatprep.subr.bf16.mxu0 0
      %1738 = vmatpush1.bf16.msra.mxu0 0
      %1739 = vmatprep.subr.bf16.mxu0 0
      %1740 = vmatpush1.bf16.msra.mxu0 0
      %1741 = vmatprep.subr.bf16.mxu0 0
      %1742 = vmatpush1.bf16.msra.mxu0 0
      %1743 = vmatprep.subr.bf16.mxu0 0
      %1744 = vmatpush1.bf16.msra.mxu0 0
      %1745 = vmatprep.subr.bf16.mxu0 0
      %1746 = vmatpush1.bf16.msra.mxu0 0
      %1747 = vmatprep.subr.bf16.mxu0 0
      %1748 = vmatpush1.bf16.msra.mxu0 0
      %1749 = vmatprep.subr.bf16.mxu0 0
      %1750 = vmatpush1.bf16.msra.mxu0 0
      %1751 = vmatprep.subr.bf16.mxu0 0
      %1752 = vmatpush1.bf16.msra.mxu0 0
      %1753 = vmatprep.subr.bf16.mxu0 0
      %1754 = vmatpush1.bf16.msra.mxu0 0
      %1755 = vmatprep.subr.bf16.mxu0 0
      %1756 = vmatpush1.bf16.msra.mxu0 0
      %1757 = vmatprep.mubr.bf16.mxu0 0
      %1758 = vmatmul.mubr.bf16.gmra.mrb[0].mxu0 %v1723
      %v1759 = vpop.f32.mrb[0].mxu0
      %v1760 = vadd.f32 %v1696, %v1759
      %v1761 = vpop.f32.mrb[0].mxu0
      %v1762 = vpop.f32.mrb[0].mxu0
      %v1763 = vpop.f32.mrb[0].mxu0
      %1764 = vdwg.mxu0
      %v1765 = vmul.f32 %v1760, %v1760
      %v1766 = vmul.f32 %v1760, %v1765
      %v1767 = vmul.f32 %v1766, 0.044715
      %v1768 = vadd.f32 %v1760, %v1767
      %v1769 = vmul.f32 %v1768, 0.7978846
      %v1770 = vtanh.pop %v1769
      %v1771 = vadd.f32 %v1770, 1.0
      %v1772 = vmul.f32 %v1771, 0.5
      %v1773 = vmul.f32 %v1760, %v1772
      %v1774 = vpack.c.bf16 %v1773, %v1773
      %v1775 = vld [vmem:[%s800] sm:$0xf]
      %v1776 = vld [vmem:[%s800 + $0x4] sm:$0xf]
      %v1777 = vld [vmem:[%s800 + $0x8] sm:$0xf]
      %v1778 = vld [vmem:[%s800 + $0xc] sm:$0xf]
      %v1779 = vld [vmem:[%s800 + $0x10] sm:$0xf]
      %v1780 = vld [vmem:[%s800 + $0x14] sm:$0xf]
      %v1781 = vld [vmem:[%s800 + $0x18] sm:$0xf]
      %v1782 = vld [vmem:[%s800 + $0x1c] sm:$0xf]
      %v1783 = vld [vmem:[%s800 + $0x20] sm:$0xf]
      %v1784 = vld [vmem:[%s800 + $0x24] sm:$0xf]
      %v1785 = vld [vmem:[%s800 + $0x28] sm:$0xf]
      %v1786 = vld [vmem:[%s800 + $0x2c] sm:$0xf]
      %v1787 = vld [vmem:[%s800 + $0x30] sm:$0xf]
      %v1788 = vld [vmem:[%s800 + $0x34] sm:$0xf]
      %v1789 = vld [vmem:[%s800 + $0x38] sm:$0xf]
      %v1790 = vld [vmem:[%s800 + $0x3c] sm:$0xf]
      %v1791 = vld [vmem:[%s803] sm:$0x1]
      %v1793 = vlaneseq
      %v1794 = vshrl.u32 %v1793, 7
      %v1795 = vsub.s32 0, %v1794
      %v1796 = vrot.slane %v1791, %v1795
      %v1814 = vunpack.c.l.b16 %v1775
      %v1815 = vunpack.c.l.b16 %v1776
      %v1816 = vunpack.c.l.b16 %v1777
      %v1817 = vunpack.c.l.b16 %v1778
      %v1818 = vunpack.c.l.b16 %v1779
      %v1819 = vunpack.c.l.b16 %v1780
      %v1820 = vunpack.c.l.b16 %v1781
      %v1821 = vunpack.c.l.b16 %v1782
      %v1822 = vunpack.c.l.b16 %v1783
      %v1823 = vunpack.c.l.b16 %v1784
      %v1824 = vunpack.c.l.b16 %v1785
      %v1825 = vunpack.c.l.b16 %v1786
      %v1826 = vunpack.c.l.b16 %v1787
      %v1827 = vunpack.c.l.b16 %v1788
      %v1828 = vunpack.c.l.b16 %v1789
      %v1829 = vunpack.c.l.b16 %v1790
      %v1830 = vpack.c.b16 %v1815, %v1814
      %v1831 = vpack.c.b16 %v1817, %v1816
      %v1832 = vpack.c.b16 %v1819, %v1818
      %v1833 = vpack.c.b16 %v1821, %v1820
      %v1834 = vpack.c.b16 %v1823, %v1822
      %v1835 = vpack.c.b16 %v1825, %v1824
      %v1836 = vpack.c.b16 %v1827, %v1826
      %v1837 = vpack.c.b16 %v1829, %v1828
      %1846 = vmatprep.subr.bf16.mxu0 0
      %1847 = vmatpush1.bf16.msra.mxu0 %v1830
      %1848 = vmatprep.subr.bf16.mxu0 0
      %1849 = vmatpush1.bf16.msra.mxu0 %v1831
      %1850 = vmatprep.subr.bf16.mxu0 0
      %1851 = vmatpush1.bf16.msra.mxu0 %v1832
      %1852 = vmatprep.subr.bf16.mxu0 0
      %1853 = vmatpush1.bf16.msra.mxu0 %v1833
      %1854 = vmatprep.subr.bf16.mxu0 0
      %1855 = vmatpush1.bf16.msra.mxu0 %v1834
      %1856 = vmatprep.subr.bf16.mxu0 0
      %1857 = vmatpush1.bf16.msra.mxu0 %v1835
      %1858 = vmatprep.subr.bf16.mxu0 0
      %1859 = vmatpush1.bf16.msra.mxu0 %v1836
      %1860 = vmatprep.subr.bf16.mxu0 0
      %1861 = vmatpush1.bf16.msra.mxu0 %v1837
      %1862 = vmatprep.subr.bf16.mxu0 0
      %1863 = vmatpush1.bf16.msra.mxu0 0
      %1864 = vmatprep.subr.bf16.mxu0 0
      %1865 = vmatpush1.bf16.msra.mxu0 0
      %1866 = vmatprep.subr.bf16.mxu0 0
      %1867 = vmatpush1.bf16.msra.mxu0 0
      %1868 = vmatprep.subr.bf16.mxu0 0
      %1869 = vmatpush1.bf16.msra.mxu0 0
      %1870 = vmatprep.subr.bf16.mxu0 0
      %1871 = vmatpush1.bf16.msra.mxu0 0
      %1872 = vmatprep.subr.bf16.mxu0 0
      %1873 = vmatpush1.bf16.msra.mxu0 0
      %1874 = vmatprep.subr.bf16.mxu0 0
      %1875 = vmatpush1.bf16.msra.mxu0 0
      %1876 = vmatprep.subr.bf16.mxu0 0
      %1877 = vmatpush1.bf16.msra.mxu0 0
      %1878 = vmatprep.mubr.bf16.mxu0 0
      %1879 = vmatmul.mubr.bf16.gmra.mrb[0].mxu0 %v1774
      %v1880 = vpop.f32.mrb[0].mxu0
      %v1881 = vadd.f32 %v1796, %v1880
      %v1882 = vpop.f32.mrb[0].mxu0
      %v1883 = vpop.f32.mrb[0].mxu0
      %v1884 = vpop.f32.mrb[0].mxu0
      %1885 = vdwg.mxu0
      %v1886 = vadd.f32 %v1652, %v1881
      %1887 = vst.msk [vmem:[#allocation2] sm:$0xff] %vm963, %v1886
      %p1888 = scmp.eq.s32.totalorder %s35, 1
      // Predicated region
      $region101: #{vision_to_llama_forward.2} parent=95 // pred_check
        %p1889 = pneg %p1888
      $region102: #{vision_to_llama_forward.2} parent=95 // pred_check_branch
        %1891 = sbr.rel (%p1889) target = $region104
      $region103: #{vision_to_llama_forward.2} parent=95 // pred_region
        %v1892 = vld [vmem:[%s15] sm:$0x1]
        %v1893 = vld [vmem:[%s16] sm:$0x1]
        %v1894 = vsel %vm963, %v1886, 0.0
        %1895 = vadd.xlane.f32.xlu0 %v1894
        %v1896 = vpop.xlane.xlu0 %1895
        %v1897 = vmul.f32 %v1896, %v967
        %v1898 = vsub.f32 %v1886, %v1897
        %v1899 = vmul.f32 %v1898, %v1898
        %v1900 = vsel %vm963, %v1899, 0.0
        %1901 = vadd.xlane.f32.xlu0 %v1900
        %v1902 = vpop.xlane.xlu0 %1901
        %v1903 = vmul.f32 %v1902, %v967
        %v1904 = vadd.f32 %v1903, 1e-12
        %v1905 = vrsqrt.pop %v1904
        %v1906 = vmul.f32 %v1898, %v1905
        %v1908 = vlaneseq
        %v1909 = vshrl.u32 %v1908, 7
        %v1910 = vsub.s32 0, %v1909
        %v1911 = vrot.slane %v1892, %v1910
        %v1913 = vmul.f32 %v1906, %v1911
        %v1915 = vlaneseq
        %v1916 = vshrl.u32 %v1915, 7
        %v1917 = vsub.s32 0, %v1916
        %v1918 = vrot.slane %v1893, %v1917
        %v1920 = vadd.f32 %v1913, %v1918
        %v1921 = vpack.c.bf16 %v1920, %v1920
        %v1922 = vld [vmem:[%s17] sm:$0xf]
        %v1923 = vld [vmem:[%s17 + $0x4] sm:$0xf]
        %v1924 = vld [vmem:[%s17 + $0x8] sm:$0xf]
        %v1925 = vld [vmem:[%s17 + $0xc] sm:$0xf]
        %v1926 = vld [vmem:[%s17 + $0x10] sm:$0xf]
        %v1927 = vld [vmem:[%s17 + $0x14] sm:$0xf]
        %v1928 = vld [vmem:[%s17 + $0x18] sm:$0xf]
        %v1929 = vld [vmem:[%s17 + $0x1c] sm:$0xf]
        %v1930 = vld [vmem:[%s18] sm:$0x1]
        %v1932 = vlaneseq
        %v1933 = vshrl.u32 %v1932, 7
        %v1934 = vsub.s32 0, %v1933
        %v1935 = vrot.slane %v1930, %v1934
        %v1945 = vunpack.c.l.b16 %v1922
        %v1946 = vunpack.c.l.b16 %v1923
        %v1947 = vunpack.c.l.b16 %v1924
        %v1948 = vunpack.c.l.b16 %v1925
        %v1949 = vunpack.c.l.b16 %v1926
        %v1950 = vunpack.c.l.b16 %v1927
        %v1951 = vunpack.c.l.b16 %v1928
        %v1952 = vunpack.c.l.b16 %v1929
        %v1953 = vpack.c.b16 %v1946, %v1945
        %v1954 = vpack.c.b16 %v1948, %v1947
        %v1955 = vpack.c.b16 %v1950, %v1949
        %v1956 = vpack.c.b16 %v1952, %v1951
        %v1962 = vsel %vm963, %v1921, 0
        %1964 = vmatprep.subr.bf16.mxu0 0
        %1965 = vmatpush1.bf16.msra.mxu0 %v1953
        %1966 = vmatprep.subr.bf16.mxu0 0
        %1967 = vmatpush1.bf16.msra.mxu0 %v1954
        %1968 = vmatprep.subr.bf16.mxu0 0
        %1969 = vmatpush1.bf16.msra.mxu0 %v1955
        %1970 = vmatprep.subr.bf16.mxu0 0
        %1971 = vmatpush1.bf16.msra.mxu0 %v1956
        %1972 = vmatprep.subr.bf16.mxu0 0
        %1973 = vmatpush1.bf16.msra.mxu0 0
        %1974 = vmatprep.subr.bf16.mxu0 0
        %1975 = vmatpush1.bf16.msra.mxu0 0
        %1976 = vmatprep.subr.bf16.mxu0 0
        %1977 = vmatpush1.bf16.msra.mxu0 0
        %1978 = vmatprep.subr.bf16.mxu0 0
        %1979 = vmatpush1.bf16.msra.mxu0 0
        %1980 = vmatprep.subr.bf16.mxu0 0
        %1981 = vmatpush1.bf16.msra.mxu0 0
        %1982 = vmatprep.subr.bf16.mxu0 0
        %1983 = vmatpush1.bf16.msra.mxu0 0
        %1984 = vmatprep.subr.bf16.mxu0 0
        %1985 = vmatpush1.bf16.msra.mxu0 0
        %1986 = vmatprep.subr.bf16.mxu0 0
        %1987 = vmatpush1.bf16.msra.mxu0 0
        %1988 = vmatprep.subr.bf16.mxu0 0
        %1989 = vmatpush1.bf16.msra.mxu0 0
        %1990 = vmatprep.subr.bf16.mxu0 0
        %1991 = vmatpush1.bf16.msra.mxu0 0
        %1992 = vmatprep.subr.bf16.mxu0 0
        %1993 = vmatpush1.bf16.msra.mxu0 0
        %1994 = vmatprep.subr.bf16.mxu0 0
        %1995 = vmatpush1.bf16.msra.mxu0 0
        %1996 = vmatprep.mubr.bf16.mxu0 0
        %1997 = vmatmul.mubr.bf16.gmra.mrb[0].mxu0 %v1962
        %v1998 = vpop.f32.mrb[0].mxu0
        %v1999 = vadd.f32 %v1935, %v1998
        %v2000 = vpop.f32.mrb[0].mxu0
        %v2001 = vpop.f32.mrb[0].mxu0
        %v2002 = vpop.f32.mrb[0].mxu0
        %2003 = vdwg.mxu0
        %v2004 = vpack.c.bf16 %v1999, %v1999
        %2005 = vst [vmem:[%s807] sm:$0xf] %v2004
      $region104: #{vision_to_llama_forward.2} parent=95 // pred_fallthru
        _
      %p2006 = scmp.lt.s32.totalorder %s34, 1
      %s2007 = scalar_select %p2006, %s34, 1
      %s2008 = smul.addr %s2007, 4
      %s2009 = scalar_lea.vmem %s19, %s2008
      // Predicated region
      $region105: #{vision_to_llama_forward.2} parent=95 // pred_check
        %p2010 = pneg %p524
      $region106: #{vision_to_llama_forward.2} parent=95 // pred_check_branch
        %2012 = sbr.rel (%p2010) target = $region108
      $region107: #{vision_to_llama_forward.2} parent=95 // pred_region
        _
      $region108: #{vision_to_llama_forward.2} parent=95 // pred_fallthru
        _
    $region96: #{vision_to_llama_forward.2} parent=5 // pred_fallthru
      _
    %p2013 = scmp.le.s32.totalorder 2, %s25
    // Predicated region
    $region109: #{vision_to_llama_forward.2} parent=5 // pred_check
      %p2014 = pneg %p2013
    $region110: #{vision_to_llama_forward.2} parent=5 // pred_check_branch
      %2016 = sbr.rel (%p2014) target = $region112
    $region111: #{vision_to_llama_forward.2} parent=5 // pred_region
      %s2017 = ssub.s32 %s25, 2
      // Predicated region
      $region113: #{vision_to_llama_forward.2} parent=111 // pred_check
        %p2018 = pneg %p530
      $region114: #{vision_to_llama_forward.2} parent=111 // pred_check_branch
        %2020 = sbr.rel (%p2018) target = $region116
      $region115: #{vision_to_llama_forward.2} parent=111 // pred_region
        %p2021 = scmp.lt.s32.totalorder %s36, 1
        %s2022 = scalar_select %p2021, %s36, 1
        %s2023 = smul.addr %s2022, 4
        %s2024 = scalar_lea.vmem %s19, %s2023
      $region116: #{vision_to_llama_forward.2} parent=111 // pred_fallthru
        _
    $region112: #{vision_to_llama_forward.2} parent=5 // pred_fallthru
      _
  $region6: #{vision_to_llama_forward.2} parent=0 // loop_footer
    %s29 = sadd.s32 1, %s25
  $region7: #{vision_to_llama_forward.2} parent=0 // loop_footer_branch
    %24 = sbr.rel target = $region3
  $region8: #{vision_to_llama_forward.2} parent=0 // loop_exit
    _

// kernel: vision_to_llama_forward.3
$region0: #{vision_to_llama_forward.3}
  #allocation0 [shape = 'u32[]', space=smem, size = 0x4, offset = 0x4, fixed_abs, tag = 'smem constant byte address 0x4 - core index']
  #allocation1 [shape = 'u32[144,128]{1,0:T(1,128)}', space=vmem, size = 0x12000, scoped, tag = 'internal scratch']
  #allocation2 [shape = 'f32[1,8,128]{2,1,0:T(8,128)}', space=vmem, size = 0x1000, scoped, tag = 'scratch operand']
  %s0 = inlined_call_operand.vmem [shape: bf16[2,8,128], index: 0, kind: input, shape index: {}]
  %s1 = inlined_call_operand.vmem [shape: f32[1,8,32], index: 1, kind: input, shape index: {}]
  %s2 = inlined_call_operand.vmem [shape: f32[1,8,32], index: 2, kind: input, shape index: {}]
  %s3 = inlined_call_operand.vmem [shape: s32[2,8,1], index: 3, kind: input, shape index: {}]
  %s4 = inlined_call_operand.vmem [shape: f32[2,1,128], index: 4, kind: input, shape index: {}]
  %s5 = inlined_call_operand.vmem [shape: bf16[2,128,384], index: 5, kind: input, shape index: {}]
  %s6 = inlined_call_operand.vmem [shape: bf16[2,128,128], index: 6, kind: input, shape index: {}]
  %s7 = inlined_call_operand.vmem [shape: f32[2,1,128], index: 7, kind: input, shape index: {}]
  %s8 = inlined_call_operand.vmem [shape: bf16[2,128,512], index: 8, kind: input, shape index: {}]
  %s9 = inlined_call_operand.vmem [shape: bf16[2,256,128], index: 9, kind: input, shape index: {}]
  %s10 = inlined_call_operand.vmem [shape: f32[1,128], index: 10, kind: input, shape index: {}]
  %s11 = inlined_call_operand.vmem [shape: bf16[128,256], index: 11, kind: input, shape index: {}]
  %s12 = inlined_call_operand.vmem [shape: f32[2,8,256], index: 12, kind: output, shape index: {0}]
  %s13 = inlined_call_operand.vmem [shape: f32[2,1,128], index: 13, kind: output, shape index: {1}]
  %14 = xla_tuple %s12, %s13
  %s15 = sld [smem:[#allocation0]]
  $region97: #{vision_to_llama_forward.3} parent=0
    _
  %s17 = ssub.s32 1, %s15
  %s18 = scalar_select 0, %s17, %s15
  loop: start=0, step=1, limit=6
  $region2: #{vision_to_llama_forward.3} parent=0 // loop_pre_header
    _
  $region3: #{vision_to_llama_forward.3} parent=0 // loop_header
    %s20 = sphi 0, %s24
    %p21 = scmp.ge.s32.totalorder %s20, 6
    %s27 = sphi 0, %s39
    %s28 = sphi 0, %s35
    %s29 = sphi 0, %s27
    %s30 = sphi 0, %s28
    %s31 = sphi 0, %s29
    %s32 = sphi 0, %s30
    %s42 = sphi 0, %s44
    %s45 = sphi 0, %s42
    %s46 = sphi 0, %s45
    %s62 = sphi 0, %s46
    %s66 = sphi 0, %s66
    %s68 = sphi 0, %s66
    %s69 = sphi 0, %s68
    %s83 = sphi 0, %s69
    %s87 = sphi 0, %s87
    %s89 = sphi 0, %s87
    %s90 = sphi 0, %s89
    %s104 = sphi 0, %s90
    %s110 = sphi 0, %s112
    %s113 = sphi 0, %s110
    %s114 = sphi 0, %s113
    %s130 = sphi 0, %s114
    %s136 = sphi 0, %s138
    %s139 = sphi 0, %s136
    %s140 = sphi 0, %s139
    %s156 = sphi 0, %s140
    %s162 = sphi 0, %s164
    %s165 = sphi 0, %s162
    %s166 = sphi 0, %s165
    %s182 = sphi 0, %s166
    %s188 = sphi 0, %s190
    %s191 = sphi 0, %s188
    %s192 = sphi 0, %s191
    %s208 = sphi 0, %s192
    %s214 = sphi 0, %s216
    %s217 = sphi 0, %s214
    %s218 = sphi 0, %s217
    %s234 = sphi 0, %s218
    %s240 = sphi 0, %s242
    %s243 = sphi 0, %s240
    %s244 = sphi 0, %s243
    %s260 = sphi 0, %s244
    %s266 = sphi 0, %s268
    %s269 = sphi 0, %s266
    %s270 = sphi 0, %s269
    %s286 = sphi 0, %s270
    %s290 = sphi 0, %s290
    %s292 = sphi 0, %s290
    %s293 = sphi 0, %s292
    %s307 = sphi 0, %s293
    %s311 = sphi 0, %s311
    %s313 = sphi 0, %s311
    %s314 = sphi 0, %s313
    %s328 = sphi 0, %s314
    %s334 = sphi 0, %s336
    %s337 = sphi 0, %s334
    %s338 = sphi 0, %s337
    %s354 = sphi 0, %s338
    %s360 = sphi 0, %s362
    %s363 = sphi 0, %s360
    %s364 = sphi 0, %s363
    %s380 = sphi 0, %s364
  $region4: #{vision_to_llama_forward.3} parent=0 // loop_header_branch
    %23 = sbr.rel (%p21) target = $region8
  $region5: #{vision_to_llama_forward.3} parent=0 // loop_body
    %s25 = ssub.s32 %s20, 1
    %s26 = ssub.s32 %s20, 2
    %s33 = sadd.s32 1, %s28
    %p34 = scmp.ge.s32.totalorder %s33, 2
    %s35 = scalar_select %p34, 0, %s33
    %s36 = sadd.s32 1, %s27
    %s37 = scalar_select %p34, %s36, %s27
    %p38 = scmp.ge.s32.totalorder %s37, 2
    %s39 = scalar_select %p38, 0, %s37
    %s40 = ssub.s32 %s27, %s39
    %p41 = scmp.eq.s32.totalorder %s40, 0
    %s43 = sadd.s32 %s42, 1
    %s44 = scalar_select %p41, %s42, %s43
    %p47 = pneg %p41
    %p48 = scmp.eq.s32.totalorder %s20, 3
    %p49 = por %p47, %p48
    %p50 = scmp.ne.s32.totalorder %s42, %s45
    %p51 = scmp.eq.s32.totalorder %s20, 0
    %p52 = por %p50, %p51
    %p53 = scmp.ne.s32.totalorder %s42, %s45
    %p54 = scmp.eq.s32.totalorder %s25, 3
    %p55 = por %p53, %p54
    %p56 = scmp.ne.s32.totalorder %s45, %s46
    %p57 = scmp.eq.s32.totalorder %s25, 0
    %p58 = por %p56, %p57
    %p59 = scmp.ne.s32.totalorder %s45, %s46
    %p60 = scmp.eq.s32.totalorder %s26, 3
    %p61 = por %p59, %p60
    %p63 = scmp.ne.s32.totalorder %s46, %s62
    %p64 = scmp.eq.s32.totalorder %s26, 0
    %p65 = por %p63, %p64
    %s67 = sadd.s32 %s66, 1
    %p70 = scmp.eq.s32.totalorder %s20, 3
    %p71 = scmp.ne.s32.totalorder %s66, %s68
    %p72 = scmp.eq.s32.totalorder %s20, 0
    %p73 = por %p71, %p72
    %p74 = scmp.ne.s32.totalorder %s66, %s68
    %p75 = scmp.eq.s32.totalorder %s25, 3
    %p76 = por %p74, %p75
    %p77 = scmp.ne.s32.totalorder %s68, %s69
    %p78 = scmp.eq.s32.totalorder %s25, 0
    %p79 = por %p77, %p78
    %p80 = scmp.ne.s32.totalorder %s68, %s69
    %p81 = scmp.eq.s32.totalorder %s26, 3
    %p82 = por %p80, %p81
    %p84 = scmp.ne.s32.totalorder %s69, %s83
    %p85 = scmp.eq.s32.totalorder %s26, 0
    %p86 = por %p84, %p85
    %s88 = sadd.s32 %s87, 1
    %p91 = scmp.eq.s32.totalorder %s20, 3
    %p92 = scmp.ne.s32.totalorder %s87, %s89
    %p93 = scmp.eq.s32.totalorder %s20, 0
    %p94 = por %p92, %p93
    %p95 = scmp.ne.s32.totalorder %s87, %s89
    %p96 = scmp.eq.s32.totalorder %s25, 3
    %p97 = por %p95, %p96
    %p98 = scmp.ne.s32.totalorder %s89, %s90
    %p99 = scmp.eq.s32.totalorder %s25, 0
    %p100 = por %p98, %p99
    %p101 = scmp.ne.s32.totalorder %s89, %s90
    %p102 = scmp.eq.s32.totalorder %s26, 3
    %p103 = por %p101, %p102
    %p105 = scmp.ne.s32.totalorder %s90, %s104
    %p106 = scmp.eq.s32.totalorder %s26, 0
    %p107 = por %p105, %p106
    %s108 = ssub.s32 %s27, %s39
    %p109 = scmp.eq.s32.totalorder %s108, 0
    %s111 = sadd.s32 %s110, 1
    %s112 = scalar_select %p109, %s110, %s111
    %p115 = pneg %p109
    %p116 = scmp.eq.s32.totalorder %s20, 3
    %p117 = por %p115, %p116
    %p118 = scmp.ne.s32.totalorder %s110, %s113
    %p119 = scmp.eq.s32.totalorder %s20, 0
    %p120 = por %p118, %p119
    %p121 = scmp.ne.s32.totalorder %s110, %s113
    %p122 = scmp.eq.s32.totalorder %s25, 3
    %p123 = por %p121, %p122
    %p124 = scmp.ne.s32.totalorder %s113, %s114
    %p125 = scmp.eq.s32.totalorder %s25, 0
    %p126 = por %p124, %p125
    %p127 = scmp.ne.s32.totalorder %s113, %s114
    %p128 = scmp.eq.s32.totalorder %s26, 3
    %p129 = por %p127, %p128
    %p131 = scmp.ne.s32.totalorder %s114, %s130
    %p132 = scmp.eq.s32.totalorder %s26, 0
    %p133 = por %p131, %p132
    %s134 = ssub.s32 %s28, %s35
    %p135 = scmp.eq.s32.totalorder %s134, 0
    %s137 = sadd.s32 %s136, 1
    %s138 = scalar_select %p135, %s136, %s137
    %p141 = pneg %p135
    %p142 = scmp.eq.s32.totalorder %s20, 3
    %p143 = por %p141, %p142
    %p144 = scmp.ne.s32.totalorder %s136, %s139
    %p145 = scmp.eq.s32.totalorder %s20, 0
    %p146 = por %p144, %p145
    %p147 = scmp.ne.s32.totalorder %s136, %s139
    %p148 = scmp.eq.s32.totalorder %s25, 3
    %p149 = por %p147, %p148
    %p150 = scmp.ne.s32.totalorder %s139, %s140
    %p151 = scmp.eq.s32.totalorder %s25, 0
    %p152 = por %p150, %p151
    %p153 = scmp.ne.s32.totalorder %s139, %s140
    %p154 = scmp.eq.s32.totalorder %s26, 3
    %p155 = por %p153, %p154
    %p157 = scmp.ne.s32.totalorder %s140, %s156
    %p158 = scmp.eq.s32.totalorder %s26, 0
    %p159 = por %p157, %p158
    %s160 = ssub.s32 %s28, %s35
    %p161 = scmp.eq.s32.totalorder %s160, 0
    %s163 = sadd.s32 %s162, 1
    %s164 = scalar_select %p161, %s162, %s163
    %p167 = pneg %p161
    %p168 = scmp.eq.s32.totalorder %s20, 3
    %p169 = por %p167, %p168
    %p170 = scmp.ne.s32.totalorder %s162, %s165
    %p171 = scmp.eq.s32.totalorder %s20, 0
    %p172 = por %p170, %p171
    %p173 = scmp.ne.s32.totalorder %s162, %s165
    %p174 = scmp.eq.s32.totalorder %s25, 3
    %p175 = por %p173, %p174
    %p176 = scmp.ne.s32.totalorder %s165, %s166
    %p177 = scmp.eq.s32.totalorder %s25, 0
    %p178 = por %p176, %p177
    %p179 = scmp.ne.s32.totalorder %s165, %s166
    %p180 = scmp.eq.s32.totalorder %s26, 3
    %p181 = por %p179, %p180
    %p183 = scmp.ne.s32.totalorder %s166, %s182
    %p184 = scmp.eq.s32.totalorder %s26, 0
    %p185 = por %p183, %p184
    %s186 = ssub.s32 %s28, %s35
    %p187 = scmp.eq.s32.totalorder %s186, 0
    %s189 = sadd.s32 %s188, 1
    %s190 = scalar_select %p187, %s188, %s189
    %p193 = pneg %p187
    %p194 = scmp.eq.s32.totalorder %s20, 3
    %p195 = por %p193, %p194
    %p196 = scmp.ne.s32.totalorder %s188, %s191
    %p197 = scmp.eq.s32.totalorder %s20, 0
    %p198 = por %p196, %p197
    %p199 = scmp.ne.s32.totalorder %s188, %s191
    %p200 = scmp.eq.s32.totalorder %s25, 3
    %p201 = por %p199, %p200
    %p202 = scmp.ne.s32.totalorder %s191, %s192
    %p203 = scmp.eq.s32.totalorder %s25, 0
    %p204 = por %p202, %p203
    %p205 = scmp.ne.s32.totalorder %s191, %s192
    %p206 = scmp.eq.s32.totalorder %s26, 3
    %p207 = por %p205, %p206
    %p209 = scmp.ne.s32.totalorder %s192, %s208
    %p210 = scmp.eq.s32.totalorder %s26, 0
    %p211 = por %p209, %p210
    %s212 = ssub.s32 %s28, %s35
    %p213 = scmp.eq.s32.totalorder %s212, 0
    %s215 = sadd.s32 %s214, 1
    %s216 = scalar_select %p213, %s214, %s215
    %p219 = pneg %p213
    %p220 = scmp.eq.s32.totalorder %s20, 3
    %p221 = por %p219, %p220
    %p222 = scmp.ne.s32.totalorder %s214, %s217
    %p223 = scmp.eq.s32.totalorder %s20, 0
    %p224 = por %p222, %p223
    %p225 = scmp.ne.s32.totalorder %s214, %s217
    %p226 = scmp.eq.s32.totalorder %s25, 3
    %p227 = por %p225, %p226
    %p228 = scmp.ne.s32.totalorder %s217, %s218
    %p229 = scmp.eq.s32.totalorder %s25, 0
    %p230 = por %p228, %p229
    %p231 = scmp.ne.s32.totalorder %s217, %s218
    %p232 = scmp.eq.s32.totalorder %s26, 3
    %p233 = por %p231, %p232
    %p235 = scmp.ne.s32.totalorder %s218, %s234
    %p236 = scmp.eq.s32.totalorder %s26, 0
    %p237 = por %p235, %p236
    %s238 = ssub.s32 %s28, %s35
    %p239 = scmp.eq.s32.totalorder %s238, 0
    %s241 = sadd.s32 %s240, 1
    %s242 = scalar_select %p239, %s240, %s241
    %p245 = pneg %p239
    %p246 = scmp.eq.s32.totalorder %s20, 3
    %p247 = por %p245, %p246
    %p248 = scmp.ne.s32.totalorder %s240, %s243
    %p249 = scmp.eq.s32.totalorder %s20, 0
    %p250 = por %p248, %p249
    %p251 = scmp.ne.s32.totalorder %s240, %s243
    %p252 = scmp.eq.s32.totalorder %s25, 3
    %p253 = por %p251, %p252
    %p254 = scmp.ne.s32.totalorder %s243, %s244
    %p255 = scmp.eq.s32.totalorder %s25, 0
    %p256 = por %p254, %p255
    %p257 = scmp.ne.s32.totalorder %s243, %s244
    %p258 = scmp.eq.s32.totalorder %s26, 3
    %p259 = por %p257, %p258
    %p261 = scmp.ne.s32.totalorder %s244, %s260
    %p262 = scmp.eq.s32.totalorder %s26, 0
    %p263 = por %p261, %p262
    %s264 = ssub.s32 %s28, %s35
    %p265 = scmp.eq.s32.totalorder %s264, 0
    %s267 = sadd.s32 %s266, 1
    %s268 = scalar_select %p265, %s266, %s267
    %p271 = pneg %p265
    %p272 = scmp.eq.s32.totalorder %s20, 3
    %p273 = por %p271, %p272
    %p274 = scmp.ne.s32.totalorder %s266, %s269
    %p275 = scmp.eq.s32.totalorder %s20, 0
    %p276 = por %p274, %p275
    %p277 = scmp.ne.s32.totalorder %s266, %s269
    %p278 = scmp.eq.s32.totalorder %s25, 3
    %p279 = por %p277, %p278
    %p280 = scmp.ne.s32.totalorder %s269, %s270
    %p281 = scmp.eq.s32.totalorder %s25, 0
    %p282 = por %p280, %p281
    %p283 = scmp.ne.s32.totalorder %s269, %s270
    %p284 = scmp.eq.s32.totalorder %s26, 3
    %p285 = por %p283, %p284
    %p287 = scmp.ne.s32.totalorder %s270, %s286
    %p288 = scmp.eq.s32.totalorder %s26, 0
    %p289 = por %p287, %p288
    %s291 = sadd.s32 %s290, 1
    %p294 = scmp.eq.s32.totalorder %s20, 3
    %p295 = scmp.ne.s32.totalorder %s290, %s292
    %p296 = scmp.eq.s32.totalorder %s20, 0
    %p297 = por %p295, %p296
    %p298 = scmp.ne.s32.totalorder %s290, %s292
    %p299 = scmp.eq.s32.totalorder %s25, 3
    %p300 = por %p298, %p299
    %p301 = scmp.ne.s32.totalorder %s292, %s293
    %p302 = scmp.eq.s32.totalorder %s25, 0
    %p303 = por %p301, %p302
    %p304 = scmp.ne.s32.totalorder %s292, %s293
    %p305 = scmp.eq.s32.totalorder %s26, 3
    %p306 = por %p304, %p305
    %p308 = scmp.ne.s32.totalorder %s293, %s307
    %p309 = scmp.eq.s32.totalorder %s26, 0
    %p310 = por %p308, %p309
    %s312 = sadd.s32 %s311, 1
    %p315 = scmp.eq.s32.totalorder %s20, 3
    %p316 = scmp.ne.s32.totalorder %s311, %s313
    %p317 = scmp.eq.s32.totalorder %s20, 0
    %p318 = por %p316, %p317
    %p319 = scmp.ne.s32.totalorder %s311, %s313
    %p320 = scmp.eq.s32.totalorder %s25, 3
    %p321 = por %p319, %p320
    %p322 = scmp.ne.s32.totalorder %s313, %s314
    %p323 = scmp.eq.s32.totalorder %s25, 0
    %p324 = por %p322, %p323
    %p325 = scmp.ne.s32.totalorder %s313, %s314
    %p326 = scmp.eq.s32.totalorder %s26, 3
    %p327 = por %p325, %p326
    %p329 = scmp.ne.s32.totalorder %s314, %s328
    %p330 = scmp.eq.s32.totalorder %s26, 0
    %p331 = por %p329, %p330
    %s332 = ssub.s32 %s27, %s39
    %p333 = scmp.eq.s32.totalorder %s332, 0
    %s335 = sadd.s32 %s334, 1
    %s336 = scalar_select %p333, %s334, %s335
    %p339 = pneg %p333
    %p340 = scmp.eq.s32.totalorder %s20, 3
    %p341 = por %p339, %p340
    %p342 = scmp.ne.s32.totalorder %s334, %s337
    %p343 = scmp.eq.s32.totalorder %s20, 0
    %p344 = por %p342, %p343
    %p345 = scmp.ne.s32.totalorder %s334, %s337
    %p346 = scmp.eq.s32.totalorder %s25, 3
    %p347 = por %p345, %p346
    %p348 = scmp.ne.s32.totalorder %s337, %s338
    %p349 = scmp.eq.s32.totalorder %s25, 0
    %p350 = por %p348, %p349
    %p351 = scmp.ne.s32.totalorder %s337, %s338
    %p352 = scmp.eq.s32.totalorder %s26, 3
    %p353 = por %p351, %p352
    %p355 = scmp.ne.s32.totalorder %s338, %s354
    %p356 = scmp.eq.s32.totalorder %s26, 0
    %p357 = por %p355, %p356
    %s358 = ssub.s32 %s27, %s39
    %p359 = scmp.eq.s32.totalorder %s358, 0
    %s361 = sadd.s32 %s360, 1
    %s362 = scalar_select %p359, %s360, %s361
    %p365 = pneg %p359
    %p366 = scmp.eq.s32.totalorder %s20, 3
    %p367 = por %p365, %p366
    %p368 = scmp.ne.s32.totalorder %s360, %s363
    %p369 = scmp.eq.s32.totalorder %s20, 0
    %p370 = por %p368, %p369
    %p371 = scmp.ne.s32.totalorder %s360, %s363
    %p372 = scmp.eq.s32.totalorder %s25, 3
    %p373 = por %p371, %p372
    %p374 = scmp.ne.s32.totalorder %s363, %s364
    %p375 = scmp.eq.s32.totalorder %s25, 0
    %p376 = por %p374, %p375
    %p377 = scmp.ne.s32.totalorder %s363, %s364
    %p378 = scmp.eq.s32.totalorder %s26, 3
    %p379 = por %p377, %p378
    %p381 = scmp.ne.s32.totalorder %s364, %s380
    %p382 = scmp.eq.s32.totalorder %s26, 0
    %p383 = por %p381, %p382
    %p384 = scmp.le.s32.totalorder 1, %s20
    %p385 = scmp.lt.s32.totalorder %s20, 5
    %p386 = pnand %p384, %p385
    %p387 = pneg %p386
    // Predicated region
    $region9: #{vision_to_llama_forward.3} parent=5 // pred_check
      _
    $region10: #{vision_to_llama_forward.3} parent=5 // pred_check_branch
      %389 = sbr.rel (%p386) target = $region12
    $region11: #{vision_to_llama_forward.3} parent=5 // pred_region
      %s390 = ssub.s32 %s20, 1
      // Predicated region
      $region13: #{vision_to_llama_forward.3} parent=11 // pred_check
        %p391 = pneg %p79
      $region14: #{vision_to_llama_forward.3} parent=11 // pred_check_branch
        %393 = sbr.rel (%p391) target = $region16
      $region15: #{vision_to_llama_forward.3} parent=11 // pred_region
        _
      $region16: #{vision_to_llama_forward.3} parent=11 // pred_fallthru
        _
      // Predicated region
      $region17: #{vision_to_llama_forward.3} parent=11 // pred_check
        %p394 = pneg %p100
      $region18: #{vision_to_llama_forward.3} parent=11 // pred_check_branch
        %396 = sbr.rel (%p394) target = $region20
      $region19: #{vision_to_llama_forward.3} parent=11 // pred_region
        _
      $region20: #{vision_to_llama_forward.3} parent=11 // pred_fallthru
        _
      // Predicated region
      $region21: #{vision_to_llama_forward.3} parent=11 // pred_check
        %p397 = pneg %p303
      $region22: #{vision_to_llama_forward.3} parent=11 // pred_check_branch
        %399 = sbr.rel (%p397) target = $region24
      $region23: #{vision_to_llama_forward.3} parent=11 // pred_region
        _
      $region24: #{vision_to_llama_forward.3} parent=11 // pred_fallthru
        _
      // Predicated region
      $region25: #{vision_to_llama_forward.3} parent=11 // pred_check
        %p400 = pneg %p324
      $region26: #{vision_to_llama_forward.3} parent=11 // pred_check_branch
        %402 = sbr.rel (%p400) target = $region28
      $region27: #{vision_to_llama_forward.3} parent=11 // pred_region
        _
      $region28: #{vision_to_llama_forward.3} parent=11 // pred_fallthru
        _
    $region12: #{vision_to_llama_forward.3} parent=5 // pred_fallthru
      _
    %p403 = scmp.lt.s32.totalorder %s20, 4
    // Predicated region
    $region29: #{vision_to_llama_forward.3} parent=5 // pred_check
      %p404 = pneg %p403
    $region30: #{vision_to_llama_forward.3} parent=5 // pred_check_branch
      %406 = sbr.rel (%p404) target = $region32
    $region31: #{vision_to_llama_forward.3} parent=5 // pred_region
      // Predicated region
      $region33: #{vision_to_llama_forward.3} parent=31 // pred_check
        %p407 = pneg %p52
      $region34: #{vision_to_llama_forward.3} parent=31 // pred_check_branch
        %409 = sbr.rel (%p407) target = $region36
      $region35: #{vision_to_llama_forward.3} parent=31 // pred_region
        %p410 = scmp.lt.s32.totalorder %s27, 1
        %s411 = scalar_select %p410, %s27, 1
        %s412 = smul.addr %s411, 4
        %s413 = scalar_lea.vmem %s0, %s412
      $region36: #{vision_to_llama_forward.3} parent=31 // pred_fallthru
        _
      // Predicated region
      $region37: #{vision_to_llama_forward.3} parent=31 // pred_check
        %p414 = pneg %p120
      $region38: #{vision_to_llama_forward.3} parent=31 // pred_check_branch
        %416 = sbr.rel (%p414) target = $region40
      $region39: #{vision_to_llama_forward.3} parent=31 // pred_region
        %p417 = scmp.lt.s32.totalorder %s27, 1
        %s418 = scalar_select %p417, %s27, 1
        %s419 = smul.addr %s418, 8
        %s420 = scalar_lea.vmem %s3, %s419
      $region40: #{vision_to_llama_forward.3} parent=31 // pred_fallthru
        _
      // Predicated region
      $region41: #{vision_to_llama_forward.3} parent=31 // pred_check
        %p421 = pneg %p146
      $region42: #{vision_to_llama_forward.3} parent=31 // pred_check_branch
        %423 = sbr.rel (%p421) target = $region44
      $region43: #{vision_to_llama_forward.3} parent=31 // pred_region
        %p424 = scmp.lt.s32.totalorder %s28, 1
        %s425 = scalar_select %p424, %s28, 1
        %s426 = scalar_lea.vmem %s4, %s425
      $region44: #{vision_to_llama_forward.3} parent=31 // pred_fallthru
        _
      // Predicated region
      $region45: #{vision_to_llama_forward.3} parent=31 // pred_check
        %p427 = pneg %p172
      $region46: #{vision_to_llama_forward.3} parent=31 // pred_check_branch
        %429 = sbr.rel (%p427) target = $region48
      $region47: #{vision_to_llama_forward.3} parent=31 // pred_region
        %p430 = scmp.lt.s32.totalorder %s28, 1
        %s431 = scalar_select %p430, %s28, 1
        %s432 = smul.addr %s431, 48
        %s433 = smul.addr %s432, 4
        %s434 = scalar_lea.vmem %s5, %s433
      $region48: #{vision_to_llama_forward.3} parent=31 // pred_fallthru
        _
      // Predicated region
      $region49: #{vision_to_llama_forward.3} parent=31 // pred_check
        %p435 = pneg %p198
      $region50: #{vision_to_llama_forward.3} parent=31 // pred_check_branch
        %437 = sbr.rel (%p435) target = $region52
      $region51: #{vision_to_llama_forward.3} parent=31 // pred_region
        %p438 = scmp.lt.s32.totalorder %s28, 1
        %s439 = scalar_select %p438, %s28, 1
        %s440 = smul.addr %s439, 16
        %s441 = smul.addr %s440, 4
        %s442 = scalar_lea.vmem %s6, %s441
      $region52: #{vision_to_llama_forward.3} parent=31 // pred_fallthru
        _
      // Predicated region
      $region53: #{vision_to_llama_forward.3} parent=31 // pred_check
        %p443 = pneg %p224
      $region54: #{vision_to_llama_forward.3} parent=31 // pred_check_branch
        %445 = sbr.rel (%p443) target = $region56
      $region55: #{vision_to_llama_forward.3} parent=31 // pred_region
        %p446 = scmp.lt.s32.totalorder %s28, 1
        %s447 = scalar_select %p446, %s28, 1
        %s448 = scalar_lea.vmem %s7, %s447
      $region56: #{vision_to_llama_forward.3} parent=31 // pred_fallthru
        _
      // Predicated region
      $region57: #{vision_to_llama_forward.3} parent=31 // pred_check
        %p449 = pneg %p250
      $region58: #{vision_to_llama_forward.3} parent=31 // pred_check_branch
        %451 = sbr.rel (%p449) target = $region60
      $region59: #{vision_to_llama_forward.3} parent=31 // pred_region
        %p452 = scmp.lt.s32.totalorder %s28, 1
        %s453 = scalar_select %p452, %s28, 1
        %s454 = smul.addr %s453, 64
        %s455 = smul.addr %s454, 4
        %s456 = scalar_lea.vmem %s8, %s455
      $region60: #{vision_to_llama_forward.3} parent=31 // pred_fallthru
        _
      // Predicated region
      $region61: #{vision_to_llama_forward.3} parent=31 // pred_check
        %p457 = pneg %p276
      $region62: #{vision_to_llama_forward.3} parent=31 // pred_check_branch
        %459 = sbr.rel (%p457) target = $region64
      $region63: #{vision_to_llama_forward.3} parent=31 // pred_region
        %p460 = scmp.lt.s32.totalorder %s28, 1
        %s461 = scalar_select %p460, %s28, 1
        %s462 = smul.addr %s461, 32
        %s463 = smul.addr %s462, 4
        %s464 = scalar_lea.vmem %s9, %s463
      $region64: #{vision_to_llama_forward.3} parent=31 // pred_fallthru
        _
    $region32: #{vision_to_llama_forward.3} parent=5 // pred_fallthru
      _
    %p465 = scmp.le.s32.totalorder 1, %s20
    %p466 = scmp.lt.s32.totalorder %s20, 5
    %p467 = pnand %p465, %p466
    %p468 = pneg %p467
    // Predicated region
    $region65: #{vision_to_llama_forward.3} parent=5 // pred_check
      _
    $region66: #{vision_to_llama_forward.3} parent=5 // pred_check_branch
      %470 = sbr.rel (%p467) target = $region68
    $region67: #{vision_to_llama_forward.3} parent=5 // pred_region
      %s471 = ssub.s32 %s20, 1
      %p472 = scmp.lt.s32.totalorder %s29, 1
      %s473 = scalar_select %p472, %s29, 1
      %s474 = smul.addr %s473, 4
      %s475 = scalar_lea.vmem %s0, %s474
      %p476 = pneg %p58
      %p477 = pneg %p55
      %p478 = pneg %p79
      %p479 = pneg %p76
      %p480 = pneg %p100
      %p481 = pneg %p97
      %p482 = scmp.lt.s32.totalorder %s29, 1
      %s483 = scalar_select %p482, %s29, 1
      %s484 = smul.addr %s483, 8
      %s485 = scalar_lea.vmem %s3, %s484
      %p486 = pneg %p126
      %p487 = pneg %p123
      %p488 = scmp.lt.s32.totalorder %s30, 1
      %s489 = scalar_select %p488, %s30, 1
      %s490 = scalar_lea.vmem %s4, %s489
      %p491 = pneg %p152
      %p492 = pneg %p149
      %p493 = scmp.lt.s32.totalorder %s30, 1
      %s494 = scalar_select %p493, %s30, 1
      %s495 = smul.addr %s494, 48
      %s496 = smul.addr %s495, 4
      %s497 = scalar_lea.vmem %s5, %s496
      %p498 = pneg %p178
      %p499 = pneg %p175
      %p500 = scmp.lt.s32.totalorder %s30, 1
      %s501 = scalar_select %p500, %s30, 1
      %s502 = smul.addr %s501, 16
      %s503 = smul.addr %s502, 4
      %s504 = scalar_lea.vmem %s6, %s503
      %p505 = pneg %p204
      %p506 = pneg %p201
      %p507 = scmp.lt.s32.totalorder %s30, 1
      %s508 = scalar_select %p507, %s30, 1
      %s509 = scalar_lea.vmem %s7, %s508
      %p510 = pneg %p230
      %p511 = pneg %p227
      %p512 = scmp.lt.s32.totalorder %s30, 1
      %s513 = scalar_select %p512, %s30, 1
      %s514 = smul.addr %s513, 64
      %s515 = smul.addr %s514, 4
      %s516 = scalar_lea.vmem %s8, %s515
      %p517 = pneg %p256
      %p518 = pneg %p253
      %p519 = scmp.lt.s32.totalorder %s30, 1
      %s520 = scalar_select %p519, %s30, 1
      %s521 = smul.addr %s520, 32
      %s522 = smul.addr %s521, 4
      %s523 = scalar_lea.vmem %s9, %s522
      %p524 = pneg %p282
      %p525 = pneg %p279
      %p526 = pneg %p303
      %p527 = pneg %p300
      %p528 = pneg %p324
      %p529 = pneg %p321
      %p530 = pneg %p350
      %p531 = pneg %p347
      %p532 = scmp.lt.s32.totalorder %s29, 1
      %s533 = scalar_select %p532, %s29, 1
      %s534 = smul.addr %s533, 2
      %s535 = smul.addr %s534, 8
      %s536 = scalar_lea.vmem %s12, %s535
      %p537 = pneg %p376
      %p538 = pneg %p373
      %p539 = scmp.lt.s32.totalorder %s29, 1
      %s540 = scalar_select %p539, %s29, 1
      %s541 = scalar_lea.vmem %s13, %s540
      %p542 = scmp.lt.s32.totalorder %s29, 1
      %s543 = scalar_select %p542, %s29, 1
      %s544 = smul.addr %s543, 4
      %s545 = scalar_lea.vmem %s0, %s544
      %p546 = scmp.lt.s32.totalorder %s29, 1
      %s547 = scalar_select %p546, %s29, 1
      %s548 = smul.addr %s547, 8
      %s549 = scalar_lea.vmem %s3, %s548
      %p550 = scmp.lt.s32.totalorder %s30, 1
      %s551 = scalar_select %p550, %s30, 1
      %s552 = scalar_lea.vmem %s4, %s551
      %p553 = scmp.lt.s32.totalorder %s30, 1
      %s554 = scalar_select %p553, %s30, 1
      %s555 = smul.addr %s554, 48
      %s556 = smul.addr %s555, 4
      %s557 = scalar_lea.vmem %s5, %s556
      %p558 = scmp.lt.s32.totalorder %s30, 1
      %s559 = scalar_select %p558, %s30, 1
      %s560 = smul.addr %s559, 16
      %s561 = smul.addr %s560, 4
      %s562 = scalar_lea.vmem %s6, %s561
      %p563 = scmp.lt.s32.totalorder %s30, 1
      %s564 = scalar_select %p563, %s30, 1
      %s565 = scalar_lea.vmem %s7, %s564
      %p566 = scmp.lt.s32.totalorder %s30, 1
      %s567 = scalar_select %p566, %s30, 1
      %s568 = smul.addr %s567, 64
      %s569 = smul.addr %s568, 4
      %s570 = scalar_lea.vmem %s8, %s569
      %p571 = scmp.lt.s32.totalorder %s30, 1
      %s572 = scalar_select %p571, %s30, 1
      %s573 = smul.addr %s572, 32
      %s574 = smul.addr %s573, 4
      %s575 = scalar_lea.vmem %s9, %s574
      %p576 = scmp.lt.s32.totalorder %s29, 1
      %s577 = scalar_select %p576, %s29, 1
      %s578 = smul.addr %s577, 2
      %s579 = smul.addr %s578, 8
      %s580 = scalar_lea.vmem %s12, %s579
      %p581 = scmp.lt.s32.totalorder %s29, 1
      %s582 = scalar_select %p581, %s29, 1
      %s583 = scalar_lea.vmem %s13, %s582
      %p585 = scmp.eq.s32.totalorder %s30, 0
      // Predicated region
      $region69: #{vision_to_llama_forward.3} parent=67 // pred_check
        %p586 = pneg %p585
      $region70: #{vision_to_llama_forward.3} parent=67 // pred_check_branch
        %588 = sbr.rel (%p586) target = $region72
      $region71: #{vision_to_llama_forward.3} parent=67 // pred_region
        %v589 = vld [vmem:[%s545] sm:$0xf]
        %v590 = vunpack.c.l.bf16 %v589
        %591 = vst [vmem:[#allocation2] sm:$0xff] %v590
      $region72: #{vision_to_llama_forward.3} parent=67 // pred_fallthru
        _
      %v592 = vld [vmem:[#allocation2] sm:$0xff]
      %v593 = vlaneseq
      %v594 = vshrl.u32 %v593, 7
      %v595 = vlaneseq
      %v596 = vand.u32 %v595, 127
      %vm597 = vcmp.le.s32.totalorder %v596, %v594
      %v598 = vsel %vm597, 0.0, -1e+30
      %v599 = vld [vmem:[%s1] sm:$0xff]
      %v600 = vld [vmem:[%s2] sm:$0xff]
      %v601 = vld [vmem:[%s552] sm:$0x1]
      %v602 = vmul.f32 %v592, %v592
      %603 = vadd.xlane.f32.xlu0 %v602
      %v604 = vpop.xlane.xlu0 %603
      %v605 = vrcp.pop 128.0
      %v606 = vmul.f32 %v604, %v605
      %v607 = vadd.f32 %v606, 1e-05
      %v608 = vrsqrt.pop %v607
      %v609 = vmul.f32 %v592, %v608
      %v611 = vlaneseq
      %v612 = vshrl.u32 %v611, 7
      %v613 = vsub.s32 0, %v612
      %v614 = vrot.slane %v601, %v613
      %v616 = vmul.f32 %v609, %v614
      %v617 = vpack.c.bf16 %v616, %v616
      %v618 = vld [vmem:[%s557] sm:$0xff]
      %v619 = vld [vmem:[%s557 + $0x8] sm:$0xf]
      %v620 = vld [vmem:[%s557 + $0xc] sm:$0xff]
      %v621 = vld [vmem:[%s557 + $0x14] sm:$0xf]
      %v622 = vld [vmem:[%s557 + $0x18] sm:$0xff]
      %v623 = vld [vmem:[%s557 + $0x20] sm:$0xf]
      %v624 = vld [vmem:[%s557 + $0x24] sm:$0xff]
      %v625 = vld [vmem:[%s557 + $0x2c] sm:$0xf]
      %v626 = vld [vmem:[%s557 + $0x30] sm:$0xff]
      %v627 = vld [vmem:[%s557 + $0x38] sm:$0xf]
      %v628 = vld [vmem:[%s557 + $0x3c] sm:$0xff]
      %v629 = vld [vmem:[%s557 + $0x44] sm:$0xf]
      %v630 = vld [vmem:[%s557 + $0x48] sm:$0xff]
      %v631 = vld [vmem:[%s557 + $0x50] sm:$0xf]
      %v632 = vld [vmem:[%s557 + $0x54] sm:$0xff]
      %v633 = vld [vmem:[%s557 + $0x5c] sm:$0xf]
      %v634 = vld [vmem:[%s557 + $0x60] sm:$0xff]
      %v635 = vld [vmem:[%s557 + $0x68] sm:$0xf]
      %v636 = vld [vmem:[%s557 + $0x6c] sm:$0xff]
      %v637 = vld [vmem:[%s557 + $0x74] sm:$0xf]
      %v638 = vld [vmem:[%s557 + $0x78] sm:$0xff]
      %v639 = vld [vmem:[%s557 + $0x80] sm:$0xf]
      %v640 = vld [vmem:[%s557 + $0x84] sm:$0xff]
      %v641 = vld [vmem:[%s557 + $0x8c] sm:$0xf]
      %v642 = vld [vmem:[%s557 + $0x90] sm:$0xff]
      %v643 = vld [vmem:[%s557 + $0x98] sm:$0xf]
      %v644 = vld [vmem:[%s557 + $0x9c] sm:$0xff]
      %v645 = vld [vmem:[%s557 + $0xa4] sm:$0xf]
      %v646 = vld [vmem:[%s557 + $0xa8] sm:$0xff]
      %v647 = vld [vmem:[%s557 + $0xb0] sm:$0xf]
      %v648 = vld [vmem:[%s557 + $0xb4] sm:$0xff]
      %v649 = vld [vmem:[%s557 + $0xbc] sm:$0xf]
      %v682 = vunpack.c.l.b16 %v618
      %v683 = vunpack.c.h.b16 %v618
      %v684 = vunpack.c.l.b16 %v619
      %v685 = vunpack.c.l.b16 %v620
      %v686 = vunpack.c.h.b16 %v620
      %v687 = vunpack.c.l.b16 %v621
      %v688 = vunpack.c.l.b16 %v622
      %v689 = vunpack.c.h.b16 %v622
      %v690 = vunpack.c.l.b16 %v623
      %v691 = vunpack.c.l.b16 %v624
      %v692 = vunpack.c.h.b16 %v624
      %v693 = vunpack.c.l.b16 %v625
      %v694 = vunpack.c.l.b16 %v626
      %v695 = vunpack.c.h.b16 %v626
      %v696 = vunpack.c.l.b16 %v627
      %v697 = vunpack.c.l.b16 %v628
      %v698 = vunpack.c.h.b16 %v628
      %v699 = vunpack.c.l.b16 %v629
      %v700 = vunpack.c.l.b16 %v630
      %v701 = vunpack.c.h.b16 %v630
      %v702 = vunpack.c.l.b16 %v631
      %v703 = vunpack.c.l.b16 %v632
      %v704 = vunpack.c.h.b16 %v632
      %v705 = vunpack.c.l.b16 %v633
      %v706 = vunpack.c.l.b16 %v634
      %v707 = vunpack.c.h.b16 %v634
      %v708 = vunpack.c.l.b16 %v635
      %v709 = vunpack.c.l.b16 %v636
      %v710 = vunpack.c.h.b16 %v636
      %v711 = vunpack.c.l.b16 %v637
      %v712 = vunpack.c.l.b16 %v638
      %v713 = vunpack.c.h.b16 %v638
      %v714 = vunpack.c.l.b16 %v639
      %v715 = vunpack.c.l.b16 %v640
      %v716 = vunpack.c.h.b16 %v640
      %v717 = vunpack.c.l.b16 %v641
      %v718 = vunpack.c.l.b16 %v642
      %v719 = vunpack.c.h.b16 %v642
      %v720 = vunpack.c.l.b16 %v643
      %v721 = vunpack.c.l.b16 %v644
      %v722 = vunpack.c.h.b16 %v644
      %v723 = vunpack.c.l.b16 %v645
      %v724 = vunpack.c.l.b16 %v646
      %v725 = vunpack.c.h.b16 %v646
      %v726 = vunpack.c.l.b16 %v647
      %v727 = vunpack.c.l.b16 %v648
      %v728 = vunpack.c.h.b16 %v648
      %v729 = vunpack.c.l.b16 %v649
      %v730 = vpack.c.b16 %v685, %v682
      %v731 = vpack.c.b16 %v686, %v683
      %v732 = vpack.c.b16 %v687, %v684
      %v733 = vpack.c.b16 %v691, %v688
      %v734 = vpack.c.b16 %v692, %v689
      %v735 = vpack.c.b16 %v693, %v690
      %v736 = vpack.c.b16 %v697, %v694
      %v737 = vpack.c.b16 %v698, %v695
      %v738 = vpack.c.b16 %v699, %v696
      %v739 = vpack.c.b16 %v703, %v700
      %v740 = vpack.c.b16 %v704, %v701
      %v741 = vpack.c.b16 %v705, %v702
      %v742 = vpack.c.b16 %v709, %v706
      %v743 = vpack.c.b16 %v710, %v707
      %v744 = vpack.c.b16 %v711, %v708
      %v745 = vpack.c.b16 %v715, %v712
      %v746 = vpack.c.b16 %v716, %v713
      %v747 = vpack.c.b16 %v717, %v714
      %v748 = vpack.c.b16 %v721, %v718
      %v749 = vpack.c.b16 %v722, %v719
      %v750 = vpack.c.b16 %v723, %v720
      %v751 = vpack.c.b16 %v727, %v724
      %v752 = vpack.c.b16 %v728, %v725
      %v753 = vpack.c.b16 %v729, %v726
      %778 = vmatprep.subr.bf16.mxu0 %v731
      %779 = vmatpush1.bf16.msra.mxu0 %v730
      %780 = vmatprep.subr.bf16.mxu0 %v734
      %781 = vmatpush1.bf16.msra.mxu0 %v733
      %782 = vmatprep.subr.bf16.mxu0 %v737
      %783 = vmatpush1.bf16.msra.mxu0 %v736
      %784 = vmatprep.subr.bf16.mxu0 %v740
      %785 = vmatpush1.bf16.msra.mxu0 %v739
      %786 = vmatprep.subr.bf16.mxu0 %v743
      %787 = vmatpush1.bf16.msra.mxu0 %v742
      %788 = vmatprep.subr.bf16.mxu0 %v746
      %789 = vmatpush1.bf16.msra.mxu0 %v745
      %790 = vmatprep.subr.bf16.mxu0 %v749
      %791 = vmatpush1.bf16.msra.mxu0 %v748
      %792 = vmatprep.subr.bf16.mxu0 %v752
      %793 = vmatpush1.bf16.msra.mxu0 %v751
      %794 = vmatprep.subr.bf16.mxu0 0
      %795 = vmatpush1.bf16.msra.mxu0 0
      %796 = vmatprep.subr.bf16.mxu0 0
      %797 = vmatpush1.bf16.msra.mxu0 0
      %798 = vmatprep.subr.bf16.mxu0 0
      %799 = vmatpush1.bf16.msra.mxu0 0
      %800 = vmatprep.subr.bf16.mxu0 0
      %801 = vmatpush1.bf16.msra.mxu0 0
      %802 = vmatprep.subr.bf16.mxu0 0
      %803 = vmatpush1.bf16.msra.mxu0 0
      %804 = vmatprep.subr.bf16.mxu0 0
      %805 = vmatpush1.bf16.msra.mxu0 0
      %806 = vmatprep.subr.bf16.mxu0 0
      %807 = vmatpush1.bf16.msra.mxu0 0
      %808 = vmatprep.subr.bf16.mxu0 0
      %809 = vmatpush1.bf16.msra.mxu0 0
      %810 = vmatprep.mubr.bf16.mxu0 0
      %811 = vmatmul.mubr.bf16.gmra.mrb[0].mxu0 %v617
      %v812 = vpop.f32.mrb[0].mxu0
      %v813 = vadd.f32 0.0, %v812
      %v814 = vpop.f32.mrb[0].mxu0
      %v815 = vadd.f32 0.0, %v814
      %v816 = vpop.f32.mrb[0].mxu0
      %v817 = vpop.f32.mrb[0].mxu0
      %818 = vdwg.mxu0
      %819 = vmatprep.subr.bf16.mxu0 0
      %820 = vmatpush1.bf16.msra.mxu0 %v732
      %821 = vmatprep.subr.bf16.mxu0 0
      %822 = vmatpush1.bf16.msra.mxu0 %v735
      %823 = vmatprep.subr.bf16.mxu0 0
      %824 = vmatpush1.bf16.msra.mxu0 %v738
      %825 = vmatprep.subr.bf16.mxu0 0
      %826 = vmatpush1.bf16.msra.mxu0 %v741
      %827 = vmatprep.subr.bf16.mxu0 0
      %828 = vmatpush1.bf16.msra.mxu0 %v744
      %829 = vmatprep.subr.bf16.mxu0 0
      %830 = vmatpush1.bf16.msra.mxu0 %v747
      %831 = vmatprep.subr.bf16.mxu0 0
      %832 = vmatpush1.bf16.msra.mxu0 %v750
      %833 = vmatprep.subr.bf16.mxu0 0
      %834 = vmatpush1.bf16.msra.mxu0 %v753
      %835 = vmatprep.subr.bf16.mxu0 0
      %836 = vmatpush1.bf16.msra.mxu0 0
      %837 = vmatprep.subr.bf16.mxu0 0
      %838 = vmatpush1.bf16.msra.mxu0 0
      %839 = vmatprep.subr.bf16.mxu0 0
      %840 = vmatpush1.bf16.msra.mxu0 0
      %841 = vmatprep.subr.bf16.mxu0 0
      %842 = vmatpush1.bf16.msra.mxu0 0
      %843 = vmatprep.subr.bf16.mxu0 0
      %844 = vmatpush1.bf16.msra.mxu0 0
      %845 = vmatprep.subr.bf16.mxu0 0
      %846 = vmatpush1.bf16.msra.mxu0 0
      %847 = vmatprep.subr.bf16.mxu0 0
      %848 = vmatpush1.bf16.msra.mxu0 0
      %849 = vmatprep.subr.bf16.mxu0 0
      %850 = vmatpush1.bf16.msra.mxu0 0
      %851 = vmatprep.mubr.bf16.mxu0 0
      %852 = vmatmul.mubr.bf16.gmra.mrb[0].mxu0 %v617
      %v853 = vpop.f32.mrb[0].mxu0
      %v854 = vadd.f32 0.0, %v853
      %v855 = vpop.f32.mrb[0].mxu0
      %v856 = vpop.f32.mrb[0].mxu0
      %v857 = vpop.f32.mrb[0].mxu0
      %858 = vdwg.mxu0
      %v859 = vmul.f32 %v813, %v599
      %v860 = vsub.f32 0.0, %v813
      %862 = vrot.lane.b32.xlu0 %v860, 112
      %v863 = vpop.permute.xlu0 %862
      %866 = vrot.lane.b32.xlu0 %v813, 16
      %v867 = vpop.permute.xlu0 %866
      %vm869 = vcmask 130048
      %v870 = vsel %vm869, %v863, %v867
      %v871 = vmul.f32 %v870, %v600
      %v872 = vadd.f32 %v859, %v871
      %v873 = vmul.f32 %v815, %v599
      %v874 = vsub.f32 0.0, %v815
      %876 = vrot.lane.b32.xlu0 %v874, 112
      %v877 = vpop.permute.xlu0 %876
      %880 = vrot.lane.b32.xlu0 %v815, 16
      %v881 = vpop.permute.xlu0 %880
      %v883 = vsel %vm869, %v877, %v881
      %v884 = vmul.f32 %v883, %v600
      %v885 = vadd.f32 %v873, %v884
      %v886 = vpack.c.bf16 %v872, %v872
      %v887 = vpack.c.bf16 %v885, %v885
      %vm888 = vcmask 261120
      %v890 = vsel %vm888, %v886, 0
      %v893 = vsel %vm888, %v887, 0
      %895 = vmatprep.subr.bf16.mxu0 0
      %896 = vmatpush1.bf16.xpose.msra.mxu0 %v893
      %897 = vmatprep.subr.bf16.mxu0 0
      %898 = vmatpush1.bf16.xpose.msra.mxu0 0
      %899 = vmatprep.subr.bf16.mxu0 0
      %900 = vmatpush1.bf16.xpose.msra.mxu0 0
      %901 = vmatprep.subr.bf16.mxu0 0
      %902 = vmatpush1.bf16.xpose.msra.mxu0 0
      %903 = vmatprep.subr.bf16.mxu0 0
      %904 = vmatpush1.bf16.xpose.msra.mxu0 0
      %905 = vmatprep.subr.bf16.mxu0 0
      %906 = vmatpush1.bf16.xpose.msra.mxu0 0
      %907 = vmatprep.subr.bf16.mxu0 0
      %908 = vmatpush1.bf16.xpose.msra.mxu0 0
      %909 = vmatprep.subr.bf16.mxu0 0
      %910 = vmatpush1.bf16.xpose.msra.mxu0 0
      %911 = vmatprep.subr.bf16.mxu0 0
      %912 = vmatpush1.bf16.xpose.msra.mxu0 0
      %913 = vmatprep.subr.bf16.mxu0 0
      %914 = vmatpush1.bf16.xpose.msra.mxu0 0
      %915 = vmatprep.subr.bf16.mxu0 0
      %916 = vmatpush1.bf16.xpose.msra.mxu0 0
      %917 = vmatprep.subr.bf16.mxu0 0
      %918 = vmatpush1.bf16.xpose.msra.mxu0 0
      %919 = vmatprep.subr.bf16.mxu0 0
      %920 = vmatpush1.bf16.xpose.msra.mxu0 0
      %921 = vmatprep.subr.bf16.mxu0 0
      %922 = vmatpush1.bf16.xpose.msra.mxu0 0
      %923 = vmatprep.subr.bf16.mxu0 0
      %924 = vmatpush1.bf16.xpose.msra.mxu0 0
      %925 = vmatprep.subr.bf16.mxu0 0
      %926 = vmatpush1.bf16.xpose.msra.mxu0 0
      %927 = vmatprep.mubr.bf16.mxu0 0
      %928 = vmatmul.mubr.bf16.gmra.mrb[0].mxu0 %v890
      %v929 = vpop.f32.mrb[0].mxu0
      %v930 = vadd.f32 0.0, %v929
      %v931 = vpop.f32.mrb[0].mxu0
      %v932 = vpop.f32.mrb[0].mxu0
      %v933 = vpop.f32.mrb[0].mxu0
      %934 = vdwg.mxu0
      %v935 = vmul.f32 %v930, 0.17677669
      %v936 = vadd.f32 %v935, %v598
      %vm937 = vcmask 64512
      %v938 = vsel %vm937, %v936, -inf
      %939 = vmax.xlane.f32.xlu0 %v938
      %v940 = vpop.xlane.xlu0 %939
      %v941 = vsub.f32 %v936, %v940
      %v942 = vmul.f32 %v941, 1.442695
      %v943 = vpow.pop %v942
      %v944 = vsel %vm937, %v943, 0.0
      %945 = vadd.xlane.f32.xlu0 %v944
      %v946 = vpop.xlane.xlu0 %945
      %v947 = vrcp.pop %v946
      %v948 = vmul.f32 %v943, %v947
      %v949 = vpack.c.bf16 %v948, %v948
      %v950 = vpack.c.bf16 %v854, %v854
      %v952 = vsel %vm937, %v949, 0
      %vm954 = vcmask 1043456
      %v956 = vsel %vm954, %v950, 0
      %958 = vmatprep.subr.bf16.mxu0 0
      %959 = vmatpush1.bf16.msra.mxu0 %v956
      %960 = vmatprep.subr.bf16.mxu0 0
      %961 = vmatpush1.bf16.msra.mxu0 0
      %962 = vmatprep.subr.bf16.mxu0 0
      %963 = vmatpush1.bf16.msra.mxu0 0
      %964 = vmatprep.subr.bf16.mxu0 0
      %965 = vmatpush1.bf16.msra.mxu0 0
      %966 = vmatprep.subr.bf16.mxu0 0
      %967 = vmatpush1.bf16.msra.mxu0 0
      %968 = vmatprep.subr.bf16.mxu0 0
      %969 = vmatpush1.bf16.msra.mxu0 0
      %970 = vmatprep.subr.bf16.mxu0 0
      %971 = vmatpush1.bf16.msra.mxu0 0
      %972 = vmatprep.subr.bf16.mxu0 0
      %973 = vmatpush1.bf16.msra.mxu0 0
      %974 = vmatprep.subr.bf16.mxu0 0
      %975 = vmatpush1.bf16.msra.mxu0 0
      %976 = vmatprep.subr.bf16.mxu0 0
      %977 = vmatpush1.bf16.msra.mxu0 0
      %978 = vmatprep.subr.bf16.mxu0 0
      %979 = vmatpush1.bf16.msra.mxu0 0
      %980 = vmatprep.subr.bf16.mxu0 0
      %981 = vmatpush1.bf16.msra.mxu0 0
      %982 = vmatprep.subr.bf16.mxu0 0
      %983 = vmatpush1.bf16.msra.mxu0 0
      %984 = vmatprep.subr.bf16.mxu0 0
      %985 = vmatpush1.bf16.msra.mxu0 0
      %986 = vmatprep.subr.bf16.mxu0 0
      %987 = vmatpush1.bf16.msra.mxu0 0
      %988 = vmatprep.subr.bf16.mxu0 0
      %989 = vmatpush1.bf16.msra.mxu0 0
      %990 = vmatprep.mubr.bf16.mxu0 0
      %991 = vmatmul.mubr.bf16.gmra.mrb[0].mxu0 %v952
      %v992 = vpop.f32.mrb[0].mxu0
      %v993 = vadd.f32 0.0, %v992
      %v994 = vpop.f32.mrb[0].mxu0
      %v995 = vpop.f32.mrb[0].mxu0
      %v996 = vpop.f32.mrb[0].mxu0
      %997 = vdwg.mxu0
      %999 = vrot.lane.b32.xlu0 %v599, 32
      %v1000 = vpop.permute.xlu0 %999
      %v1002 = vmul.f32 %v813, %v1000
      %1003 = vrot.lane.b32.xlu0 %v860, 80
      %v1004 = vpop.permute.xlu0 %1003
      %1006 = vrot.lane.b32.xlu0 %v813, 112
      %v1007 = vpop.permute.xlu0 %1006
      %v1009 = vsel %vm869, %v1004, %v1007
      %v1010 = vmul.f32 %v1009, %v600
      %1012 = vrot.lane.b32.xlu0 %v1010, 32
      %v1013 = vpop.permute.xlu0 %1012
      %v1015 = vadd.f32 %v1002, %v1013
      %v1016 = vmul.f32 %v815, %v1000
      %1017 = vrot.lane.b32.xlu0 %v874, 80
      %v1018 = vpop.permute.xlu0 %1017
      %1020 = vrot.lane.b32.xlu0 %v815, 112
      %v1021 = vpop.permute.xlu0 %1020
      %v1023 = vsel %vm869, %v1018, %v1021
      %v1024 = vmul.f32 %v1023, %v600
      %1026 = vrot.lane.b32.xlu0 %v1024, 32
      %v1027 = vpop.permute.xlu0 %1026
      %v1029 = vadd.f32 %v1016, %v1027
      %v1030 = vpack.c.bf16 %v1015, %v1015
      %v1031 = vpack.c.bf16 %v1029, %v1029
      %1033 = vrot.lane.b32.xlu0 %v1030, 96
      %v1034 = vpop.permute.xlu0 %1033
      %1036 = vrot.lane.b32.xlu0 %v1031, 96
      %v1037 = vpop.permute.xlu0 %1036
      %v1039 = vsel %vm888, %v1034, 0
      %v1042 = vsel %vm888, %v1037, 0
      %1044 = vmatprep.subr.bf16.mxu0 0
      %1045 = vmatpush1.bf16.xpose.msra.mxu0 %v1042
      %1046 = vmatprep.subr.bf16.mxu0 0
      %1047 = vmatpush1.bf16.xpose.msra.mxu0 0
      %1048 = vmatprep.subr.bf16.mxu0 0
      %1049 = vmatpush1.bf16.xpose.msra.mxu0 0
      %1050 = vmatprep.subr.bf16.mxu0 0
      %1051 = vmatpush1.bf16.xpose.msra.mxu0 0
      %1052 = vmatprep.subr.bf16.mxu0 0
      %1053 = vmatpush1.bf16.xpose.msra.mxu0 0
      %1054 = vmatprep.subr.bf16.mxu0 0
      %1055 = vmatpush1.bf16.xpose.msra.mxu0 0
      %1056 = vmatprep.subr.bf16.mxu0 0
      %1057 = vmatpush1.bf16.xpose.msra.mxu0 0
      %1058 = vmatprep.subr.bf16.mxu0 0
      %1059 = vmatpush1.bf16.xpose.msra.mxu0 0
      %1060 = vmatprep.subr.bf16.mxu0 0
      %1061 = vmatpush1.bf16.xpose.msra.mxu0 0
      %1062 = vmatprep.subr.bf16.mxu0 0
      %1063 = vmatpush1.bf16.xpose.msra.mxu0 0
      %1064 = vmatprep.subr.bf16.mxu0 0
      %1065 = vmatpush1.bf16.xpose.msra.mxu0 0
      %1066 = vmatprep.subr.bf16.mxu0 0
      %1067 = vmatpush1.bf16.xpose.msra.mxu0 0
      %1068 = vmatprep.subr.bf16.mxu0 0
      %1069 = vmatpush1.bf16.xpose.msra.mxu0 0
      %1070 = vmatprep.subr.bf16.mxu0 0
      %1071 = vmatpush1.bf16.xpose.msra.mxu0 0
      %1072 = vmatprep.subr.bf16.mxu0 0
      %1073 = vmatpush1.bf16.xpose.msra.mxu0 0
      %1074 = vmatprep.subr.bf16.mxu0 0
      %1075 = vmatpush1.bf16.xpose.msra.mxu0 0
      %1076 = vmatprep.mubr.bf16.mxu0 0
      %1077 = vmatmul.mubr.bf16.gmra.mrb[0].mxu0 %v1039
      %v1078 = vpop.f32.mrb[0].mxu0
      %v1079 = vadd.f32 0.0, %v1078
      %v1080 = vpop.f32.mrb[0].mxu0
      %v1081 = vpop.f32.mrb[0].mxu0
      %v1082 = vpop.f32.mrb[0].mxu0
      %1083 = vdwg.mxu0
      %v1084 = vmul.f32 %v1079, 0.17677669
      %v1085 = vadd.f32 %v1084, %v598
      %v1086 = vsel %vm937, %v1085, -inf
      %1087 = vmax.xlane.f32.xlu0 %v1086
      %v1088 = vpop.xlane.xlu0 %1087
      %v1089 = vsub.f32 %v1085, %v1088
      %v1090 = vmul.f32 %v1089, 1.442695
      %v1091 = vpow.pop %v1090
      %v1092 = vsel %vm937, %v1091, 0.0
      %1093 = vadd.xlane.f32.xlu0 %v1092
      %v1094 = vpop.xlane.xlu0 %1093
      %v1095 = vrcp.pop %v1094
      %v1096 = vmul.f32 %v1091, %v1095
      %v1097 = vpack.c.bf16 %v1096, %v1096
      %1099 = vrot.lane.b32.xlu0 %v950, 96
      %v1100 = vpop.permute.xlu0 %1099
      %v1102 = vsel %vm937, %v1097, 0
      %v1105 = vsel %vm954, %v1100, 0
      %1107 = vmatprep.subr.bf16.mxu0 0
      %1108 = vmatpush1.bf16.msra.mxu0 %v1105
      %1109 = vmatprep.subr.bf16.mxu0 0
      %1110 = vmatpush1.bf16.msra.mxu0 0
      %1111 = vmatprep.subr.bf16.mxu0 0
      %1112 = vmatpush1.bf16.msra.mxu0 0
      %1113 = vmatprep.subr.bf16.mxu0 0
      %1114 = vmatpush1.bf16.msra.mxu0 0
      %1115 = vmatprep.subr.bf16.mxu0 0
      %1116 = vmatpush1.bf16.msra.mxu0 0
      %1117 = vmatprep.subr.bf16.mxu0 0
      %1118 = vmatpush1.bf16.msra.mxu0 0
      %1119 = vmatprep.subr.bf16.mxu0 0
      %1120 = vmatpush1.bf16.msra.mxu0 0
      %1121 = vmatprep.subr.bf16.mxu0 0
      %1122 = vmatpush1.bf16.msra.mxu0 0
      %1123 = vmatprep.subr.bf16.mxu0 0
      %1124 = vmatpush1.bf16.msra.mxu0 0
      %1125 = vmatprep.subr.bf16.mxu0 0
      %1126 = vmatpush1.bf16.msra.mxu0 0
      %1127 = vmatprep.subr.bf16.mxu0 0
      %1128 = vmatpush1.bf16.msra.mxu0 0
      %1129 = vmatprep.subr.bf16.mxu0 0
      %1130 = vmatpush1.bf16.msra.mxu0 0
      %1131 = vmatprep.subr.bf16.mxu0 0
      %1132 = vmatpush1.bf16.msra.mxu0 0
      %1133 = vmatprep.subr.bf16.mxu0 0
      %1134 = vmatpush1.bf16.msra.mxu0 0
      %1135 = vmatprep.subr.bf16.mxu0 0
      %1136 = vmatpush1.bf16.msra.mxu0 0
      %1137 = vmatprep.subr.bf16.mxu0 0
      %1138 = vmatpush1.bf16.msra.mxu0 0
      %1139 = vmatprep.mubr.bf16.mxu0 0
      %1140 = vmatmul.mubr.bf16.gmra.mrb[0].mxu0 %v1102
      %v1141 = vpop.f32.mrb[0].mxu0
      %v1142 = vadd.f32 0.0, %v1141
      %v1143 = vpop.f32.mrb[0].mxu0
      %v1144 = vpop.f32.mrb[0].mxu0
      %v1145 = vpop.f32.mrb[0].mxu0
      %1146 = vdwg.mxu0
      %1147 = vrot.lane.b32.xlu0 %v599, 64
      %v1148 = vpop.permute.xlu0 %1147
      %v1150 = vmul.f32 %v813, %v1148
      %1151 = vrot.lane.b32.xlu0 %v860, 48
      %v1152 = vpop.permute.xlu0 %1151
      %1154 = vrot.lane.b32.xlu0 %v813, 80
      %v1155 = vpop.permute.xlu0 %1154
      %v1157 = vsel %vm869, %v1152, %v1155
      %v1158 = vmul.f32 %v1157, %v600
      %1160 = vrot.lane.b32.xlu0 %v1158, 64
      %v1161 = vpop.permute.xlu0 %1160
      %v1163 = vadd.f32 %v1150, %v1161
      %v1164 = vmul.f32 %v815, %v1148
      %1165 = vrot.lane.b32.xlu0 %v874, 48
      %v1166 = vpop.permute.xlu0 %1165
      %1168 = vrot.lane.b32.xlu0 %v815, 80
      %v1169 = vpop.permute.xlu0 %1168
      %v1171 = vsel %vm869, %v1166, %v1169
      %v1172 = vmul.f32 %v1171, %v600
      %1174 = vrot.lane.b32.xlu0 %v1172, 64
      %v1175 = vpop.permute.xlu0 %1174
      %v1177 = vadd.f32 %v1164, %v1175
      %v1178 = vpack.c.bf16 %v1163, %v1163
      %v1179 = vpack.c.bf16 %v1177, %v1177
      %1181 = vrot.lane.b32.xlu0 %v1178, 64
      %v1182 = vpop.permute.xlu0 %1181
      %1184 = vrot.lane.b32.xlu0 %v1179, 64
      %v1185 = vpop.permute.xlu0 %1184
      %v1187 = vsel %vm888, %v1182, 0
      %v1190 = vsel %vm888, %v1185, 0
      %1192 = vmatprep.subr.bf16.mxu0 0
      %1193 = vmatpush1.bf16.xpose.msra.mxu0 %v1190
      %1194 = vmatprep.subr.bf16.mxu0 0
      %1195 = vmatpush1.bf16.xpose.msra.mxu0 0
      %1196 = vmatprep.subr.bf16.mxu0 0
      %1197 = vmatpush1.bf16.xpose.msra.mxu0 0
      %1198 = vmatprep.subr.bf16.mxu0 0
      %1199 = vmatpush1.bf16.xpose.msra.mxu0 0
      %1200 = vmatprep.subr.bf16.mxu0 0
      %1201 = vmatpush1.bf16.xpose.msra.mxu0 0
      %1202 = vmatprep.subr.bf16.mxu0 0
      %1203 = vmatpush1.bf16.xpose.msra.mxu0 0
      %1204 = vmatprep.subr.bf16.mxu0 0
      %1205 = vmatpush1.bf16.xpose.msra.mxu0 0
      %1206 = vmatprep.subr.bf16.mxu0 0
      %1207 = vmatpush1.bf16.xpose.msra.mxu0 0
      %1208 = vmatprep.subr.bf16.mxu0 0
      %1209 = vmatpush1.bf16.xpose.msra.mxu0 0
      %1210 = vmatprep.subr.bf16.mxu0 0
      %1211 = vmatpush1.bf16.xpose.msra.mxu0 0
      %1212 = vmatprep.subr.bf16.mxu0 0
      %1213 = vmatpush1.bf16.xpose.msra.mxu0 0
      %1214 = vmatprep.subr.bf16.mxu0 0
      %1215 = vmatpush1.bf16.xpose.msra.mxu0 0
      %1216 = vmatprep.subr.bf16.mxu0 0
      %1217 = vmatpush1.bf16.xpose.msra.mxu0 0
      %1218 = vmatprep.subr.bf16.mxu0 0
      %1219 = vmatpush1.bf16.xpose.msra.mxu0 0
      %1220 = vmatprep.subr.bf16.mxu0 0
      %1221 = vmatpush1.bf16.xpose.msra.mxu0 0
      %1222 = vmatprep.subr.bf16.mxu0 0
      %1223 = vmatpush1.bf16.xpose.msra.mxu0 0
      %1224 = vmatprep.mubr.bf16.mxu0 0
      %1225 = vmatmul.mubr.bf16.gmra.mrb[0].mxu0 %v1187
      %v1226 = vpop.f32.mrb[0].mxu0
      %v1227 = vadd.f32 0.0, %v1226
      %v1228 = vpop.f32.mrb[0].mxu0
      %v1229 = vpop.f32.mrb[0].mxu0
      %v1230 = vpop.f32.mrb[0].mxu0
      %1231 = vdwg.mxu0
      %v1232 = vmul.f32 %v1227, 0.17677669
      %v1233 = vadd.f32 %v1232, %v598
      %v1234 = vsel %vm937, %v1233, -inf
      %1235 = vmax.xlane.f32.xlu0 %v1234
      %v1236 = vpop.xlane.xlu0 %1235
      %v1237 = vsub.f32 %v1233, %v1236
      %v1238 = vmul.f32 %v1237, 1.442695
      %v1239 = vpow.pop %v1238
      %v1240 = vsel %vm937, %v1239, 0.0
      %1241 = vadd.xlane.f32.xlu0 %v1240
      %v1242 = vpop.xlane.xlu0 %1241
      %v1243 = vrcp.pop %v1242
      %v1244 = vmul.f32 %v1239, %v1243
      %v1245 = vpack.c.bf16 %v1244, %v1244
      %1246 = vrot.lane.b32.xlu0 %v950, 64
      %v1247 = vpop.permute.xlu0 %1246
      %v1249 = vsel %vm937, %v1245, 0
      %v1252 = vsel %vm954, %v1247, 0
      %1254 = vmatprep.subr.bf16.mxu0 0
      %1255 = vmatpush1.bf16.msra.mxu0 %v1252
      %1256 = vmatprep.subr.bf16.mxu0 0
      %1257 = vmatpush1.bf16.msra.mxu0 0
      %1258 = vmatprep.subr.bf16.mxu0 0
      %1259 = vmatpush1.bf16.msra.mxu0 0
      %1260 = vmatprep.subr.bf16.mxu0 0
      %1261 = vmatpush1.bf16.msra.mxu0 0
      %1262 = vmatprep.subr.bf16.mxu0 0
      %1263 = vmatpush1.bf16.msra.mxu0 0
      %1264 = vmatprep.subr.bf16.mxu0 0
      %1265 = vmatpush1.bf16.msra.mxu0 0
      %1266 = vmatprep.subr.bf16.mxu0 0
      %1267 = vmatpush1.bf16.msra.mxu0 0
      %1268 = vmatprep.subr.bf16.mxu0 0
      %1269 = vmatpush1.bf16.msra.mxu0 0
      %1270 = vmatprep.subr.bf16.mxu0 0
      %1271 = vmatpush1.bf16.msra.mxu0 0
      %1272 = vmatprep.subr.bf16.mxu0 0
      %1273 = vmatpush1.bf16.msra.mxu0 0
      %1274 = vmatprep.subr.bf16.mxu0 0
      %1275 = vmatpush1.bf16.msra.mxu0 0
      %1276 = vmatprep.subr.bf16.mxu0 0
      %1277 = vmatpush1.bf16.msra.mxu0 0
      %1278 = vmatprep.subr.bf16.mxu0 0
      %1279 = vmatpush1.bf16.msra.mxu0 0
      %1280 = vmatprep.subr.bf16.mxu0 0
      %1281 = vmatpush1.bf16.msra.mxu0 0
      %1282 = vmatprep.subr.bf16.mxu0 0
      %1283 = vmatpush1.bf16.msra.mxu0 0
      %1284 = vmatprep.subr.bf16.mxu0 0
      %1285 = vmatpush1.bf16.msra.mxu0 0
      %1286 = vmatprep.mubr.bf16.mxu0 0
      %1287 = vmatmul.mubr.bf16.gmra.mrb[0].mxu0 %v1249
      %v1288 = vpop.f32.mrb[0].mxu0
      %v1289 = vadd.f32 0.0, %v1288
      %v1290 = vpop.f32.mrb[0].mxu0
      %v1291 = vpop.f32.mrb[0].mxu0
      %v1292 = vpop.f32.mrb[0].mxu0
      %1293 = vdwg.mxu0
      %1294 = vrot.lane.b32.xlu0 %v599, 96
      %v1295 = vpop.permute.xlu0 %1294
      %v1297 = vmul.f32 %v813, %v1295
      %1298 = vrot.lane.b32.xlu0 %v860, 16
      %v1299 = vpop.permute.xlu0 %1298
      %1301 = vrot.lane.b32.xlu0 %v813, 48
      %v1302 = vpop.permute.xlu0 %1301
      %v1304 = vsel %vm869, %v1299, %v1302
      %v1305 = vmul.f32 %v1304, %v600
      %1307 = vrot.lane.b32.xlu0 %v1305, 96
      %v1308 = vpop.permute.xlu0 %1307
      %v1310 = vadd.f32 %v1297, %v1308
      %v1311 = vmul.f32 %v815, %v1295
      %1312 = vrot.lane.b32.xlu0 %v874, 16
      %v1313 = vpop.permute.xlu0 %1312
      %1315 = vrot.lane.b32.xlu0 %v815, 48
      %v1316 = vpop.permute.xlu0 %1315
      %v1318 = vsel %vm869, %v1313, %v1316
      %v1319 = vmul.f32 %v1318, %v600
      %1321 = vrot.lane.b32.xlu0 %v1319, 96
      %v1322 = vpop.permute.xlu0 %1321
      %v1324 = vadd.f32 %v1311, %v1322
      %v1325 = vpack.c.bf16 %v1310, %v1310
      %v1326 = vpack.c.bf16 %v1324, %v1324
      %1328 = vrot.lane.b32.xlu0 %v1325, 32
      %v1329 = vpop.permute.xlu0 %1328
      %1331 = vrot.lane.b32.xlu0 %v1326, 32
      %v1332 = vpop.permute.xlu0 %1331
      %v1334 = vsel %vm888, %v1329, 0
      %v1337 = vsel %vm888, %v1332, 0
      %1339 = vmatprep.subr.bf16.mxu0 0
      %1340 = vmatpush1.bf16.xpose.msra.mxu0 %v1337
      %1341 = vmatprep.subr.bf16.mxu0 0
      %1342 = vmatpush1.bf16.xpose.msra.mxu0 0
      %1343 = vmatprep.subr.bf16.mxu0 0
      %1344 = vmatpush1.bf16.xpose.msra.mxu0 0
      %1345 = vmatprep.subr.bf16.mxu0 0
      %1346 = vmatpush1.bf16.xpose.msra.mxu0 0
      %1347 = vmatprep.subr.bf16.mxu0 0
      %1348 = vmatpush1.bf16.xpose.msra.mxu0 0
      %1349 = vmatprep.subr.bf16.mxu0 0
      %1350 = vmatpush1.bf16.xpose.msra.mxu0 0
      %1351 = vmatprep.subr.bf16.mxu0 0
      %1352 = vmatpush1.bf16.xpose.msra.mxu0 0
      %1353 = vmatprep.subr.bf16.mxu0 0
      %1354 = vmatpush1.bf16.xpose.msra.mxu0 0
      %1355 = vmatprep.subr.bf16.mxu0 0
      %1356 = vmatpush1.bf16.xpose.msra.mxu0 0
      %1357 = vmatprep.subr.bf16.mxu0 0
      %1358 = vmatpush1.bf16.xpose.msra.mxu0 0
      %1359 = vmatprep.subr.bf16.mxu0 0
      %1360 = vmatpush1.bf16.xpose.msra.mxu0 0
      %1361 = vmatprep.subr.bf16.mxu0 0
      %1362 = vmatpush1.bf16.xpose.msra.mxu0 0
      %1363 = vmatprep.subr.bf16.mxu0 0
      %1364 = vmatpush1.bf16.xpose.msra.mxu0 0
      %1365 = vmatprep.subr.bf16.mxu0 0
      %1366 = vmatpush1.bf16.xpose.msra.mxu0 0
      %1367 = vmatprep.subr.bf16.mxu0 0
      %1368 = vmatpush1.bf16.xpose.msra.mxu0 0
      %1369 = vmatprep.subr.bf16.mxu0 0
      %1370 = vmatpush1.bf16.xpose.msra.mxu0 0
      %1371 = vmatprep.mubr.bf16.mxu0 0
      %1372 = vmatmul.mubr.bf16.gmra.mrb[0].mxu0 %v1334
      %v1373 = vpop.f32.mrb[0].mxu0
      %v1374 = vadd.f32 0.0, %v1373
      %v1375 = vpop.f32.mrb[0].mxu0
      %v1376 = vpop.f32.mrb[0].mxu0
      %v1377 = vpop.f32.mrb[0].mxu0
      %1378 = vdwg.mxu0
      %v1379 = vmul.f32 %v1374, 0.17677669
      %v1380 = vadd.f32 %v1379, %v598
      %v1381 = vsel %vm937, %v1380, -inf
      %1382 = vmax.xlane.f32.xlu0 %v1381
      %v1383 = vpop.xlane.xlu0 %1382
      %v1384 = vsub.f32 %v1380, %v1383
      %v1385 = vmul.f32 %v1384, 1.442695
      %v1386 = vpow.pop %v1385
      %v1387 = vsel %vm937, %v1386, 0.0
      %1388 = vadd.xlane.f32.xlu0 %v1387
      %v1389 = vpop.xlane.xlu0 %1388
      %v1390 = vrcp.pop %v1389
      %v1391 = vmul.f32 %v1386, %v1390
      %v1392 = vpack.c.bf16 %v1391, %v1391
      %1393 = vrot.lane.b32.xlu0 %v950, 32
      %v1394 = vpop.permute.xlu0 %1393
      %v1396 = vsel %vm937, %v1392, 0
      %v1399 = vsel %vm954, %v1394, 0
      %1401 = vmatprep.subr.bf16.mxu0 0
      %1402 = vmatpush1.bf16.msra.mxu0 %v1399
      %1403 = vmatprep.subr.bf16.mxu0 0
      %1404 = vmatpush1.bf16.msra.mxu0 0
      %1405 = vmatprep.subr.bf16.mxu0 0
      %1406 = vmatpush1.bf16.msra.mxu0 0
      %1407 = vmatprep.subr.bf16.mxu0 0
      %1408 = vmatpush1.bf16.msra.mxu0 0
      %1409 = vmatprep.subr.bf16.mxu0 0
      %1410 = vmatpush1.bf16.msra.mxu0 0
      %1411 = vmatprep.subr.bf16.mxu0 0
      %1412 = vmatpush1.bf16.msra.mxu0 0
      %1413 = vmatprep.subr.bf16.mxu0 0
      %1414 = vmatpush1.bf16.msra.mxu0 0
      %1415 = vmatprep.subr.bf16.mxu0 0
      %1416 = vmatpush1.bf16.msra.mxu0 0
      %1417 = vmatprep.subr.bf16.mxu0 0
      %1418 = vmatpush1.bf16.msra.mxu0 0
      %1419 = vmatprep.subr.bf16.mxu0 0
      %1420 = vmatpush1.bf16.msra.mxu0 0
      %1421 = vmatprep.subr.bf16.mxu0 0
      %1422 = vmatpush1.bf16.msra.mxu0 0
      %1423 = vmatprep.subr.bf16.mxu0 0
      %1424 = vmatpush1.bf16.msra.mxu0 0
      %1425 = vmatprep.subr.bf16.mxu0 0
      %1426 = vmatpush1.bf16.msra.mxu0 0
      %1427 = vmatprep.subr.bf16.mxu0 0
      %1428 = vmatpush1.bf16.msra.mxu0 0
      %1429 = vmatprep.subr.bf16.mxu0 0
      %1430 = vmatpush1.bf16.msra.mxu0 0
      %1431 = vmatprep.subr.bf16.mxu0 0
      %1432 = vmatpush1.bf16.msra.mxu0 0
      %1433 = vmatprep.mubr.bf16.mxu0 0
      %1434 = vmatmul.mubr.bf16.gmra.mrb[0].mxu0 %v1396
      %v1435 = vpop.f32.mrb[0].mxu0
      %v1436 = vadd.f32 0.0, %v1435
      %v1437 = vpop.f32.mrb[0].mxu0
      %v1438 = vpop.f32.mrb[0].mxu0
      %v1439 = vpop.f32.mrb[0].mxu0
      %1440 = vdwg.mxu0
      %1442 = vrot.lane.b32.xlu0 %v1142, 32
      %v1443 = vpop.permute.xlu0 %1442
      %1446 = vrot.lane.b32.xlu0 %v1289, 64
      %v1447 = vpop.permute.xlu0 %1446
      %1450 = vrot.lane.b32.xlu0 %v1436, 96
      %v1451 = vpop.permute.xlu0 %1450
      %v1453 = vsel %vm888, %v993, %v1443
      %vm1454 = vcmask 523264
      %v1455 = vsel %vm1454, %v1453, %v1447
      %vm1456 = vcmask 785408
      %v1457 = vsel %vm1456, %v1455, %v1451
      %v1458 = vpack.c.bf16 %v1457, %v1457
      %v1459 = vld [vmem:[%s562] sm:$0xf]
      %v1460 = vld [vmem:[%s562 + $0x4] sm:$0xf]
      %v1461 = vld [vmem:[%s562 + $0x8] sm:$0xf]
      %v1462 = vld [vmem:[%s562 + $0xc] sm:$0xf]
      %v1463 = vld [vmem:[%s562 + $0x10] sm:$0xf]
      %v1464 = vld [vmem:[%s562 + $0x14] sm:$0xf]
      %v1465 = vld [vmem:[%s562 + $0x18] sm:$0xf]
      %v1466 = vld [vmem:[%s562 + $0x1c] sm:$0xf]
      %v1467 = vld [vmem:[%s562 + $0x20] sm:$0xf]
      %v1468 = vld [vmem:[%s562 + $0x24] sm:$0xf]
      %v1469 = vld [vmem:[%s562 + $0x28] sm:$0xf]
      %v1470 = vld [vmem:[%s562 + $0x2c] sm:$0xf]
      %v1471 = vld [vmem:[%s562 + $0x30] sm:$0xf]
      %v1472 = vld [vmem:[%s562 + $0x34] sm:$0xf]
      %v1473 = vld [vmem:[%s562 + $0x38] sm:$0xf]
      %v1474 = vld [vmem:[%s562 + $0x3c] sm:$0xf]
      %v1491 = vunpack.c.l.b16 %v1459
      %v1492 = vunpack.c.l.b16 %v1460
      %v1493 = vunpack.c.l.b16 %v1461
      %v1494 = vunpack.c.l.b16 %v1462
      %v1495 = vunpack.c.l.b16 %v1463
      %v1496 = vunpack.c.l.b16 %v1464
      %v1497 = vunpack.c.l.b16 %v1465
      %v1498 = vunpack.c.l.b16 %v1466
      %v1499 = vunpack.c.l.b16 %v1467
      %v1500 = vunpack.c.l.b16 %v1468
      %v1501 = vunpack.c.l.b16 %v1469
      %v1502 = vunpack.c.l.b16 %v1470
      %v1503 = vunpack.c.l.b16 %v1471
      %v1504 = vunpack.c.l.b16 %v1472
      %v1505 = vunpack.c.l.b16 %v1473
      %v1506 = vunpack.c.l.b16 %v1474
      %v1507 = vpack.c.b16 %v1492, %v1491
      %v1508 = vpack.c.b16 %v1494, %v1493
      %v1509 = vpack.c.b16 %v1496, %v1495
      %v1510 = vpack.c.b16 %v1498, %v1497
      %v1511 = vpack.c.b16 %v1500, %v1499
      %v1512 = vpack.c.b16 %v1502, %v1501
      %v1513 = vpack.c.b16 %v1504, %v1503
      %v1514 = vpack.c.b16 %v1506, %v1505
      %1523 = vmatprep.subr.bf16.mxu0 0
      %1524 = vmatpush1.bf16.msra.mxu0 %v1507
      %1525 = vmatprep.subr.bf16.mxu0 0
      %1526 = vmatpush1.bf16.msra.mxu0 %v1508
      %1527 = vmatprep.subr.bf16.mxu0 0
      %1528 = vmatpush1.bf16.msra.mxu0 %v1509
      %1529 = vmatprep.subr.bf16.mxu0 0
      %1530 = vmatpush1.bf16.msra.mxu0 %v1510
      %1531 = vmatprep.subr.bf16.mxu0 0
      %1532 = vmatpush1.bf16.msra.mxu0 %v1511
      %1533 = vmatprep.subr.bf16.mxu0 0
      %1534 = vmatpush1.bf16.msra.mxu0 %v1512
      %1535 = vmatprep.subr.bf16.mxu0 0
      %1536 = vmatpush1.bf16.msra.mxu0 %v1513
      %1537 = vmatprep.subr.bf16.mxu0 0
      %1538 = vmatpush1.bf16.msra.mxu0 %v1514
      %1539 = vmatprep.subr.bf16.mxu0 0
      %1540 = vmatpush1.bf16.msra.mxu0 0
      %1541 = vmatprep.subr.bf16.mxu0 0
      %1542 = vmatpush1.bf16.msra.mxu0 0
      %1543 = vmatprep.subr.bf16.mxu0 0
      %1544 = vmatpush1.bf16.msra.mxu0 0
      %1545 = vmatprep.subr.bf16.mxu0 0
      %1546 = vmatpush1.bf16.msra.mxu0 0
      %1547 = vmatprep.subr.bf16.mxu0 0
      %1548 = vmatpush1.bf16.msra.mxu0 0
      %1549 = vmatprep.subr.bf16.mxu0 0
      %1550 = vmatpush1.bf16.msra.mxu0 0
      %1551 = vmatprep.subr.bf16.mxu0 0
      %1552 = vmatpush1.bf16.msra.mxu0 0
      %1553 = vmatprep.subr.bf16.mxu0 0
      %1554 = vmatpush1.bf16.msra.mxu0 0
      %1555 = vmatprep.mubr.bf16.mxu0 0
      %1556 = vmatmul.mubr.bf16.gmra.mrb[0].mxu0 %v1458
      %v1557 = vpop.f32.mrb[0].mxu0
      %v1558 = vadd.f32 0.0, %v1557
      %v1559 = vpop.f32.mrb[0].mxu0
      %v1560 = vpop.f32.mrb[0].mxu0
      %v1561 = vpop.f32.mrb[0].mxu0
      %1562 = vdwg.mxu0
      %v1563 = vadd.f32 %v592, %v1558
      %v1564 = vld [vmem:[%s565] sm:$0x1]
      %v1565 = vmul.f32 %v1563, %v1563
      %1566 = vadd.xlane.f32.xlu0 %v1565
      %v1567 = vpop.xlane.xlu0 %1566
      %v1568 = vmul.f32 %v1567, %v605
      %v1569 = vadd.f32 %v1568, 1e-05
      %v1570 = vrsqrt.pop %v1569
      %v1571 = vmul.f32 %v1563, %v1570
      %v1573 = vlaneseq
      %v1574 = vshrl.u32 %v1573, 7
      %v1575 = vsub.s32 0, %v1574
      %v1576 = vrot.slane %v1564, %v1575
      %v1578 = vmul.f32 %v1571, %v1576
      %v1579 = vpack.c.bf16 %v1578, %v1578
      %v1580 = vld [vmem:[%s570] sm:$0xff]
      %v1581 = vld [vmem:[%s570 + $0x8] sm:$0xff]
      %v1582 = vld [vmem:[%s570 + $0x10] sm:$0xff]
      %v1583 = vld [vmem:[%s570 + $0x18] sm:$0xff]
      %v1584 = vld [vmem:[%s570 + $0x20] sm:$0xff]
      %v1585 = vld [vmem:[%s570 + $0x28] sm:$0xff]
      %v1586 = vld [vmem:[%s570 + $0x30] sm:$0xff]
      %v1587 = vld [vmem:[%s570 + $0x38] sm:$0xff]
      %v1588 = vld [vmem:[%s570 + $0x40] sm:$0xff]
      %v1589 = vld [vmem:[%s570 + $0x48] sm:$0xff]
      %v1590 = vld [vmem:[%s570 + $0x50] sm:$0xff]
      %v1591 = vld [vmem:[%s570 + $0x58] sm:$0xff]
      %v1592 = vld [vmem:[%s570 + $0x60] sm:$0xff]
      %v1593 = vld [vmem:[%s570 + $0x68] sm:$0xff]
      %v1594 = vld [vmem:[%s570 + $0x70] sm:$0xff]
      %v1595 = vld [vmem:[%s570 + $0x78] sm:$0xff]
      %v1596 = vld [vmem:[%s570 + $0x80] sm:$0xff]
      %v1597 = vld [vmem:[%s570 + $0x88] sm:$0xff]
      %v1598 = vld [vmem:[%s570 + $0x90] sm:$0xff]
      %v1599 = vld [vmem:[%s570 + $0x98] sm:$0xff]
      %v1600 = vld [vmem:[%s570 + $0xa0] sm:$0xff]
      %v1601 = vld [vmem:[%s570 + $0xa8] sm:$0xff]
      %v1602 = vld [vmem:[%s570 + $0xb0] sm:$0xff]
      %v1603 = vld [vmem:[%s570 + $0xb8] sm:$0xff]
      %v1604 = vld [vmem:[%s570 + $0xc0] sm:$0xff]
      %v1605 = vld [vmem:[%s570 + $0xc8] sm:$0xff]
      %v1606 = vld [vmem:[%s570 + $0xd0] sm:$0xff]
      %v1607 = vld [vmem:[%s570 + $0xd8] sm:$0xff]
      %v1608 = vld [vmem:[%s570 + $0xe0] sm:$0xff]
      %v1609 = vld [vmem:[%s570 + $0xe8] sm:$0xff]
      %v1610 = vld [vmem:[%s570 + $0xf0] sm:$0xff]
      %v1611 = vld [vmem:[%s570 + $0xf8] sm:$0xff]
      %v1644 = vunpack.c.l.b16 %v1580
      %v1645 = vunpack.c.h.b16 %v1580
      %v1646 = vunpack.c.l.b16 %v1581
      %v1647 = vunpack.c.h.b16 %v1581
      %v1648 = vunpack.c.l.b16 %v1582
      %v1649 = vunpack.c.h.b16 %v1582
      %v1650 = vunpack.c.l.b16 %v1583
      %v1651 = vunpack.c.h.b16 %v1583
      %v1652 = vunpack.c.l.b16 %v1584
      %v1653 = vunpack.c.h.b16 %v1584
      %v1654 = vunpack.c.l.b16 %v1585
      %v1655 = vunpack.c.h.b16 %v1585
      %v1656 = vunpack.c.l.b16 %v1586
      %v1657 = vunpack.c.h.b16 %v1586
      %v1658 = vunpack.c.l.b16 %v1587
      %v1659 = vunpack.c.h.b16 %v1587
      %v1660 = vunpack.c.l.b16 %v1588
      %v1661 = vunpack.c.h.b16 %v1588
      %v1662 = vunpack.c.l.b16 %v1589
      %v1663 = vunpack.c.h.b16 %v1589
      %v1664 = vunpack.c.l.b16 %v1590
      %v1665 = vunpack.c.h.b16 %v1590
      %v1666 = vunpack.c.l.b16 %v1591
      %v1667 = vunpack.c.h.b16 %v1591
      %v1668 = vunpack.c.l.b16 %v1592
      %v1669 = vunpack.c.h.b16 %v1592
      %v1670 = vunpack.c.l.b16 %v1593
      %v1671 = vunpack.c.h.b16 %v1593
      %v1672 = vunpack.c.l.b16 %v1594
      %v1673 = vunpack.c.h.b16 %v1594
      %v1674 = vunpack.c.l.b16 %v1595
      %v1675 = vunpack.c.h.b16 %v1595
      %v1676 = vunpack.c.l.b16 %v1596
      %v1677 = vunpack.c.h.b16 %v1596
      %v1678 = vunpack.c.l.b16 %v1597
      %v1679 = vunpack.c.h.b16 %v1597
      %v1680 = vunpack.c.l.b16 %v1598
      %v1681 = vunpack.c.h.b16 %v1598
      %v1682 = vunpack.c.l.b16 %v1599
      %v1683 = vunpack.c.h.b16 %v1599
      %v1684 = vunpack.c.l.b16 %v1600
      %v1685 = vunpack.c.h.b16 %v1600
      %v1686 = vunpack.c.l.b16 %v1601
      %v1687 = vunpack.c.h.b16 %v1601
      %v1688 = vunpack.c.l.b16 %v1602
      %v1689 = vunpack.c.h.b16 %v1602
      %v1690 = vunpack.c.l.b16 %v1603
      %v1691 = vunpack.c.h.b16 %v1603
      %v1692 = vunpack.c.l.b16 %v1604
      %v1693 = vunpack.c.h.b16 %v1604
      %v1694 = vunpack.c.l.b16 %v1605
      %v1695 = vunpack.c.h.b16 %v1605
      %v1696 = vunpack.c.l.b16 %v1606
      %v1697 = vunpack.c.h.b16 %v1606
      %v1698 = vunpack.c.l.b16 %v1607
      %v1699 = vunpack.c.h.b16 %v1607
      %v1700 = vunpack.c.l.b16 %v1608
      %v1701 = vunpack.c.h.b16 %v1608
      %v1702 = vunpack.c.l.b16 %v1609
      %v1703 = vunpack.c.h.b16 %v1609
      %v1704 = vunpack.c.l.b16 %v1610
      %v1705 = vunpack.c.h.b16 %v1610
      %v1706 = vunpack.c.l.b16 %v1611
      %v1707 = vunpack.c.h.b16 %v1611
      %v1708 = vpack.c.b16 %v1648, %v1644
      %v1709 = vpack.c.b16 %v1649, %v1645
      %v1710 = vpack.c.b16 %v1650, %v1646
      %v1711 = vpack.c.b16 %v1651, %v1647
      %v1712 = vpack.c.b16 %v1656, %v1652
      %v1713 = vpack.c.b16 %v1657, %v1653
      %v1714 = vpack.c.b16 %v1658, %v1654
      %v1715 = vpack.c.b16 %v1659, %v1655
      %v1716 = vpack.c.b16 %v1664, %v1660
      %v1717 = vpack.c.b16 %v1665, %v1661
      %v1718 = vpack.c.b16 %v1666, %v1662
      %v1719 = vpack.c.b16 %v1667, %v1663
      %v1720 = vpack.c.b16 %v1672, %v1668
      %v1721 = vpack.c.b16 %v1673, %v1669
      %v1722 = vpack.c.b16 %v1674, %v1670
      %v1723 = vpack.c.b16 %v1675, %v1671
      %v1724 = vpack.c.b16 %v1680, %v1676
      %v1725 = vpack.c.b16 %v1681, %v1677
      %v1726 = vpack.c.b16 %v1682, %v1678
      %v1727 = vpack.c.b16 %v1683, %v1679
      %v1728 = vpack.c.b16 %v1688, %v1684
      %v1729 = vpack.c.b16 %v1689, %v1685
      %v1730 = vpack.c.b16 %v1690, %v1686
      %v1731 = vpack.c.b16 %v1691, %v1687
      %v1732 = vpack.c.b16 %v1696, %v1692
      %v1733 = vpack.c.b16 %v1697, %v1693
      %v1734 = vpack.c.b16 %v1698, %v1694
      %v1735 = vpack.c.b16 %v1699, %v1695
      %v1736 = vpack.c.b16 %v1704, %v1700
      %v1737 = vpack.c.b16 %v1705, %v1701
      %v1738 = vpack.c.b16 %v1706, %v1702
      %v1739 = vpack.c.b16 %v1707, %v1703
      %1772 = vmatprep.subr.bf16.mxu0 %v1709
      %1773 = vmatpush1.bf16.msra.mxu0 %v1708
      %1774 = vmatprep.subr.bf16.mxu0 %v1713
      %1775 = vmatpush1.bf16.msra.mxu0 %v1712
      %1776 = vmatprep.subr.bf16.mxu0 %v1717
      %1777 = vmatpush1.bf16.msra.mxu0 %v1716
      %1778 = vmatprep.subr.bf16.mxu0 %v1721
      %1779 = vmatpush1.bf16.msra.mxu0 %v1720
      %1780 = vmatprep.subr.bf16.mxu0 %v1725
      %1781 = vmatpush1.bf16.msra.mxu0 %v1724
      %1782 = vmatprep.subr.bf16.mxu0 %v1729
      %1783 = vmatpush1.bf16.msra.mxu0 %v1728
      %1784 = vmatprep.subr.bf16.mxu0 %v1733
      %1785 = vmatpush1.bf16.msra.mxu0 %v1732
      %1786 = vmatprep.subr.bf16.mxu0 %v1737
      %1787 = vmatpush1.bf16.msra.mxu0 %v1736
      %1788 = vmatprep.subr.bf16.mxu0 0
      %1789 = vmatpush1.bf16.msra.mxu0 0
      %1790 = vmatprep.subr.bf16.mxu0 0
      %1791 = vmatpush1.bf16.msra.mxu0 0
      %1792 = vmatprep.subr.bf16.mxu0 0
      %1793 = vmatpush1.bf16.msra.mxu0 0
      %1794 = vmatprep.subr.bf16.mxu0 0
      %1795 = vmatpush1.bf16.msra.mxu0 0
      %1796 = vmatprep.subr.bf16.mxu0 0
      %1797 = vmatpush1.bf16.msra.mxu0 0
      %1798 = vmatprep.subr.bf16.mxu0 0
      %1799 = vmatpush1.bf16.msra.mxu0 0
      %1800 = vmatprep.subr.bf16.mxu0 0
      %1801 = vmatpush1.bf16.msra.mxu0 0
      %1802 = vmatprep.subr.bf16.mxu0 0
      %1803 = vmatpush1.bf16.msra.mxu0 0
      %1804 = vmatprep.mubr.bf16.mxu0 0
      %1805 = vmatmul.mubr.bf16.gmra.mrb[0].mxu0 %v1579
      %v1806 = vpop.f32.mrb[0].mxu0
      %v1807 = vadd.f32 0.0, %v1806
      %v1808 = vpop.f32.mrb[0].mxu0
      %v1809 = vadd.f32 0.0, %v1808
      %v1810 = vpop.f32.mrb[0].mxu0
      %v1811 = vpop.f32.mrb[0].mxu0
      %1812 = vdwg.mxu0
      %1813 = vmatprep.subr.bf16.mxu0 %v1711
      %1814 = vmatpush1.bf16.msra.mxu0 %v1710
      %1815 = vmatprep.subr.bf16.mxu0 %v1715
      %1816 = vmatpush1.bf16.msra.mxu0 %v1714
      %1817 = vmatprep.subr.bf16.mxu0 %v1719
      %1818 = vmatpush1.bf16.msra.mxu0 %v1718
      %1819 = vmatprep.subr.bf16.mxu0 %v1723
      %1820 = vmatpush1.bf16.msra.mxu0 %v1722
      %1821 = vmatprep.subr.bf16.mxu0 %v1727
      %1822 = vmatpush1.bf16.msra.mxu0 %v1726
      %1823 = vmatprep.subr.bf16.mxu0 %v1731
      %1824 = vmatpush1.bf16.msra.mxu0 %v1730
      %1825 = vmatprep.subr.bf16.mxu0 %v1735
      %1826 = vmatpush1.bf16.msra.mxu0 %v1734
      %1827 = vmatprep.subr.bf16.mxu0 %v1739
      %1828 = vmatpush1.bf16.msra.mxu0 %v1738
      %1829 = vmatprep.subr.bf16.mxu0 0
      %1830 = vmatpush1.bf16.msra.mxu0 0
      %1831 = vmatprep.subr.bf16.mxu0 0
      %1832 = vmatpush1.bf16.msra.mxu0 0
      %1833 = vmatprep.subr.bf16.mxu0 0
      %1834 = vmatpush1.bf16.msra.mxu0 0
      %1835 = vmatprep.subr.bf16.mxu0 0
      %1836 = vmatpush1.bf16.msra.mxu0 0
      %1837 = vmatprep.subr.bf16.mxu0 0
      %1838 = vmatpush1.bf16.msra.mxu0 0
      %1839 = vmatprep.subr.bf16.mxu0 0
      %1840 = vmatpush1.bf16.msra.mxu0 0
      %1841 = vmatprep.subr.bf16.mxu0 0
      %1842 = vmatpush1.bf16.msra.mxu0 0
      %1843 = vmatprep.subr.bf16.mxu0 0
      %1844 = vmatpush1.bf16.msra.mxu0 0
      %1845 = vmatprep.mubr.bf16.mxu0 0
      %1846 = vmatmul.mubr.bf16.gmra.mrb[0].mxu0 %v1579
      %v1847 = vpop.f32.mrb[0].mxu0
      %v1848 = vadd.f32 0.0, %v1847
      %v1849 = vpop.f32.mrb[0].mxu0
      %v1850 = vadd.f32 0.0, %v1849
      %v1851 = vpop.f32.mrb[0].mxu0
      %v1852 = vpop.f32.mrb[0].mxu0
      %1853 = vdwg.mxu0
      %v1854 = vxor.u32 %v1807, 2147483648
      %v1855 = vxor.u32 %v1809, 2147483648
      %v1856 = vmul.f32 %v1854, 1.442695
      %v1857 = vpow.pop %v1856
      %v1858 = vmul.f32 %v1855, 1.442695
      %v1859 = vpow.pop %v1858
      %v1860 = vadd.f32 %v1857, 1.0
      %v1861 = vadd.f32 %v1859, 1.0
      %v1862 = vrcp.pop %v1860
      %v1863 = vmul.f32 1.0, %v1862
      %v1864 = vrcp.pop %v1861
      %v1865 = vmul.f32 1.0, %v1864
      %v1866 = vmul.f32 %v1807, %v1863
      %v1867 = vmul.f32 %v1809, %v1865
      %v1868 = vmul.f32 %v1866, %v1848
      %v1869 = vmul.f32 %v1867, %v1850
      %v1870 = vpack.c.bf16 %v1868, %v1868
      %v1871 = vpack.c.bf16 %v1869, %v1869
      %v1872 = vld [vmem:[%s575] sm:$0xf]
      %v1873 = vld [vmem:[%s575 + $0x4] sm:$0xf]
      %v1874 = vld [vmem:[%s575 + $0x8] sm:$0xf]
      %v1875 = vld [vmem:[%s575 + $0xc] sm:$0xf]
      %v1876 = vld [vmem:[%s575 + $0x10] sm:$0xf]
      %v1877 = vld [vmem:[%s575 + $0x14] sm:$0xf]
      %v1878 = vld [vmem:[%s575 + $0x18] sm:$0xf]
      %v1879 = vld [vmem:[%s575 + $0x1c] sm:$0xf]
      %v1880 = vld [vmem:[%s575 + $0x20] sm:$0xf]
      %v1881 = vld [vmem:[%s575 + $0x24] sm:$0xf]
      %v1882 = vld [vmem:[%s575 + $0x28] sm:$0xf]
      %v1883 = vld [vmem:[%s575 + $0x2c] sm:$0xf]
      %v1884 = vld [vmem:[%s575 + $0x30] sm:$0xf]
      %v1885 = vld [vmem:[%s575 + $0x34] sm:$0xf]
      %v1886 = vld [vmem:[%s575 + $0x38] sm:$0xf]
      %v1887 = vld [vmem:[%s575 + $0x3c] sm:$0xf]
      %v1888 = vld [vmem:[%s575 + $0x40] sm:$0xf]
      %v1889 = vld [vmem:[%s575 + $0x44] sm:$0xf]
      %v1890 = vld [vmem:[%s575 + $0x48] sm:$0xf]
      %v1891 = vld [vmem:[%s575 + $0x4c] sm:$0xf]
      %v1892 = vld [vmem:[%s575 + $0x50] sm:$0xf]
      %v1893 = vld [vmem:[%s575 + $0x54] sm:$0xf]
      %v1894 = vld [vmem:[%s575 + $0x58] sm:$0xf]
      %v1895 = vld [vmem:[%s575 + $0x5c] sm:$0xf]
      %v1896 = vld [vmem:[%s575 + $0x60] sm:$0xf]
      %v1897 = vld [vmem:[%s575 + $0x64] sm:$0xf]
      %v1898 = vld [vmem:[%s575 + $0x68] sm:$0xf]
      %v1899 = vld [vmem:[%s575 + $0x6c] sm:$0xf]
      %v1900 = vld [vmem:[%s575 + $0x70] sm:$0xf]
      %v1901 = vld [vmem:[%s575 + $0x74] sm:$0xf]
      %v1902 = vld [vmem:[%s575 + $0x78] sm:$0xf]
      %v1903 = vld [vmem:[%s575 + $0x7c] sm:$0xf]
      %v1936 = vunpack.c.l.b16 %v1872
      %v1937 = vunpack.c.l.b16 %v1873
      %v1938 = vunpack.c.l.b16 %v1874
      %v1939 = vunpack.c.l.b16 %v1875
      %v1940 = vunpack.c.l.b16 %v1876
      %v1941 = vunpack.c.l.b16 %v1877
      %v1942 = vunpack.c.l.b16 %v1878
      %v1943 = vunpack.c.l.b16 %v1879
      %v1944 = vunpack.c.l.b16 %v1880
      %v1945 = vunpack.c.l.b16 %v1881
      %v1946 = vunpack.c.l.b16 %v1882
      %v1947 = vunpack.c.l.b16 %v1883
      %v1948 = vunpack.c.l.b16 %v1884
      %v1949 = vunpack.c.l.b16 %v1885
      %v1950 = vunpack.c.l.b16 %v1886
      %v1951 = vunpack.c.l.b16 %v1887
      %v1952 = vunpack.c.l.b16 %v1888
      %v1953 = vunpack.c.l.b16 %v1889
      %v1954 = vunpack.c.l.b16 %v1890
      %v1955 = vunpack.c.l.b16 %v1891
      %v1956 = vunpack.c.l.b16 %v1892
      %v1957 = vunpack.c.l.b16 %v1893
      %v1958 = vunpack.c.l.b16 %v1894
      %v1959 = vunpack.c.l.b16 %v1895
      %v1960 = vunpack.c.l.b16 %v1896
      %v1961 = vunpack.c.l.b16 %v1897
      %v1962 = vunpack.c.l.b16 %v1898
      %v1963 = vunpack.c.l.b16 %v1899
      %v1964 = vunpack.c.l.b16 %v1900
      %v1965 = vunpack.c.l.b16 %v1901
      %v1966 = vunpack.c.l.b16 %v1902
      %v1967 = vunpack.c.l.b16 %v1903
      %v1968 = vpack.c.b16 %v1937, %v1936
      %v1969 = vpack.c.b16 %v1939, %v1938
      %v1970 = vpack.c.b16 %v1941, %v1940
      %v1971 = vpack.c.b16 %v1943, %v1942
      %v1972 = vpack.c.b16 %v1945, %v1944
      %v1973 = vpack.c.b16 %v1947, %v1946
      %v1974 = vpack.c.b16 %v1949, %v1948
      %v1975 = vpack.c.b16 %v1951, %v1950
      %v1976 = vpack.c.b16 %v1953, %v1952
      %v1977 = vpack.c.b16 %v1955, %v1954
      %v1978 = vpack.c.b16 %v1957, %v1956
      %v1979 = vpack.c.b16 %v1959, %v1958
      %v1980 = vpack.c.b16 %v1961, %v1960
      %v1981 = vpack.c.b16 %v1963, %v1962
      %v1982 = vpack.c.b16 %v1965, %v1964
      %v1983 = vpack.c.b16 %v1967, %v1966
      %2000 = vmatprep.subr.bf16.mxu0 0
      %2001 = vmatpush1.bf16.msra.mxu0 %v1968
      %2002 = vmatprep.subr.bf16.mxu0 0
      %2003 = vmatpush1.bf16.msra.mxu0 %v1969
      %2004 = vmatprep.subr.bf16.mxu0 0
      %2005 = vmatpush1.bf16.msra.mxu0 %v1970
      %2006 = vmatprep.subr.bf16.mxu0 0
      %2007 = vmatpush1.bf16.msra.mxu0 %v1971
      %2008 = vmatprep.subr.bf16.mxu0 0
      %2009 = vmatpush1.bf16.msra.mxu0 %v1972
      %2010 = vmatprep.subr.bf16.mxu0 0
      %2011 = vmatpush1.bf16.msra.mxu0 %v1973
      %2012 = vmatprep.subr.bf16.mxu0 0
      %2013 = vmatpush1.bf16.msra.mxu0 %v1974
      %2014 = vmatprep.subr.bf16.mxu0 0
      %2015 = vmatpush1.bf16.msra.mxu0 %v1975
      %2016 = vmatprep.subr.bf16.mxu0 0
      %2017 = vmatpush1.bf16.msra.mxu0 %v1976
      %2018 = vmatprep.subr.bf16.mxu0 0
      %2019 = vmatpush1.bf16.msra.mxu0 %v1977
      %2020 = vmatprep.subr.bf16.mxu0 0
      %2021 = vmatpush1.bf16.msra.mxu0 %v1978
      %2022 = vmatprep.subr.bf16.mxu0 0
      %2023 = vmatpush1.bf16.msra.mxu0 %v1979
      %2024 = vmatprep.subr.bf16.mxu0 0
      %2025 = vmatpush1.bf16.msra.mxu0 %v1980
      %2026 = vmatprep.subr.bf16.mxu0 0
      %2027 = vmatpush1.bf16.msra.mxu0 %v1981
      %2028 = vmatprep.subr.bf16.mxu0 0
      %2029 = vmatpush1.bf16.msra.mxu0 %v1982
      %2030 = vmatprep.subr.bf16.mxu0 0
      %2031 = vmatpush1.bf16.msra.mxu0 %v1983
      %2032 = vmatprep.mubr.bf16.mxu0 %v1871
      %2033 = vmatmul.mubr.bf16.gmra.mrb[0].mxu0 %v1870
      %v2034 = vpop.f32.mrb[0].mxu0
      %v2035 = vadd.f32 0.0, %v2034
      %v2036 = vpop.f32.mrb[0].mxu0
      %v2037 = vpop.f32.mrb[0].mxu0
      %v2038 = vpop.f32.mrb[0].mxu0
      %2039 = vdwg.mxu0
      %v2040 = vadd.f32 %v1563, %v2035
      %2041 = vst [vmem:[#allocation2] sm:$0xff] %v2040
      %p2042 = scmp.eq.s32.totalorder %s30, 1
      // Predicated region
      $region73: #{vision_to_llama_forward.3} parent=67 // pred_check
        %p2043 = pneg %p2042
      $region74: #{vision_to_llama_forward.3} parent=67 // pred_check_branch
        %2045 = sbr.rel (%p2043) target = $region76
      $region75: #{vision_to_llama_forward.3} parent=67 // pred_region
        %v2046 = vld [vmem:[%s10] sm:$0x1]
        %v2047 = vmul.f32 %v2040, %v2040
        %2048 = vadd.xlane.f32.xlu0 %v2047
        %v2049 = vpop.xlane.xlu0 %2048
        %v2050 = vmul.f32 %v2049, %v605
        %v2051 = vadd.f32 %v2050, 1e-05
        %v2052 = vrsqrt.pop %v2051
        %v2053 = vmul.f32 %v2040, %v2052
        %v2055 = vlaneseq
        %v2056 = vshrl.u32 %v2055, 7
        %v2057 = vsub.s32 0, %v2056
        %v2058 = vrot.slane %v2046, %v2057
        %v2060 = vmul.f32 %v2053, %v2058
        %v2061 = vpack.c.bf16 %v2060, %v2060
        %v2062 = vld [vmem:[%s11] sm:$0xff]
        %v2063 = vld [vmem:[%s11 + $0x8] sm:$0xff]
        %v2064 = vld [vmem:[%s11 + $0x10] sm:$0xff]
        %v2065 = vld [vmem:[%s11 + $0x18] sm:$0xff]
        %v2066 = vld [vmem:[%s11 + $0x20] sm:$0xff]
        %v2067 = vld [vmem:[%s11 + $0x28] sm:$0xff]
        %v2068 = vld [vmem:[%s11 + $0x30] sm:$0xff]
        %v2069 = vld [vmem:[%s11 + $0x38] sm:$0xff]
        %v2070 = vld [vmem:[%s11 + $0x40] sm:$0xff]
        %v2071 = vld [vmem:[%s11 + $0x48] sm:$0xff]
        %v2072 = vld [vmem:[%s11 + $0x50] sm:$0xff]
        %v2073 = vld [vmem:[%s11 + $0x58] sm:$0xff]
        %v2074 = vld [vmem:[%s11 + $0x60] sm:$0xff]
        %v2075 = vld [vmem:[%s11 + $0x68] sm:$0xff]
        %v2076 = vld [vmem:[%s11 + $0x70] sm:$0xff]
        %v2077 = vld [vmem:[%s11 + $0x78] sm:$0xff]
        %v2094 = vunpack.c.l.b16 %v2062
        %v2095 = vunpack.c.h.b16 %v2062
        %v2096 = vunpack.c.l.b16 %v2063
        %v2097 = vunpack.c.h.b16 %v2063
        %v2098 = vunpack.c.l.b16 %v2064
        %v2099 = vunpack.c.h.b16 %v2064
        %v2100 = vunpack.c.l.b16 %v2065
        %v2101 = vunpack.c.h.b16 %v2065
        %v2102 = vunpack.c.l.b16 %v2066
        %v2103 = vunpack.c.h.b16 %v2066
        %v2104 = vunpack.c.l.b16 %v2067
        %v2105 = vunpack.c.h.b16 %v2067
        %v2106 = vunpack.c.l.b16 %v2068
        %v2107 = vunpack.c.h.b16 %v2068
        %v2108 = vunpack.c.l.b16 %v2069
        %v2109 = vunpack.c.h.b16 %v2069
        %v2110 = vunpack.c.l.b16 %v2070
        %v2111 = vunpack.c.h.b16 %v2070
        %v2112 = vunpack.c.l.b16 %v2071
        %v2113 = vunpack.c.h.b16 %v2071
        %v2114 = vunpack.c.l.b16 %v2072
        %v2115 = vunpack.c.h.b16 %v2072
        %v2116 = vunpack.c.l.b16 %v2073
        %v2117 = vunpack.c.h.b16 %v2073
        %v2118 = vunpack.c.l.b16 %v2074
        %v2119 = vunpack.c.h.b16 %v2074
        %v2120 = vunpack.c.l.b16 %v2075
        %v2121 = vunpack.c.h.b16 %v2075
        %v2122 = vunpack.c.l.b16 %v2076
        %v2123 = vunpack.c.h.b16 %v2076
        %v2124 = vunpack.c.l.b16 %v2077
        %v2125 = vunpack.c.h.b16 %v2077
        %v2126 = vpack.c.b16 %v2096, %v2094
        %v2127 = vpack.c.b16 %v2097, %v2095
        %v2128 = vpack.c.b16 %v2100, %v2098
        %v2129 = vpack.c.b16 %v2101, %v2099
        %v2130 = vpack.c.b16 %v2104, %v2102
        %v2131 = vpack.c.b16 %v2105, %v2103
        %v2132 = vpack.c.b16 %v2108, %v2106
        %v2133 = vpack.c.b16 %v2109, %v2107
        %v2134 = vpack.c.b16 %v2112, %v2110
        %v2135 = vpack.c.b16 %v2113, %v2111
        %v2136 = vpack.c.b16 %v2116, %v2114
        %v2137 = vpack.c.b16 %v2117, %v2115
        %v2138 = vpack.c.b16 %v2120, %v2118
        %v2139 = vpack.c.b16 %v2121, %v2119
        %v2140 = vpack.c.b16 %v2124, %v2122
        %v2141 = vpack.c.b16 %v2125, %v2123
        %2158 = vmatprep.subr.bf16.mxu0 %v2127
        %2159 = vmatpush1.bf16.msra.mxu0 %v2126
        %2160 = vmatprep.subr.bf16.mxu0 %v2129
        %2161 = vmatpush1.bf16.msra.mxu0 %v2128
        %2162 = vmatprep.subr.bf16.mxu0 %v2131
        %2163 = vmatpush1.bf16.msra.mxu0 %v2130
        %2164 = vmatprep.subr.bf16.mxu0 %v2133
        %2165 = vmatpush1.bf16.msra.mxu0 %v2132
        %2166 = vmatprep.subr.bf16.mxu0 %v2135
        %2167 = vmatpush1.bf16.msra.mxu0 %v2134
        %2168 = vmatprep.subr.bf16.mxu0 %v2137
        %2169 = vmatpush1.bf16.msra.mxu0 %v2136
        %2170 = vmatprep.subr.bf16.mxu0 %v2139
        %2171 = vmatpush1.bf16.msra.mxu0 %v2138
        %2172 = vmatprep.subr.bf16.mxu0 %v2141
        %2173 = vmatpush1.bf16.msra.mxu0 %v2140
        %2174 = vmatprep.subr.bf16.mxu0 0
        %2175 = vmatpush1.bf16.msra.mxu0 0
        %2176 = vmatprep.subr.bf16.mxu0 0
        %2177 = vmatpush1.bf16.msra.mxu0 0
        %2178 = vmatprep.subr.bf16.mxu0 0
        %2179 = vmatpush1.bf16.msra.mxu0 0
        %2180 = vmatprep.subr.bf16.mxu0 0
        %2181 = vmatpush1.bf16.msra.mxu0 0
        %2182 = vmatprep.subr.bf16.mxu0 0
        %2183 = vmatpush1.bf16.msra.mxu0 0
        %2184 = vmatprep.subr.bf16.mxu0 0
        %2185 = vmatpush1.bf16.msra.mxu0 0
        %2186 = vmatprep.subr.bf16.mxu0 0
        %2187 = vmatpush1.bf16.msra.mxu0 0
        %2188 = vmatprep.subr.bf16.mxu0 0
        %2189 = vmatpush1.bf16.msra.mxu0 0
        %2190 = vmatprep.mubr.bf16.mxu0 0
        %2191 = vmatmul.mubr.bf16.gmra.mrb[0].mxu0 %v2061
        %v2192 = vpop.f32.mrb[0].mxu0
        %v2193 = vadd.f32 0.0, %v2192
        %v2194 = vpop.f32.mrb[0].mxu0
        %v2195 = vadd.f32 0.0, %v2194
        %v2196 = vpop.f32.mrb[0].mxu0
        %v2197 = vpop.f32.mrb[0].mxu0
        %2198 = vdwg.mxu0
        %v2199 = vmax.f32 %v2193, %v2195
        %2200 = vmax.xlane.f32.xlu0 %v2199
        %v2201 = vpop.xlane.xlu0 %2200
        %v2202 = vsub.f32 %v2193, %v2201
        %v2203 = vsub.f32 %v2195, %v2201
        %v2204 = vmul.f32 %v2202, 1.442695
        %v2205 = vpow.pop %v2204
        %v2206 = vmul.f32 %v2203, 1.442695
        %v2207 = vpow.pop %v2206
        %v2208 = vadd.f32 %v2205, %v2207
        %2209 = vadd.xlane.f32.xlu0 %v2208
        %v2210 = vpop.xlane.xlu0 %2209
        %v2211 = vlog2.pop %v2210
        %v2212 = vmul.f32 %v2211, 0.6931472
        %v2213 = vadd.f32 %v2212, %v2201
        %v2214 = vld [vmem:[%s549] sm:$0xff]
        %v2215 = vadd.s32 %v596, 128
        %2216 = vset.pattern.permute.xlu0 0
        %2217 = vperm.xlu0 %2216, %v2214
        %v2218 = vpop.permute.xlu0 %2217
        %vm2219 = vcmp.eq.s32.totalorder %v596, %v2218
        %vm2220 = vcmp.eq.s32.totalorder %v2215, %v2218
        %v2221 = vsel %vm2219, %v2193, 0.0
        %v2222 = vsel %vm2220, %v2195, 0.0
        %v2223 = vadd.f32 %v2221, %v2222
        %2224 = vadd.xlane.f32.xlu0 %v2223
        %v2225 = vpop.xlane.xlu0 %2224
        %vm2226 = vcmp.ge.s32.totalorder %v2214, 0
        %v2227 = vsel %vm2226, 1, 0
        %v2228 = vcvt.s32.f32 %v2227
        %v2229 = vsub.f32 %v2213, %v2225
        %v2230 = vmul.f32 %v2229, %v2228
        %vm2231 = vcmask 7168
        %v2232 = vsel %vm2231, %v2230, 0.0
        %2233 = vadd.xlane.f32.xlu0 %v2232
        %v2234 = vpop.xlane.xlu0 %2233
        %v2235 = vrot.slane %v2234, 4
        %v2236 = vadd.f32 %v2234, %v2235
        %v2237 = vrot.slane %v2236, 2
        %v2238 = vadd.f32 %v2236, %v2237
        %v2239 = vrot.slane %v2238, 1
        %v2240 = vadd.f32 %v2238, %v2239
        %s2241 = vtos %v2240
        %v2242 = vsel %vm2231, %v2228, 0.0
        %2243 = vadd.xlane.f32.xlu0 %v2242
        %v2244 = vpop.xlane.xlu0 %2243
        %v2245 = vrot.slane %v2244, 4
        %v2246 = vadd.f32 %v2244, %v2245
        %v2247 = vrot.slane %v2246, 2
        %v2248 = vadd.f32 %v2246, %v2247
        %v2249 = vrot.slane %v2248, 1
        %v2250 = vadd.f32 %v2248, %v2249
        %s2251 = vtos %v2250
        %vm2252 = vcmp.eq.s32.totalorder %v596, 0
        %vm2253 = vcmp.eq.s32.totalorder %v596, 1
        %v2254 = vstv %s2251
        %v2255 = vsel %vm2253, %v2254, 0.0
        %v2256 = vstv %s2241
        %v2257 = vsel %vm2252, %v2256, %v2255
        %2258 = vst [vmem:[%s583] sm:$0x1] %v2257
        %2259 = vst [vmem:[%s580] sm:$0xff] %v2193
        %2260 = vst [vmem:[%s580 + $0x8] sm:$0xff] %v2195
      $region76: #{vision_to_llama_forward.3} parent=67 // pred_fallthru
        _
      %p2261 = scmp.lt.s32.totalorder %s29, 1
      %s2262 = scalar_select %p2261, %s29, 1
      %s2263 = smul.addr %s2262, 2
      %s2264 = smul.addr %s2263, 8
      %s2265 = scalar_lea.vmem %s12, %s2264
      %p2266 = scmp.lt.s32.totalorder %s29, 1
      %s2267 = scalar_select %p2266, %s29, 1
      %s2268 = scalar_lea.vmem %s13, %s2267
      // Predicated region
      $region77: #{vision_to_llama_forward.3} parent=67 // pred_check
        %p2269 = pneg %p347
      $region78: #{vision_to_llama_forward.3} parent=67 // pred_check_branch
        %2271 = sbr.rel (%p2269) target = $region80
      $region79: #{vision_to_llama_forward.3} parent=67 // pred_region
        _
      $region80: #{vision_to_llama_forward.3} parent=67 // pred_fallthru
        _
      // Predicated region
      $region81: #{vision_to_llama_forward.3} parent=67 // pred_check
        %p2272 = pneg %p373
      $region82: #{vision_to_llama_forward.3} parent=67 // pred_check_branch
        %2274 = sbr.rel (%p2272) target = $region84
      $region83: #{vision_to_llama_forward.3} parent=67 // pred_region
        _
      $region84: #{vision_to_llama_forward.3} parent=67 // pred_fallthru
        _
    $region68: #{vision_to_llama_forward.3} parent=5 // pred_fallthru
      _
    %p2275 = scmp.le.s32.totalorder 2, %s20
    // Predicated region
    $region85: #{vision_to_llama_forward.3} parent=5 // pred_check
      %p2276 = pneg %p2275
    $region86: #{vision_to_llama_forward.3} parent=5 // pred_check_branch
      %2278 = sbr.rel (%p2276) target = $region88
    $region87: #{vision_to_llama_forward.3} parent=5 // pred_region
      %s2279 = ssub.s32 %s20, 2
      // Predicated region
      $region89: #{vision_to_llama_forward.3} parent=87 // pred_check
        %p2280 = pneg %p353
      $region90: #{vision_to_llama_forward.3} parent=87 // pred_check_branch
        %2282 = sbr.rel (%p2280) target = $region92
      $region91: #{vision_to_llama_forward.3} parent=87 // pred_region
        %p2283 = scmp.lt.s32.totalorder %s31, 1
        %s2284 = scalar_select %p2283, %s31, 1
        %s2285 = smul.addr %s2284, 2
        %s2286 = smul.addr %s2285, 8
        %s2287 = scalar_lea.vmem %s12, %s2286
      $region92: #{vision_to_llama_forward.3} parent=87 // pred_fallthru
        _
      // Predicated region
      $region93: #{vision_to_llama_forward.3} parent=87 // pred_check
        %p2288 = pneg %p379
      $region94: #{vision_to_llama_forward.3} parent=87 // pred_check_branch
        %2290 = sbr.rel (%p2288) target = $region96
      $region95: #{vision_to_llama_forward.3} parent=87 // pred_region
        %p2291 = scmp.lt.s32.totalorder %s31, 1
        %s2292 = scalar_select %p2291, %s31, 1
        %s2293 = scalar_lea.vmem %s13, %s2292
      $region96: #{vision_to_llama_forward.3} parent=87 // pred_fallthru
        _
    $region88: #{vision_to_llama_forward.3} parent=5 // pred_fallthru
      _
  $region6: #{vision_to_llama_forward.3} parent=0 // loop_footer
    %s24 = sadd.s32 1, %s20
  $region7: #{vision_to_llama_forward.3} parent=0 // loop_footer_branch
    %19 = sbr.rel target = $region3
  $region8: #{vision_to_llama_forward.3} parent=0 // loop_exit
    _

</llo_original>
